<compile_context>
chip_gen: v6e
topology: v6e:2x2x1
jax: 0.10.0
libtpu: 0.0.40
codegen_flags: <defaults>
</compile_context>

<pallas_src>
import jax
import jax.numpy as jnp
from jax.experimental import pallas as pl
from jax.experimental.pallas import tpu as pltpu

EPS = 1e-5


def upsample_expand_kernel(x_ref, wt_ref, g_ref, b_ref, o_ref):
    # x_ref : (1, H*W, C)      one batch element, pixels flattened on sublanes
    # wt_ref: (C, C2)          linear weight, pre-transposed (C2 = C // 2)
    # g_ref : (1, C2)          LayerNorm gamma
    # b_ref : (1, C2)          LayerNorm beta
    # o_ref : (1, 2H, W, 2*C2) output; row-major identical to (1, 2H, 2W, C2)
    C2 = wt_ref.shape[1]
    H2 = o_ref.shape[1]
    W = o_ref.shape[2]
    H = H2 // 2

    # ---- Linear (no bias): single MXU matmul over all pixels ----
    y = jnp.dot(x_ref[0], wt_ref[...], preferred_element_type=jnp.float32)
    y = y.reshape(H, W, C2)  # split of the major dim (W % 8 == 0): layout-preserving

    # ---- 2x bilinear upsample along W (align_corners=False) ----
    # out[2w]   = 0.25 * in[w-1] + 0.75 * in[w]      (clamped at w = 0)
    # out[2w+1] = 0.75 * in[w]   + 0.25 * in[w+1]    (clamped at w = W-1)
    w_prev = jnp.concatenate([y[:, :1], y[:, :-1]], axis=1)
    w_next = jnp.concatenate([y[:, 1:], y[:, -1:]], axis=1)
    even_w = 0.25 * w_prev + 0.75 * y
    odd_w = 0.75 * y + 0.25 * w_next
    # Pair output columns (2w, 2w+1) on the lane axis: (H, W, 2*C2) has the
    # same row-major order as (H, 2W, C2), so no lane shuffle is ever needed.
    z = jnp.concatenate([even_w, odd_w], axis=2)

    # ---- 2x bilinear upsample along H (same weights, leading-dim ops) ----
    h_prev = jnp.concatenate([z[:1], z[:-1]], axis=0)
    h_next = jnp.concatenate([z[1:], z[-1:]], axis=0)
    even_h = 0.25 * h_prev + 0.75 * z
    odd_h = 0.75 * z + 0.25 * h_next
    # Interleave rows on the leading axis (no sublane/lane data movement).
    up = jnp.concatenate([even_h[:, None], odd_h[:, None]], axis=1)
    up = up.reshape(H2, W, 2 * C2)

    # ---- LayerNorm over the C2 channels of every output pixel ----
    g = g_ref[...]  # (1, C2)
    b = b_ref[...]  # (1, C2)
    inv_c = 1.0 / C2

    def layernorm(t):  # t: (2H, W, C2) -> single-pass stats, EUP rsqrt
        s1 = jnp.sum(t, axis=-1, keepdims=True)
        s2 = jnp.sum(t * t, axis=-1, keepdims=True)
        m = s1 * inv_c
        v = jnp.maximum(s2 * inv_c - m * m, 0.0)
        return (t - m) * jax.lax.rsqrt(v + EPS) * g + b

    out = jnp.concatenate(
        [layernorm(up[:, :, :C2]), layernorm(up[:, :, C2:])], axis=2)
    o_ref[0] = out


def upsample_expand_pallas(x, w_lin, gamma, beta):
    """UpsampleExpand forward.

    x     : (B, H, W, C) float32, channel-last (same as the PyTorch module)
    w_lin : (C//2, C)    nn.Linear(dim, dim//2, bias=False) weight
    gamma : (C//2,)      LayerNorm weight
    beta  : (C//2,)      LayerNorm bias
    returns (B, 2H, 2W, C//2) float32
    """
    B, H, W, C = x.shape
    C2 = C // 2
    assert w_lin.shape == (C2, C)

    x2 = x.reshape(B, H * W, C).astype(jnp.float32)   # free reshape (no copy)
    wt = jnp.transpose(w_lin).astype(jnp.float32)     # (C, C2), tiny, one-off
    g = gamma.reshape(1, C2).astype(jnp.float32)
    b = beta.reshape(1, C2).astype(jnp.float32)

    out = pl.pallas_call(
        upsample_expand_kernel,
        out_shape=jax.ShapeDtypeStruct((B, 2 * H, W, 2 * C2), jnp.float32),
        grid_spec=pltpu.PrefetchScalarGridSpec(
            num_scalar_prefetch=0,
            grid=(B,),
            in_specs=[
                pl.BlockSpec((1, H * W, C), lambda bb: (bb, 0, 0)),
                pl.BlockSpec((C, C2), lambda bb: (0, 0)),
                pl.BlockSpec((1, C2), lambda bb: (0, 0)),
                pl.BlockSpec((1, C2), lambda bb: (0, 0)),
            ],
            out_specs=pl.BlockSpec((1, 2 * H, W, 2 * C2),
                                   lambda bb: (bb, 0, 0, 0)),
        ),
        compiler_params=pltpu.CompilerParams(
            dimension_semantics=("parallel",)),
    )(x2, wt, g, b)

    # (B, 2H, W, 2*C2) and (B, 2H, 2W, C2) are the same bytes; reshape is free.
    return out.reshape(B, 2 * H, 2 * W, C2)


# ----------------------------- pure-JAX reference ---------------------------

def _bilinear_upsample_2x_ref(x):
    """PyTorch F.interpolate(scale_factor=2, mode='bilinear',
    align_corners=False) on NCHW input (exact index / weight math)."""
    B, C, H, W = x.shape

    def src_idx(length):
        i = jnp.arange(2 * length, dtype=jnp.float32)
        src = (i + 0.5) * 0.5 - 0.5
        src = jnp.maximum(src, 0.0)
        i0 = jnp.clip(jnp.floor(src).astype(jnp.int32), 0, length - 1)
        i1 = jnp.minimum(i0 + 1, length - 1)
        frac = src - i0.astype(jnp.float32)
        return i0, i1, frac

    h0, h1, fh = src_idx(H)
    w0, w1, fw = src_idx(W)
    xh = (x[:, :, h0, :] * (1.0 - fh)[None, None, :, None]
          + x[:, :, h1, :] * fh[None, None, :, None])
    out = (xh[:, :, :, w0] * (1.0 - fw)[None, None, None, :]
           + xh[:, :, :, w1] * fw[None, None, None, :])
    return out


def upsample_expand_reference(x, w_lin, gamma, beta):
    """Pure-JAX reference mirroring the PyTorch module (eval semantics)."""
    y = jnp.einsum("bhwc,oc->bhwo", x, w_lin,
                   precision=jax.lax.Precision.HIGHEST)  # Linear, no bias
    y = jnp.transpose(y, (0, 3, 1, 2))                   # B, C2, H, W
    y = _bilinear_upsample_2x_ref(y)                     # B, C2, 2H, 2W
    y = jnp.transpose(y, (0, 2, 3, 1))                   # B, 2H, 2W, C2
    m = jnp.mean(y, axis=-1, keepdims=True)
    v = jnp.mean((y - m) ** 2, axis=-1, keepdims=True)
    return (y - m) / jnp.sqrt(v + EPS) * gamma + beta


if __name__ == "__main__":
    B, H, W, dim = 2, 16, 16, 32
    key = jax.random.PRNGKey(0)
    kx, kw, kg, kb = jax.random.split(key, 4)
    x = jax.random.normal(kx, (B, H, W, dim), jnp.float32)
    w_lin = jax.random.normal(kw, (dim // 2, dim), jnp.float32) / jnp.sqrt(dim)
    gamma = 1.0 + 0.1 * jax.random.normal(kg, (dim // 2,), jnp.float32)
    beta = 0.1 * jax.random.normal(kb, (dim // 2,), jnp.float32)

    out = upsample_expand_pallas(x, w_lin, gamma, beta)
    out = jax.block_until_ready(out)

    ref = upsample_expand_reference(x, w_lin, gamma, beta)
    ref = jax.block_until_ready(ref)

    assert out.shape == (B, 2 * H, 2 * W, dim // 2), out.shape
    max_err = float(jnp.max(jnp.abs(out - ref)))
    # LayerNorm-normalized outputs are O(1); 2e-2 leaves headroom for possible
    # MXU rounding-mode differences (typical observed error is ~1e-6).
    assert max_err < 2e-2, f"max abs error too large: {max_err}"
    print("KERNEL_OK")
</pallas_src>

<mosaic_0001>
module attributes {stable_mosaic.version = 11 : i64} {
  func.func @upsample_expand_kernel(%arg0: i32, %arg1: memref<1x256x32xf32, #tpu.memory_space<vmem>>, %arg2: memref<32x16xf32, #tpu.memory_space<vmem>>, %arg3: memref<1x16xf32, #tpu.memory_space<vmem>>, %arg4: memref<1x16xf32, #tpu.memory_space<vmem>>, %arg5: memref<1x32x16x32xf32, #tpu.memory_space<vmem>>) attributes {dimension_semantics = [#tpu.dimension_semantics<parallel>], iteration_bounds = array<i64: 2>, scalar_prefetch = 0 : i64, scratch_operands = 0 : i64, tpu.core_type = #tpu.core_type<tc>, window_params = [{transform_indices = @transform_0, window_bounds = array<i64: 1, 256, 32>}, {pipeline_mode = #tpu.pipeline_mode<synchronous>, transform_indices = @transform_1, window_bounds = array<i64: 32, 16>}, {pipeline_mode = #tpu.pipeline_mode<synchronous>, transform_indices = @transform_2, window_bounds = array<i64: 1, 16>}, {pipeline_mode = #tpu.pipeline_mode<synchronous>, transform_indices = @transform_3, window_bounds = array<i64: 1, 16>}, {transform_indices = @transform_4, window_bounds = array<i64: 1, 32, 16, 32>}]} {
    %c0 = arith.constant 0 : index
    %c0_0 = arith.constant 0 : index
    %c0_1 = arith.constant 0 : index
    %0 = vector.load %arg1[%c0, %c0_0, %c0_1] : memref<1x256x32xf32, #tpu.memory_space<vmem>>, vector<1x256x32xf32>
    %1 = vector.shape_cast %0 : vector<1x256x32xf32> to vector<256x32xf32>
    %c0_2 = arith.constant 0 : index
    %c0_3 = arith.constant 0 : index
    %2 = vector.load %arg2[%c0_2, %c0_3] : memref<32x16xf32, #tpu.memory_space<vmem>>, vector<32x16xf32>
    %cst = arith.constant dense<0.000000e+00> : vector<256x16xf32>
    %3 = tpu.matmul %1, %2, %cst {dimension_numbers = #tpu.dot_dimension_numbers<[1], [0], [0], [1], [0, 0, 1, 1], [], []>} : vector<256x32xf32>, vector<32x16xf32>, vector<256x16xf32> -> vector<256x16xf32>
    %4 = vector.shape_cast %3 : vector<256x16xf32> to vector<16x16x16xf32>
    %5 = vector.extract_strided_slice %4 {offsets = [0, 0, 0], sizes = [16, 1, 16], strides = [1, 1, 1]} : vector<16x16x16xf32> to vector<16x1x16xf32>
    %6 = vector.extract_strided_slice %4 {offsets = [0, 0, 0], sizes = [16, 15, 16], strides = [1, 1, 1]} : vector<16x16x16xf32> to vector<16x15x16xf32>
    %7 = tpu.concatenate %5, %6 in 1 : vector<16x1x16xf32>, vector<16x15x16xf32> -> vector<16x16x16xf32>
    %8 = vector.extract_strided_slice %4 {offsets = [0, 1, 0], sizes = [16, 15, 16], strides = [1, 1, 1]} : vector<16x16x16xf32> to vector<16x15x16xf32>
    %9 = vector.extract_strided_slice %4 {offsets = [0, 15, 0], sizes = [16, 1, 16], strides = [1, 1, 1]} : vector<16x16x16xf32> to vector<16x1x16xf32>
    %10 = tpu.concatenate %8, %9 in 1 : vector<16x15x16xf32>, vector<16x1x16xf32> -> vector<16x16x16xf32>
    %cst_4 = arith.constant 2.500000e-01 : f32
    %11 = vector.broadcast %cst_4 : f32 to vector<16x16x16xf32>
    %12 = arith.mulf %11, %7 : vector<16x16x16xf32>
    %cst_5 = arith.constant 7.500000e-01 : f32
    %13 = vector.broadcast %cst_5 : f32 to vector<16x16x16xf32>
    %14 = arith.mulf %13, %4 : vector<16x16x16xf32>
    %15 = arith.addf %12, %14 : vector<16x16x16xf32>
    %cst_6 = arith.constant 7.500000e-01 : f32
    %16 = vector.broadcast %cst_6 : f32 to vector<16x16x16xf32>
    %17 = arith.mulf %16, %4 : vector<16x16x16xf32>
    %cst_7 = arith.constant 2.500000e-01 : f32
    %18 = vector.broadcast %cst_7 : f32 to vector<16x16x16xf32>
    %19 = arith.mulf %18, %10 : vector<16x16x16xf32>
    %20 = arith.addf %17, %19 : vector<16x16x16xf32>
    %21 = tpu.concatenate %15, %20 in 2 : vector<16x16x16xf32>, vector<16x16x16xf32> -> vector<16x16x32xf32>
    %22 = vector.extract_strided_slice %21 {offsets = [0, 0, 0], sizes = [1, 16, 32], strides = [1, 1, 1]} : vector<16x16x32xf32> to vector<1x16x32xf32>
    %23 = vector.extract_strided_slice %21 {offsets = [0, 0, 0], sizes = [15, 16, 32], strides = [1, 1, 1]} : vector<16x16x32xf32> to vector<15x16x32xf32>
    %24 = tpu.concatenate %22, %23 in 0 : vector<1x16x32xf32>, vector<15x16x32xf32> -> vector<16x16x32xf32>
    %25 = vector.extract_strided_slice %21 {offsets = [1, 0, 0], sizes = [15, 16, 32], strides = [1, 1, 1]} : vector<16x16x32xf32> to vector<15x16x32xf32>
    %26 = vector.extract_strided_slice %21 {offsets = [15, 0, 0], sizes = [1, 16, 32], strides = [1, 1, 1]} : vector<16x16x32xf32> to vector<1x16x32xf32>
    %27 = tpu.concatenate %25, %26 in 0 : vector<15x16x32xf32>, vector<1x16x32xf32> -> vector<16x16x32xf32>
    %cst_8 = arith.constant 2.500000e-01 : f32
    %28 = vector.broadcast %cst_8 : f32 to vector<16x16x32xf32>
    %29 = arith.mulf %28, %24 : vector<16x16x32xf32>
    %cst_9 = arith.constant 7.500000e-01 : f32
    %30 = vector.broadcast %cst_9 : f32 to vector<16x16x32xf32>
    %31 = arith.mulf %30, %21 : vector<16x16x32xf32>
    %32 = arith.addf %29, %31 : vector<16x16x32xf32>
    %cst_10 = arith.constant 7.500000e-01 : f32
    %33 = vector.broadcast %cst_10 : f32 to vector<16x16x32xf32>
    %34 = arith.mulf %33, %21 : vector<16x16x32xf32>
    %cst_11 = arith.constant 2.500000e-01 : f32
    %35 = vector.broadcast %cst_11 : f32 to vector<16x16x32xf32>
    %36 = arith.mulf %35, %27 : vector<16x16x32xf32>
    %37 = arith.addf %34, %36 : vector<16x16x32xf32>
    %38 = vector.shape_cast %32 : vector<16x16x32xf32> to vector<16x1x16x32xf32>
    %39 = vector.shape_cast %37 : vector<16x16x32xf32> to vector<16x1x16x32xf32>
    %40 = tpu.concatenate %38, %39 in 1 : vector<16x1x16x32xf32>, vector<16x1x16x32xf32> -> vector<16x2x16x32xf32>
    %41 = vector.shape_cast %40 : vector<16x2x16x32xf32> to vector<32x16x32xf32>
    %c0_12 = arith.constant 0 : index
    %c0_13 = arith.constant 0 : index
    %42 = vector.load %arg3[%c0_12, %c0_13] : memref<1x16xf32, #tpu.memory_space<vmem>>, vector<1x16xf32>
    %c0_14 = arith.constant 0 : index
    %c0_15 = arith.constant 0 : index
    %43 = vector.load %arg4[%c0_14, %c0_15] : memref<1x16xf32, #tpu.memory_space<vmem>>, vector<1x16xf32>
    %44 = vector.extract_strided_slice %41 {offsets = [0, 0, 0], sizes = [32, 16, 16], strides = [1, 1, 1]} : vector<32x16x32xf32> to vector<32x16x16xf32>
    %cst_16 = arith.constant dense<0.000000e+00> : vector<32x16xf32>
    %45 = vector.multi_reduction <add>, %44, %cst_16 [2] : vector<32x16x16xf32> to vector<32x16xf32>
    %46 = vector.shape_cast %45 : vector<32x16xf32> to vector<32x16x1xf32>
    %47 = arith.mulf %44, %44 : vector<32x16x16xf32>
    %cst_17 = arith.constant dense<0.000000e+00> : vector<32x16xf32>
    %48 = vector.multi_reduction <add>, %47, %cst_17 [2] : vector<32x16x16xf32> to vector<32x16xf32>
    %49 = vector.shape_cast %48 : vector<32x16xf32> to vector<32x16x1xf32>
    %cst_18 = arith.constant 6.250000e-02 : f32
    %50 = vector.broadcast %cst_18 : f32 to vector<32x16x1xf32>
    %51 = arith.mulf %46, %50 : vector<32x16x1xf32>
    %cst_19 = arith.constant 6.250000e-02 : f32
    %52 = vector.broadcast %cst_19 : f32 to vector<32x16x1xf32>
    %53 = arith.mulf %49, %52 : vector<32x16x1xf32>
    %54 = arith.mulf %51, %51 : vector<32x16x1xf32>
    %55 = arith.subf %53, %54 : vector<32x16x1xf32>
    %cst_20 = arith.constant 0.000000e+00 : f32
    %56 = vector.broadcast %cst_20 : f32 to vector<32x16x1xf32>
    %57 = arith.maximumf %55, %56 : vector<32x16x1xf32>
    %58 = vector.broadcast %51 : vector<32x16x1xf32> to vector<32x16x16xf32>
    %59 = arith.subf %44, %58 : vector<32x16x16xf32>
    %cst_21 = arith.constant 9.99999974E-6 : f32
    %60 = vector.broadcast %cst_21 : f32 to vector<32x16x1xf32>
    %61 = arith.addf %57, %60 : vector<32x16x1xf32>
    %62 = math.rsqrt %61 : vector<32x16x1xf32>
    %63 = vector.broadcast %62 : vector<32x16x1xf32> to vector<32x16x16xf32>
    %64 = arith.mulf %59, %63 : vector<32x16x16xf32>
    %65 = vector.shape_cast %42 : vector<1x16xf32> to vector<1x1x16xf32>
    %66 = vector.broadcast %65 : vector<1x1x16xf32> to vector<32x16x16xf32>
    %67 = arith.mulf %64, %66 : vector<32x16x16xf32>
    %68 = vector.shape_cast %43 : vector<1x16xf32> to vector<1x1x16xf32>
    %69 = vector.broadcast %68 : vector<1x1x16xf32> to vector<32x16x16xf32>
    %70 = arith.addf %67, %69 : vector<32x16x16xf32>
    %71 = vector.extract_strided_slice %41 {offsets = [0, 0, 16], sizes = [32, 16, 16], strides = [1, 1, 1]} : vector<32x16x32xf32> to vector<32x16x16xf32>
    %cst_22 = arith.constant dense<0.000000e+00> : vector<32x16xf32>
    %72 = vector.multi_reduction <add>, %71, %cst_22 [2] : vector<32x16x16xf32> to vector<32x16xf32>
    %73 = vector.shape_cast %72 : vector<32x16xf32> to vector<32x16x1xf32>
    %74 = arith.mulf %71, %71 : vector<32x16x16xf32>
    %cst_23 = arith.constant dense<0.000000e+00> : vector<32x16xf32>
    %75 = vector.multi_reduction <add>, %74, %cst_23 [2] : vector<32x16x16xf32> to vector<32x16xf32>
    %76 = vector.shape_cast %75 : vector<32x16xf32> to vector<32x16x1xf32>
    %cst_24 = arith.constant 6.250000e-02 : f32
    %77 = vector.broadcast %cst_24 : f32 to vector<32x16x1xf32>
    %78 = arith.mulf %73, %77 : vector<32x16x1xf32>
    %cst_25 = arith.constant 6.250000e-02 : f32
    %79 = vector.broadcast %cst_25 : f32 to vector<32x16x1xf32>
    %80 = arith.mulf %76, %79 : vector<32x16x1xf32>
    %81 = arith.mulf %78, %78 : vector<32x16x1xf32>
    %82 = arith.subf %80, %81 : vector<32x16x1xf32>
    %cst_26 = arith.constant 0.000000e+00 : f32
    %83 = vector.broadcast %cst_26 : f32 to vector<32x16x1xf32>
    %84 = arith.maximumf %82, %83 : vector<32x16x1xf32>
    %85 = vector.broadcast %78 : vector<32x16x1xf32> to vector<32x16x16xf32>
    %86 = arith.subf %71, %85 : vector<32x16x16xf32>
    %cst_27 = arith.constant 9.99999974E-6 : f32
    %87 = vector.broadcast %cst_27 : f32 to vector<32x16x1xf32>
    %88 = arith.addf %84, %87 : vector<32x16x1xf32>
    %89 = math.rsqrt %88 : vector<32x16x1xf32>
    %90 = vector.broadcast %89 : vector<32x16x1xf32> to vector<32x16x16xf32>
    %91 = arith.mulf %86, %90 : vector<32x16x16xf32>
    %92 = vector.shape_cast %42 : vector<1x16xf32> to vector<1x1x16xf32>
    %93 = vector.broadcast %92 : vector<1x1x16xf32> to vector<32x16x16xf32>
    %94 = arith.mulf %91, %93 : vector<32x16x16xf32>
    %95 = vector.shape_cast %43 : vector<1x16xf32> to vector<1x1x16xf32>
    %96 = vector.broadcast %95 : vector<1x1x16xf32> to vector<32x16x16xf32>
    %97 = arith.addf %94, %96 : vector<32x16x16xf32>
    %98 = tpu.concatenate %70, %97 in 2 : vector<32x16x16xf32>, vector<32x16x16xf32> -> vector<32x16x32xf32>
    %c0_28 = arith.constant 0 : index
    %c0_29 = arith.constant 0 : index
    %c0_30 = arith.constant 0 : index
    %c0_31 = arith.constant 0 : index
    %99 = vector.load %arg5[%c0_28, %c0_29, %c0_30, %c0_31] : memref<1x32x16x32xf32, #tpu.memory_space<vmem>>, vector<1x32x16x32xf32>
    %100 = vector.shape_cast %99 : vector<1x32x16x32xf32> to vector<32x16x32xf32>
    %101 = vector.shape_cast %98 : vector<32x16x32xf32> to vector<1x32x16x32xf32>
    tpu.vector_store %arg5[%c0_28, %c0_29, %c0_30, %c0_31], %101 {strides = array<i32>} : memref<1x32x16x32xf32, #tpu.memory_space<vmem>>, vector<1x32x16x32xf32>,
    return
  }
  func.func @transform_0(%arg0: i32) -> (i32, i32, i32) {
    %c0_i32 = arith.constant 0 : i32
    %c0_i32_0 = arith.constant 0 : i32
    %c0_i32_1 = arith.constant 0 : i32
    return %arg0, %c0_i32, %c0_i32_0 : i32, i32, i32
  }
  func.func @transform_1(%arg0: i32) -> (i32, i32) {
    %c0_i32 = arith.constant 0 : i32
    %c0_i32_0 = arith.constant 0 : i32
    %c0_i32_1 = arith.constant 0 : i32
    return %c0_i32, %c0_i32_0 : i32, i32
  }
  func.func @transform_2(%arg0: i32) -> (i32, i32) {
    %c0_i32 = arith.constant 0 : i32
    %c0_i32_0 = arith.constant 0 : i32
    %c0_i32_1 = arith.constant 0 : i32
    return %c0_i32, %c0_i32_0 : i32, i32
  }
  func.func @transform_3(%arg0: i32) -> (i32, i32) {
    %c0_i32 = arith.constant 0 : i32
    %c0_i32_0 = arith.constant 0 : i32
    %c0_i32_1 = arith.constant 0 : i32
    return %c0_i32, %c0_i32_0 : i32, i32
  }
  func.func @transform_4(%arg0: i32) -> (i32, i32, i32, i32) {
    %c0_i32 = arith.constant 0 : i32
    %c0_i32_0 = arith.constant 0 : i32
    %c0_i32_1 = arith.constant 0 : i32
    %c0_i32_2 = arith.constant 0 : i32
    return %arg0, %c0_i32, %c0_i32_0, %c0_i32_1 : i32, i32, i32, i32
  }
}

</mosaic_0001>

<llo_original>
// kernel: tpu_custom_call.1
$region0: #{tpu_custom_call.1}
  #allocation0 [shape = 'u32[]', space=smem, size = 0x4, offset = 0x4, fixed_abs, tag = 'smem constant byte address 0x4 - core index']
  #allocation1 [shape = 'u32[144,128]{1,0:T(1,128)}', space=vmem, size = 0x12000, scoped, tag = 'internal scratch']
  %s0 = inlined_call_operand.vmem [shape: f32[2,256,32], index: 0, kind: input, shape index: {}]
  %s1 = inlined_call_operand.vmem [shape: f32[32,16], index: 1, kind: input, shape index: {}]
  %s2 = inlined_call_operand.vmem [shape: f32[1,16], index: 2, kind: input, shape index: {}]
  %s3 = inlined_call_operand.vmem [shape: f32[1,16], index: 3, kind: input, shape index: {}]
  %s4 = inlined_call_operand.hbm [shape: f32[2,32,16,32], index: 4, kind: output, shape index: {}]
  %s5 = sld [smem:[#allocation0]]
  $region49: #{tpu_custom_call.1} parent=0
    _
  %s7 = ssub.s32 1, %s5
  %s8 = scalar_select 0, %s7, %s5
  $region1: #{tpu_custom_call.1} parent=0
    #allocation2 [shape = 'u8[524288]{0}', space=vmem, size = 0x80000, scoped, tag = 'output window, operand 0']
    #allocation3 [shape = 's32[2]{0}', space=sflag, size = 0x8, scoped, tag = 'scoped memory for tpu_custom_call.1']
    %9 = vsyncpa [#allocation3], 0
    %s10 = scalar_lea.sflag [#allocation3], 1
    %11 = vsyncpa %s10, 0
    loop: start=0, step=1, limit=4
    $region2: #{tpu_custom_call.1} parent=1 // loop_pre_header
      _
    $region3: #{tpu_custom_call.1} parent=1 // loop_header
      %s13 = sphi 0, %s17
      %p14 = scmp.ge.s32.totalorder %s13, 4
      %s23 = sphi 0, %s25
      %s26 = sphi 0, %s23
      %s27 = sphi 0, %s26
      %s43 = sphi 0, %s27
      %s47 = sphi 0, %s47
      %s49 = sphi 0, %s47
      %s50 = sphi 0, %s49
      %s64 = sphi 0, %s50
      %s68 = sphi 0, %s68
      %s70 = sphi 0, %s68
      %s71 = sphi 0, %s70
      %s85 = sphi 0, %s71
      %s89 = sphi 0, %s89
      %s91 = sphi 0, %s89
      %s92 = sphi 0, %s91
      %s106 = sphi 0, %s92
      %s112 = sphi 0, %s114
      %s115 = sphi 0, %s112
      %s116 = sphi 0, %s115
      %s132 = sphi 0, %s116
    $region4: #{tpu_custom_call.1} parent=1 // loop_header_branch
      %16 = sbr.rel (%p14) target = $region8
    $region5: #{tpu_custom_call.1} parent=1 // loop_body
      %s18 = ssub.s32 %s13, 1
      %s19 = ssub.s32 %s13, 2
      %s20 = sadd.s32 %s13, 1
      %s21 = ssub.s32 %s13, %s20
      %p22 = scmp.eq.s32.totalorder %s21, 0
      %s24 = sadd.s32 %s23, 1
      %s25 = scalar_select %p22, %s23, %s24
      %p28 = pneg %p22
      %p29 = scmp.eq.s32.totalorder %s13, 1
      %p30 = por %p28, %p29
      %p31 = scmp.ne.s32.totalorder %s23, %s26
      %p32 = scmp.eq.s32.totalorder %s13, 0
      %p33 = por %p31, %p32
      %p34 = scmp.ne.s32.totalorder %s23, %s26
      %p35 = scmp.eq.s32.totalorder %s18, 1
      %p36 = por %p34, %p35
      %p37 = scmp.ne.s32.totalorder %s26, %s27
      %p38 = scmp.eq.s32.totalorder %s18, 0
      %p39 = por %p37, %p38
      %p40 = scmp.ne.s32.totalorder %s26, %s27
      %p41 = scmp.eq.s32.totalorder %s19, 1
      %p42 = por %p40, %p41
      %p44 = scmp.ne.s32.totalorder %s27, %s43
      %p45 = scmp.eq.s32.totalorder %s19, 0
      %p46 = por %p44, %p45
      %s48 = sadd.s32 %s47, 1
      %p51 = scmp.eq.s32.totalorder %s13, 1
      %p52 = scmp.ne.s32.totalorder %s47, %s49
      %p53 = scmp.eq.s32.totalorder %s13, 0
      %p54 = por %p52, %p53
      %p55 = scmp.ne.s32.totalorder %s47, %s49
      %p56 = scmp.eq.s32.totalorder %s18, 1
      %p57 = por %p55, %p56
      %p58 = scmp.ne.s32.totalorder %s49, %s50
      %p59 = scmp.eq.s32.totalorder %s18, 0
      %p60 = por %p58, %p59
      %p61 = scmp.ne.s32.totalorder %s49, %s50
      %p62 = scmp.eq.s32.totalorder %s19, 1
      %p63 = por %p61, %p62
      %p65 = scmp.ne.s32.totalorder %s50, %s64
      %p66 = scmp.eq.s32.totalorder %s19, 0
      %p67 = por %p65, %p66
      %s69 = sadd.s32 %s68, 1
      %p72 = scmp.eq.s32.totalorder %s13, 1
      %p73 = scmp.ne.s32.totalorder %s68, %s70
      %p74 = scmp.eq.s32.totalorder %s13, 0
      %p75 = por %p73, %p74
      %p76 = scmp.ne.s32.totalorder %s68, %s70
      %p77 = scmp.eq.s32.totalorder %s18, 1
      %p78 = por %p76, %p77
      %p79 = scmp.ne.s32.totalorder %s70, %s71
      %p80 = scmp.eq.s32.totalorder %s18, 0
      %p81 = por %p79, %p80
      %p82 = scmp.ne.s32.totalorder %s70, %s71
      %p83 = scmp.eq.s32.totalorder %s19, 1
      %p84 = por %p82, %p83
      %p86 = scmp.ne.s32.totalorder %s71, %s85
      %p87 = scmp.eq.s32.totalorder %s19, 0
      %p88 = por %p86, %p87
      %s90 = sadd.s32 %s89, 1
      %p93 = scmp.eq.s32.totalorder %s13, 1
      %p94 = scmp.ne.s32.totalorder %s89, %s91
      %p95 = scmp.eq.s32.totalorder %s13, 0
      %p96 = por %p94, %p95
      %p97 = scmp.ne.s32.totalorder %s89, %s91
      %p98 = scmp.eq.s32.totalorder %s18, 1
      %p99 = por %p97, %p98
      %p100 = scmp.ne.s32.totalorder %s91, %s92
      %p101 = scmp.eq.s32.totalorder %s18, 0
      %p102 = por %p100, %p101
      %p103 = scmp.ne.s32.totalorder %s91, %s92
      %p104 = scmp.eq.s32.totalorder %s19, 1
      %p105 = por %p103, %p104
      %p107 = scmp.ne.s32.totalorder %s92, %s106
      %p108 = scmp.eq.s32.totalorder %s19, 0
      %p109 = por %p107, %p108
      %s110 = ssub.s32 %s13, %s20
      %p111 = scmp.eq.s32.totalorder %s110, 0
      %s113 = sadd.s32 %s112, 1
      %s114 = scalar_select %p111, %s112, %s113
      %p117 = pneg %p111
      %p118 = scmp.eq.s32.totalorder %s13, 1
      %p119 = por %p117, %p118
      %p120 = scmp.ne.s32.totalorder %s112, %s115
      %p121 = scmp.eq.s32.totalorder %s13, 0
      %p122 = por %p120, %p121
      %p123 = scmp.ne.s32.totalorder %s112, %s115
      %p124 = scmp.eq.s32.totalorder %s18, 1
      %p125 = por %p123, %p124
      %p126 = scmp.ne.s32.totalorder %s115, %s116
      %p127 = scmp.eq.s32.totalorder %s18, 0
      %p128 = por %p126, %p127
      %p129 = scmp.ne.s32.totalorder %s115, %s116
      %p130 = scmp.eq.s32.totalorder %s19, 1
      %p131 = por %p129, %p130
      %p133 = scmp.ne.s32.totalorder %s116, %s132
      %p134 = scmp.eq.s32.totalorder %s19, 0
      %p135 = por %p133, %p134
      %p136 = scmp.le.s32.totalorder 1, %s13
      %p137 = scmp.lt.s32.totalorder %s13, 3
      %p138 = pnand %p136, %p137
      %p139 = pneg %p138
      // Predicated region
      $region9: #{tpu_custom_call.1} parent=5 // pred_check
        _
      $region10: #{tpu_custom_call.1} parent=5 // pred_check_branch
        %141 = sbr.rel (%p138) target = $region12
      $region11: #{tpu_custom_call.1} parent=5 // pred_region
        %s142 = ssub.s32 %s13, 1
        // Predicated region
        $region13: #{tpu_custom_call.1} parent=11 // pred_check
          %p143 = pneg %p60
        $region14: #{tpu_custom_call.1} parent=11 // pred_check_branch
          %145 = sbr.rel (%p143) target = $region16
        $region15: #{tpu_custom_call.1} parent=11 // pred_region
          _
        $region16: #{tpu_custom_call.1} parent=11 // pred_fallthru
          _
        // Predicated region
        $region17: #{tpu_custom_call.1} parent=11 // pred_check
          %p146 = pneg %p81
        $region18: #{tpu_custom_call.1} parent=11 // pred_check_branch
          %148 = sbr.rel (%p146) target = $region20
        $region19: #{tpu_custom_call.1} parent=11 // pred_region
          _
        $region20: #{tpu_custom_call.1} parent=11 // pred_fallthru
          _
        // Predicated region
        $region21: #{tpu_custom_call.1} parent=11 // pred_check
          %p149 = pneg %p102
        $region22: #{tpu_custom_call.1} parent=11 // pred_check_branch
          %151 = sbr.rel (%p149) target = $region24
        $region23: #{tpu_custom_call.1} parent=11 // pred_region
          _
        $region24: #{tpu_custom_call.1} parent=11 // pred_fallthru
          _
      $region12: #{tpu_custom_call.1} parent=5 // pred_fallthru
        _
      %p152 = scmp.lt.s32.totalorder %s13, 2
      // Predicated region
      $region25: #{tpu_custom_call.1} parent=5 // pred_check
        %p153 = pneg %p152
      $region26: #{tpu_custom_call.1} parent=5 // pred_check_branch
        %155 = sbr.rel (%p153) target = $region28
      $region27: #{tpu_custom_call.1} parent=5 // pred_region
        // Predicated region
        $region29: #{tpu_custom_call.1} parent=27 // pred_check
          %p156 = pneg %p33
        $region30: #{tpu_custom_call.1} parent=27 // pred_check_branch
          %158 = sbr.rel (%p156) target = $region32
        $region31: #{tpu_custom_call.1} parent=27 // pred_region
          %p159 = scmp.lt.s32.totalorder %s13, 1
          %s160 = scalar_select %p159, %s13, 1
          %s161 = smul.addr %s160, 32
          %s162 = smul.addr %s161, 8
          %s163 = scalar_lea.vmem %s0, %s162
        $region32: #{tpu_custom_call.1} parent=27 // pred_fallthru
          _
      $region28: #{tpu_custom_call.1} parent=5 // pred_fallthru
        _
      %p164 = scmp.le.s32.totalorder 1, %s13
      %p165 = scmp.lt.s32.totalorder %s13, 3
      %p166 = pnand %p164, %p165
      %p167 = pneg %p166
      // Predicated region
      $region33: #{tpu_custom_call.1} parent=5 // pred_check
        _
      $region34: #{tpu_custom_call.1} parent=5 // pred_check_branch
        %169 = sbr.rel (%p166) target = $region36
      $region35: #{tpu_custom_call.1} parent=5 // pred_region
        %s170 = ssub.s32 %s13, 1
        %p171 = scmp.lt.s32.totalorder %s18, 1
        %s172 = scalar_select %p171, %s18, 1
        %s173 = smul.addr %s172, 32
        %s174 = smul.addr %s173, 8
        %s175 = scalar_lea.vmem %s0, %s174
        %p176 = pneg %p39
        %p177 = pneg %p36
        %p178 = pneg %p60
        %p179 = pneg %p57
        %p180 = pneg %p81
        %p181 = pneg %p78
        %p182 = pneg %p102
        %p183 = pneg %p99
        %p184 = pneg %p128
        %p185 = pneg %p125
        %s186 = sand.u32 %s115, 1
        %s187 = scalar_lea.sflag [#allocation3], %s186
        %s188 = sand.u32 %s115, 1
        %s189 = smul.addr %s188, 512
        %s190 = scalar_lea.vmem [#allocation2], %s189
        %p191 = scmp.lt.s32.totalorder %s18, 1
        %s192 = scalar_select %p191, %s18, 1
        %s193 = smul.addr %s192, 32
        %s194 = smul.addr %s193, 8
        %s195 = scalar_lea.vmem %s0, %s194
        %v196 = vld [vmem:[%s195] sm:$0xff]
        %v197 = vld [vmem:[%s195 + $0x8] sm:$0xff]
        %v198 = vld [vmem:[%s195 + $0x10] sm:$0xff]
        %v199 = vld [vmem:[%s195 + $0x18] sm:$0xff]
        %v200 = vld [vmem:[%s195 + $0x20] sm:$0xff]
        %v201 = vld [vmem:[%s195 + $0x28] sm:$0xff]
        %v202 = vld [vmem:[%s195 + $0x30] sm:$0xff]
        %v203 = vld [vmem:[%s195 + $0x38] sm:$0xff]
        %v204 = vld [vmem:[%s195 + $0x40] sm:$0xff]
        %v205 = vld [vmem:[%s195 + $0x48] sm:$0xff]
        %v206 = vld [vmem:[%s195 + $0x50] sm:$0xff]
        %v207 = vld [vmem:[%s195 + $0x58] sm:$0xff]
        %v208 = vld [vmem:[%s195 + $0x60] sm:$0xff]
        %v209 = vld [vmem:[%s195 + $0x68] sm:$0xff]
        %v210 = vld [vmem:[%s195 + $0x70] sm:$0xff]
        %v211 = vld [vmem:[%s195 + $0x78] sm:$0xff]
        %v212 = vld [vmem:[%s195 + $0x80] sm:$0xff]
        %v213 = vld [vmem:[%s195 + $0x88] sm:$0xff]
        %v214 = vld [vmem:[%s195 + $0x90] sm:$0xff]
        %v215 = vld [vmem:[%s195 + $0x98] sm:$0xff]
        %v216 = vld [vmem:[%s195 + $0xa0] sm:$0xff]
        %v217 = vld [vmem:[%s195 + $0xa8] sm:$0xff]
        %v218 = vld [vmem:[%s195 + $0xb0] sm:$0xff]
        %v219 = vld [vmem:[%s195 + $0xb8] sm:$0xff]
        %v220 = vld [vmem:[%s195 + $0xc0] sm:$0xff]
        %v221 = vld [vmem:[%s195 + $0xc8] sm:$0xff]
        %v222 = vld [vmem:[%s195 + $0xd0] sm:$0xff]
        %v223 = vld [vmem:[%s195 + $0xd8] sm:$0xff]
        %v224 = vld [vmem:[%s195 + $0xe0] sm:$0xff]
        %v225 = vld [vmem:[%s195 + $0xe8] sm:$0xff]
        %v226 = vld [vmem:[%s195 + $0xf0] sm:$0xff]
        %v227 = vld [vmem:[%s195 + $0xf8] sm:$0xff]
        %v228 = vld [vmem:[%s1] sm:$0xff]
        %v229 = vld [vmem:[%s1 + $0x8] sm:$0xff]
        %v230 = vld [vmem:[%s1 + $0x10] sm:$0xff]
        %v231 = vld [vmem:[%s1 + $0x18] sm:$0xff]
        %vm232 = vcmask 261120
        %v234 = vsel %vm232, %v196, 0
        %v237 = vsel %vm232, %v197, 0
        %v240 = vsel %vm232, %v198, 0
        %v243 = vsel %vm232, %v199, 0
        %v246 = vsel %vm232, %v200, 0
        %v249 = vsel %vm232, %v201, 0
        %v252 = vsel %vm232, %v202, 0
        %v255 = vsel %vm232, %v203, 0
        %v258 = vsel %vm232, %v204, 0
        %v261 = vsel %vm232, %v205, 0
        %v264 = vsel %vm232, %v206, 0
        %v267 = vsel %vm232, %v207, 0
        %v270 = vsel %vm232, %v208, 0
        %v273 = vsel %vm232, %v209, 0
        %v276 = vsel %vm232, %v210, 0
        %v279 = vsel %vm232, %v211, 0
        %v282 = vsel %vm232, %v212, 0
        %v285 = vsel %vm232, %v213, 0
        %v288 = vsel %vm232, %v214, 0
        %v291 = vsel %vm232, %v215, 0
        %v294 = vsel %vm232, %v216, 0
        %v297 = vsel %vm232, %v217, 0
        %v300 = vsel %vm232, %v218, 0
        %v303 = vsel %vm232, %v219, 0
        %v306 = vsel %vm232, %v220, 0
        %v309 = vsel %vm232, %v221, 0
        %v312 = vsel %vm232, %v222, 0
        %v315 = vsel %vm232, %v223, 0
        %v318 = vsel %vm232, %v224, 0
        %v321 = vsel %vm232, %v225, 0
        %v324 = vsel %vm232, %v226, 0
        %v327 = vsel %vm232, %v227, 0
        %329 = vmatprep.subr.mxu0 0.0
        %330 = vmatpush1.msra.mxu0 0.0
        %331 = vmatprep.subr.mxu0 0.0
        %332 = vmatpush1.msra.mxu0 0.0
        %333 = vmatprep.subr.mxu0 0.0
        %334 = vmatpush1.msra.mxu0 0.0
        %335 = vmatprep.subr.mxu0 0.0
        %336 = vmatpush1.msra.mxu0 0.0
        %337 = vmatprep.subr.mxu0 0.0
        %338 = vmatpush1.msra.mxu0 0.0
        %339 = vmatprep.subr.mxu0 0.0
        %340 = vmatpush1.msra.mxu0 0.0
        %341 = vmatprep.subr.mxu0 0.0
        %342 = vmatpush1.msra.mxu0 0.0
        %343 = vmatprep.subr.mxu0 0.0
        %344 = vmatpush1.msra.mxu0 0.0
        %345 = vmatprep.subr.mxu0 0.0
        %346 = vmatpush1.msra.mxu0 0.0
        %347 = vmatprep.subr.mxu0 0.0
        %348 = vmatpush1.msra.mxu0 0.0
        %349 = vmatprep.subr.mxu0 0.0
        %350 = vmatpush1.msra.mxu0 0.0
        %351 = vmatprep.subr.mxu0 0.0
        %352 = vmatpush1.msra.mxu0 0.0
        %353 = vmatprep.subr.mxu0 0.0
        %354 = vmatpush1.msra.mxu0 %v231
        %355 = vmatprep.subr.mxu0 0.0
        %356 = vmatpush1.msra.mxu0 %v230
        %357 = vmatprep.subr.mxu0 0.0
        %358 = vmatpush1.msra.mxu0 %v229
        %359 = vmatprep.subr.mxu0 0.0
        %360 = vmatpush1.msra.mxu0 %v228
        %361 = vmatprep.subr.mxu0 0.0
        %362 = vmatpush2.msra.mxu0 0.0
        %363 = vmatprep.subr.mxu0 0.0
        %364 = vmatpush2.msra.mxu0 0.0
        %365 = vmatprep.subr.mxu0 0.0
        %366 = vmatpush2.msra.mxu0 0.0
        %367 = vmatprep.subr.mxu0 0.0
        %368 = vmatpush2.msra.mxu0 0.0
        %369 = vmatprep.subr.mxu0 0.0
        %370 = vmatpush2.msra.mxu0 0.0
        %371 = vmatprep.subr.mxu0 0.0
        %372 = vmatpush2.msra.mxu0 0.0
        %373 = vmatprep.subr.mxu0 0.0
        %374 = vmatpush2.msra.mxu0 0.0
        %375 = vmatprep.subr.mxu0 0.0
        %376 = vmatpush2.msra.mxu0 0.0
        %377 = vmatprep.subr.mxu0 0.0
        %378 = vmatpush2.msra.mxu0 0.0
        %379 = vmatprep.subr.mxu0 0.0
        %380 = vmatpush2.msra.mxu0 0.0
        %381 = vmatprep.subr.mxu0 0.0
        %382 = vmatpush2.msra.mxu0 0.0
        %383 = vmatprep.subr.mxu0 0.0
        %384 = vmatpush2.msra.mxu0 0.0
        %385 = vmatprep.subr.mxu0 0.0
        %386 = vmatpush2.msra.mxu0 0.0
        %387 = vmatprep.subr.mxu0 0.0
        %388 = vmatpush2.msra.mxu0 0.0
        %389 = vmatprep.subr.mxu0 0.0
        %390 = vmatpush2.msra.mxu0 0.0
        %391 = vmatprep.subr.mxu0 0.0
        %392 = vmatpush2.msra.mxu0 0.0
        %393 = vmatprep.mubr.f32.mxu0 0.0
        %394 = vmatmul.mubr.f32.gmra.mxu0 %v234
        %v395 = vpop.f32.mrf.mxu0
        %v396 = vadd.f32 0.0, %v395
        %v397 = vpop.f32.mrf.mxu0
        %398 = vmatprep.mubr.f32.mxu0 0.0
        %399 = vmatmul.mubr.f32.gmra.mxu0 %v237
        %v400 = vpop.f32.mrf.mxu0
        %v401 = vadd.f32 0.0, %v400
        %v402 = vpop.f32.mrf.mxu0
        %403 = vmatprep.mubr.f32.mxu0 0.0
        %404 = vmatmul.mubr.f32.gmra.mxu0 %v240
        %v405 = vpop.f32.mrf.mxu0
        %v406 = vadd.f32 0.0, %v405
        %v407 = vpop.f32.mrf.mxu0
        %408 = vmatprep.mubr.f32.mxu0 0.0
        %409 = vmatmul.mubr.f32.gmra.mxu0 %v243
        %v410 = vpop.f32.mrf.mxu0
        %v411 = vadd.f32 0.0, %v410
        %v412 = vpop.f32.mrf.mxu0
        %413 = vmatprep.mubr.f32.mxu0 0.0
        %414 = vmatmul.mubr.f32.gmra.mxu0 %v246
        %v415 = vpop.f32.mrf.mxu0
        %v416 = vadd.f32 0.0, %v415
        %v417 = vpop.f32.mrf.mxu0
        %418 = vmatprep.mubr.f32.mxu0 0.0
        %419 = vmatmul.mubr.f32.gmra.mxu0 %v249
        %v420 = vpop.f32.mrf.mxu0
        %v421 = vadd.f32 0.0, %v420
        %v422 = vpop.f32.mrf.mxu0
        %423 = vmatprep.mubr.f32.mxu0 0.0
        %424 = vmatmul.mubr.f32.gmra.mxu0 %v252
        %v425 = vpop.f32.mrf.mxu0
        %v426 = vadd.f32 0.0, %v425
        %v427 = vpop.f32.mrf.mxu0
        %428 = vmatprep.mubr.f32.mxu0 0.0
        %429 = vmatmul.mubr.f32.gmra.mxu0 %v255
        %v430 = vpop.f32.mrf.mxu0
        %v431 = vadd.f32 0.0, %v430
        %v432 = vpop.f32.mrf.mxu0
        %433 = vmatprep.mubr.f32.mxu0 0.0
        %434 = vmatmul.mubr.f32.gmra.mxu0 %v258
        %v435 = vpop.f32.mrf.mxu0
        %v436 = vadd.f32 0.0, %v435
        %v437 = vpop.f32.mrf.mxu0
        %438 = vmatprep.mubr.f32.mxu0 0.0
        %439 = vmatmul.mubr.f32.gmra.mxu0 %v261
        %v440 = vpop.f32.mrf.mxu0
        %v441 = vadd.f32 0.0, %v440
        %v442 = vpop.f32.mrf.mxu0
        %443 = vmatprep.mubr.f32.mxu0 0.0
        %444 = vmatmul.mubr.f32.gmra.mxu0 %v264
        %v445 = vpop.f32.mrf.mxu0
        %v446 = vadd.f32 0.0, %v445
        %v447 = vpop.f32.mrf.mxu0
        %448 = vmatprep.mubr.f32.mxu0 0.0
        %449 = vmatmul.mubr.f32.gmra.mxu0 %v267
        %v450 = vpop.f32.mrf.mxu0
        %v451 = vadd.f32 0.0, %v450
        %v452 = vpop.f32.mrf.mxu0
        %453 = vmatprep.mubr.f32.mxu0 0.0
        %454 = vmatmul.mubr.f32.gmra.mxu0 %v270
        %v455 = vpop.f32.mrf.mxu0
        %v456 = vadd.f32 0.0, %v455
        %v457 = vpop.f32.mrf.mxu0
        %458 = vmatprep.mubr.f32.mxu0 0.0
        %459 = vmatmul.mubr.f32.gmra.mxu0 %v273
        %v460 = vpop.f32.mrf.mxu0
        %v461 = vadd.f32 0.0, %v460
        %v462 = vpop.f32.mrf.mxu0
        %463 = vmatprep.mubr.f32.mxu0 0.0
        %464 = vmatmul.mubr.f32.gmra.mxu0 %v276
        %v465 = vpop.f32.mrf.mxu0
        %v466 = vadd.f32 0.0, %v465
        %v467 = vpop.f32.mrf.mxu0
        %468 = vmatprep.mubr.f32.mxu0 0.0
        %469 = vmatmul.mubr.f32.gmra.mxu0 %v279
        %v470 = vpop.f32.mrf.mxu0
        %v471 = vadd.f32 0.0, %v470
        %v472 = vpop.f32.mrf.mxu0
        %473 = vmatprep.mubr.f32.mxu0 0.0
        %474 = vmatmul.mubr.f32.gmra.mxu0 %v282
        %v475 = vpop.f32.mrf.mxu0
        %v476 = vadd.f32 0.0, %v475
        %v477 = vpop.f32.mrf.mxu0
        %478 = vmatprep.mubr.f32.mxu0 0.0
        %479 = vmatmul.mubr.f32.gmra.mxu0 %v285
        %v480 = vpop.f32.mrf.mxu0
        %v481 = vadd.f32 0.0, %v480
        %v482 = vpop.f32.mrf.mxu0
        %483 = vmatprep.mubr.f32.mxu0 0.0
        %484 = vmatmul.mubr.f32.gmra.mxu0 %v288
        %v485 = vpop.f32.mrf.mxu0
        %v486 = vadd.f32 0.0, %v485
        %v487 = vpop.f32.mrf.mxu0
        %488 = vmatprep.mubr.f32.mxu0 0.0
        %489 = vmatmul.mubr.f32.gmra.mxu0 %v291
        %v490 = vpop.f32.mrf.mxu0
        %v491 = vadd.f32 0.0, %v490
        %v492 = vpop.f32.mrf.mxu0
        %493 = vmatprep.mubr.f32.mxu0 0.0
        %494 = vmatmul.mubr.f32.gmra.mxu0 %v294
        %v495 = vpop.f32.mrf.mxu0
        %v496 = vadd.f32 0.0, %v495
        %v497 = vpop.f32.mrf.mxu0
        %498 = vmatprep.mubr.f32.mxu0 0.0
        %499 = vmatmul.mubr.f32.gmra.mxu0 %v297
        %v500 = vpop.f32.mrf.mxu0
        %v501 = vadd.f32 0.0, %v500
        %v502 = vpop.f32.mrf.mxu0
        %503 = vmatprep.mubr.f32.mxu0 0.0
        %504 = vmatmul.mubr.f32.gmra.mxu0 %v300
        %v505 = vpop.f32.mrf.mxu0
        %v506 = vadd.f32 0.0, %v505
        %v507 = vpop.f32.mrf.mxu0
        %508 = vmatprep.mubr.f32.mxu0 0.0
        %509 = vmatmul.mubr.f32.gmra.mxu0 %v303
        %v510 = vpop.f32.mrf.mxu0
        %v511 = vadd.f32 0.0, %v510
        %v512 = vpop.f32.mrf.mxu0
        %513 = vmatprep.mubr.f32.mxu0 0.0
        %514 = vmatmul.mubr.f32.gmra.mxu0 %v306
        %v515 = vpop.f32.mrf.mxu0
        %v516 = vadd.f32 0.0, %v515
        %v517 = vpop.f32.mrf.mxu0
        %518 = vmatprep.mubr.f32.mxu0 0.0
        %519 = vmatmul.mubr.f32.gmra.mxu0 %v309
        %v520 = vpop.f32.mrf.mxu0
        %v521 = vadd.f32 0.0, %v520
        %v522 = vpop.f32.mrf.mxu0
        %523 = vmatprep.mubr.f32.mxu0 0.0
        %524 = vmatmul.mubr.f32.gmra.mxu0 %v312
        %v525 = vpop.f32.mrf.mxu0
        %v526 = vadd.f32 0.0, %v525
        %v527 = vpop.f32.mrf.mxu0
        %528 = vmatprep.mubr.f32.mxu0 0.0
        %529 = vmatmul.mubr.f32.gmra.mxu0 %v315
        %v530 = vpop.f32.mrf.mxu0
        %v531 = vadd.f32 0.0, %v530
        %v532 = vpop.f32.mrf.mxu0
        %533 = vmatprep.mubr.f32.mxu0 0.0
        %534 = vmatmul.mubr.f32.gmra.mxu0 %v318
        %v535 = vpop.f32.mrf.mxu0
        %v536 = vadd.f32 0.0, %v535
        %v537 = vpop.f32.mrf.mxu0
        %538 = vmatprep.mubr.f32.mxu0 0.0
        %539 = vmatmul.mubr.f32.gmra.mxu0 %v321
        %v540 = vpop.f32.mrf.mxu0
        %v541 = vadd.f32 0.0, %v540
        %v542 = vpop.f32.mrf.mxu0
        %543 = vmatprep.mubr.f32.mxu0 0.0
        %544 = vmatmul.mubr.f32.gmra.mxu0 %v324
        %v545 = vpop.f32.mrf.mxu0
        %v546 = vadd.f32 0.0, %v545
        %v547 = vpop.f32.mrf.mxu0
        %548 = vmatprep.mubr.f32.mxu0 0.0
        %549 = vmatmul.mubr.f32.gmra.mxu0 %v327
        %v550 = vpop.f32.mrf.mxu0
        %v551 = vadd.f32 0.0, %v550
        %v552 = vpop.f32.mrf.mxu0
        %553 = vdwg.mxu0
        %vm586 = vcmask 1040384
        %v587 = vrot.slane %v396, 7
        %v588 = vrot.slane %v401, 7
        %v589 = vsel %vm586, %v587, %v588
        %v590 = vrot.slane %v406, 7
        %v591 = vrot.slane %v411, 7
        %v592 = vsel %vm586, %v590, %v591
        %v593 = vrot.slane %v416, 7
        %v594 = vrot.slane %v421, 7
        %v595 = vsel %vm586, %v593, %v594
        %v596 = vrot.slane %v426, 7
        %v597 = vrot.slane %v431, 7
        %v598 = vsel %vm586, %v596, %v597
        %v599 = vrot.slane %v436, 7
        %v600 = vrot.slane %v441, 7
        %v601 = vsel %vm586, %v599, %v600
        %v602 = vrot.slane %v446, 7
        %v603 = vrot.slane %v451, 7
        %v604 = vsel %vm586, %v602, %v603
        %v605 = vrot.slane %v456, 7
        %v606 = vrot.slane %v461, 7
        %v607 = vsel %vm586, %v605, %v606
        %v608 = vrot.slane %v466, 7
        %v609 = vrot.slane %v471, 7
        %v610 = vsel %vm586, %v608, %v609
        %v611 = vrot.slane %v476, 7
        %v612 = vrot.slane %v481, 7
        %v613 = vsel %vm586, %v611, %v612
        %v614 = vrot.slane %v486, 7
        %v615 = vrot.slane %v491, 7
        %v616 = vsel %vm586, %v614, %v615
        %v617 = vrot.slane %v496, 7
        %v618 = vrot.slane %v501, 7
        %v619 = vsel %vm586, %v617, %v618
        %v620 = vrot.slane %v506, 7
        %v621 = vrot.slane %v511, 7
        %v622 = vsel %vm586, %v620, %v621
        %v623 = vrot.slane %v516, 7
        %v624 = vrot.slane %v521, 7
        %v625 = vsel %vm586, %v623, %v624
        %v626 = vrot.slane %v526, 7
        %v627 = vrot.slane %v531, 7
        %v628 = vsel %vm586, %v626, %v627
        %v629 = vrot.slane %v536, 7
        %v630 = vrot.slane %v541, 7
        %v631 = vsel %vm586, %v629, %v630
        %v632 = vrot.slane %v546, 7
        %v633 = vrot.slane %v551, 7
        %v634 = vsel %vm586, %v632, %v633
        %v667 = vsel %vm586, %v396, %v587
        %v668 = vsel %vm586, %v406, %v590
        %v669 = vsel %vm586, %v416, %v593
        %v670 = vsel %vm586, %v426, %v596
        %v671 = vsel %vm586, %v436, %v599
        %v672 = vsel %vm586, %v446, %v602
        %v673 = vsel %vm586, %v456, %v605
        %v674 = vsel %vm586, %v466, %v608
        %v675 = vsel %vm586, %v476, %v611
        %v676 = vsel %vm586, %v486, %v614
        %v677 = vsel %vm586, %v496, %v617
        %v678 = vsel %vm586, %v506, %v620
        %v679 = vsel %vm586, %v516, %v623
        %v680 = vsel %vm586, %v526, %v626
        %v681 = vsel %vm586, %v536, %v629
        %v682 = vsel %vm586, %v546, %v632
        %vm683 = vcmask 1046528
        %v684 = vrot.slane %v396, 1
        %v685 = vrot.slane %v401, 1
        %v686 = vsel %vm683, %v684, %v685
        %v687 = vrot.slane %v406, 1
        %v688 = vrot.slane %v411, 1
        %v689 = vsel %vm683, %v687, %v688
        %v690 = vrot.slane %v416, 1
        %v691 = vrot.slane %v421, 1
        %v692 = vsel %vm683, %v690, %v691
        %v693 = vrot.slane %v426, 1
        %v694 = vrot.slane %v431, 1
        %v695 = vsel %vm683, %v693, %v694
        %v696 = vrot.slane %v436, 1
        %v697 = vrot.slane %v441, 1
        %v698 = vsel %vm683, %v696, %v697
        %v699 = vrot.slane %v446, 1
        %v700 = vrot.slane %v451, 1
        %v701 = vsel %vm683, %v699, %v700
        %v702 = vrot.slane %v456, 1
        %v703 = vrot.slane %v461, 1
        %v704 = vsel %vm683, %v702, %v703
        %v705 = vrot.slane %v466, 1
        %v706 = vrot.slane %v471, 1
        %v707 = vsel %vm683, %v705, %v706
        %v708 = vrot.slane %v476, 1
        %v709 = vrot.slane %v481, 1
        %v710 = vsel %vm683, %v708, %v709
        %v711 = vrot.slane %v486, 1
        %v712 = vrot.slane %v491, 1
        %v713 = vsel %vm683, %v711, %v712
        %v714 = vrot.slane %v496, 1
        %v715 = vrot.slane %v501, 1
        %v716 = vsel %vm683, %v714, %v715
        %v717 = vrot.slane %v506, 1
        %v718 = vrot.slane %v511, 1
        %v719 = vsel %vm683, %v717, %v718
        %v720 = vrot.slane %v516, 1
        %v721 = vrot.slane %v521, 1
        %v722 = vsel %vm683, %v720, %v721
        %v723 = vrot.slane %v526, 1
        %v724 = vrot.slane %v531, 1
        %v725 = vsel %vm683, %v723, %v724
        %v726 = vrot.slane %v536, 1
        %v727 = vrot.slane %v541, 1
        %v728 = vsel %vm683, %v726, %v727
        %v729 = vrot.slane %v546, 1
        %v730 = vrot.slane %v551, 1
        %v731 = vsel %vm683, %v729, %v730
        %v764 = vsel %vm683, %v685, %v401
        %v765 = vsel %vm683, %v688, %v411
        %v766 = vsel %vm683, %v691, %v421
        %v767 = vsel %vm683, %v694, %v431
        %v768 = vsel %vm683, %v697, %v441
        %v769 = vsel %vm683, %v700, %v451
        %v770 = vsel %vm683, %v703, %v461
        %v771 = vsel %vm683, %v706, %v471
        %v772 = vsel %vm683, %v709, %v481
        %v773 = vsel %vm683, %v712, %v491
        %v774 = vsel %vm683, %v715, %v501
        %v775 = vsel %vm683, %v718, %v511
        %v776 = vsel %vm683, %v721, %v521
        %v777 = vsel %vm683, %v724, %v531
        %v778 = vsel %vm683, %v727, %v541
        %v779 = vsel %vm683, %v730, %v551
        %v780 = vmul.f32 %v667, 0.25
        %v781 = vmul.f32 %v589, 0.25
        %v782 = vmul.f32 %v668, 0.25
        %v783 = vmul.f32 %v592, 0.25
        %v784 = vmul.f32 %v669, 0.25
        %v785 = vmul.f32 %v595, 0.25
        %v786 = vmul.f32 %v670, 0.25
        %v787 = vmul.f32 %v598, 0.25
        %v788 = vmul.f32 %v671, 0.25
        %v789 = vmul.f32 %v601, 0.25
        %v790 = vmul.f32 %v672, 0.25
        %v791 = vmul.f32 %v604, 0.25
        %v792 = vmul.f32 %v673, 0.25
        %v793 = vmul.f32 %v607, 0.25
        %v794 = vmul.f32 %v674, 0.25
        %v795 = vmul.f32 %v610, 0.25
        %v796 = vmul.f32 %v675, 0.25
        %v797 = vmul.f32 %v613, 0.25
        %v798 = vmul.f32 %v676, 0.25
        %v799 = vmul.f32 %v616, 0.25
        %v800 = vmul.f32 %v677, 0.25
        %v801 = vmul.f32 %v619, 0.25
        %v802 = vmul.f32 %v678, 0.25
        %v803 = vmul.f32 %v622, 0.25
        %v804 = vmul.f32 %v679, 0.25
        %v805 = vmul.f32 %v625, 0.25
        %v806 = vmul.f32 %v680, 0.25
        %v807 = vmul.f32 %v628, 0.25
        %v808 = vmul.f32 %v681, 0.25
        %v809 = vmul.f32 %v631, 0.25
        %v810 = vmul.f32 %v682, 0.25
        %v811 = vmul.f32 %v634, 0.25
        %v812 = vmul.f32 %v396, 0.75
        %v813 = vmul.f32 %v401, 0.75
        %v814 = vmul.f32 %v406, 0.75
        %v815 = vmul.f32 %v411, 0.75
        %v816 = vmul.f32 %v416, 0.75
        %v817 = vmul.f32 %v421, 0.75
        %v818 = vmul.f32 %v426, 0.75
        %v819 = vmul.f32 %v431, 0.75
        %v820 = vmul.f32 %v436, 0.75
        %v821 = vmul.f32 %v441, 0.75
        %v822 = vmul.f32 %v446, 0.75
        %v823 = vmul.f32 %v451, 0.75
        %v824 = vmul.f32 %v456, 0.75
        %v825 = vmul.f32 %v461, 0.75
        %v826 = vmul.f32 %v466, 0.75
        %v827 = vmul.f32 %v471, 0.75
        %v828 = vmul.f32 %v476, 0.75
        %v829 = vmul.f32 %v481, 0.75
        %v830 = vmul.f32 %v486, 0.75
        %v831 = vmul.f32 %v491, 0.75
        %v832 = vmul.f32 %v496, 0.75
        %v833 = vmul.f32 %v501, 0.75
        %v834 = vmul.f32 %v506, 0.75
        %v835 = vmul.f32 %v511, 0.75
        %v836 = vmul.f32 %v516, 0.75
        %v837 = vmul.f32 %v521, 0.75
        %v838 = vmul.f32 %v526, 0.75
        %v839 = vmul.f32 %v531, 0.75
        %v840 = vmul.f32 %v536, 0.75
        %v841 = vmul.f32 %v541, 0.75
        %v842 = vmul.f32 %v546, 0.75
        %v843 = vmul.f32 %v551, 0.75
        %v844 = vadd.f32 %v780, %v812
        %v845 = vadd.f32 %v781, %v813
        %v846 = vadd.f32 %v782, %v814
        %v847 = vadd.f32 %v783, %v815
        %v848 = vadd.f32 %v784, %v816
        %v849 = vadd.f32 %v785, %v817
        %v850 = vadd.f32 %v786, %v818
        %v851 = vadd.f32 %v787, %v819
        %v852 = vadd.f32 %v788, %v820
        %v853 = vadd.f32 %v789, %v821
        %v854 = vadd.f32 %v790, %v822
        %v855 = vadd.f32 %v791, %v823
        %v856 = vadd.f32 %v792, %v824
        %v857 = vadd.f32 %v793, %v825
        %v858 = vadd.f32 %v794, %v826
        %v859 = vadd.f32 %v795, %v827
        %v860 = vadd.f32 %v796, %v828
        %v861 = vadd.f32 %v797, %v829
        %v862 = vadd.f32 %v798, %v830
        %v863 = vadd.f32 %v799, %v831
        %v864 = vadd.f32 %v800, %v832
        %v865 = vadd.f32 %v801, %v833
        %v866 = vadd.f32 %v802, %v834
        %v867 = vadd.f32 %v803, %v835
        %v868 = vadd.f32 %v804, %v836
        %v869 = vadd.f32 %v805, %v837
        %v870 = vadd.f32 %v806, %v838
        %v871 = vadd.f32 %v807, %v839
        %v872 = vadd.f32 %v808, %v840
        %v873 = vadd.f32 %v809, %v841
        %v874 = vadd.f32 %v810, %v842
        %v875 = vadd.f32 %v811, %v843
        %v876 = vmul.f32 %v686, 0.25
        %v877 = vmul.f32 %v764, 0.25
        %v878 = vmul.f32 %v689, 0.25
        %v879 = vmul.f32 %v765, 0.25
        %v880 = vmul.f32 %v692, 0.25
        %v881 = vmul.f32 %v766, 0.25
        %v882 = vmul.f32 %v695, 0.25
        %v883 = vmul.f32 %v767, 0.25
        %v884 = vmul.f32 %v698, 0.25
        %v885 = vmul.f32 %v768, 0.25
        %v886 = vmul.f32 %v701, 0.25
        %v887 = vmul.f32 %v769, 0.25
        %v888 = vmul.f32 %v704, 0.25
        %v889 = vmul.f32 %v770, 0.25
        %v890 = vmul.f32 %v707, 0.25
        %v891 = vmul.f32 %v771, 0.25
        %v892 = vmul.f32 %v710, 0.25
        %v893 = vmul.f32 %v772, 0.25
        %v894 = vmul.f32 %v713, 0.25
        %v895 = vmul.f32 %v773, 0.25
        %v896 = vmul.f32 %v716, 0.25
        %v897 = vmul.f32 %v774, 0.25
        %v898 = vmul.f32 %v719, 0.25
        %v899 = vmul.f32 %v775, 0.25
        %v900 = vmul.f32 %v722, 0.25
        %v901 = vmul.f32 %v776, 0.25
        %v902 = vmul.f32 %v725, 0.25
        %v903 = vmul.f32 %v777, 0.25
        %v904 = vmul.f32 %v728, 0.25
        %v905 = vmul.f32 %v778, 0.25
        %v906 = vmul.f32 %v731, 0.25
        %v907 = vmul.f32 %v779, 0.25
        %v908 = vadd.f32 %v812, %v876
        %v909 = vadd.f32 %v813, %v877
        %v910 = vadd.f32 %v814, %v878
        %v911 = vadd.f32 %v815, %v879
        %v912 = vadd.f32 %v816, %v880
        %v913 = vadd.f32 %v817, %v881
        %v914 = vadd.f32 %v818, %v882
        %v915 = vadd.f32 %v819, %v883
        %v916 = vadd.f32 %v820, %v884
        %v917 = vadd.f32 %v821, %v885
        %v918 = vadd.f32 %v822, %v886
        %v919 = vadd.f32 %v823, %v887
        %v920 = vadd.f32 %v824, %v888
        %v921 = vadd.f32 %v825, %v889
        %v922 = vadd.f32 %v826, %v890
        %v923 = vadd.f32 %v827, %v891
        %v924 = vadd.f32 %v828, %v892
        %v925 = vadd.f32 %v829, %v893
        %v926 = vadd.f32 %v830, %v894
        %v927 = vadd.f32 %v831, %v895
        %v928 = vadd.f32 %v832, %v896
        %v929 = vadd.f32 %v833, %v897
        %v930 = vadd.f32 %v834, %v898
        %v931 = vadd.f32 %v835, %v899
        %v932 = vadd.f32 %v836, %v900
        %v933 = vadd.f32 %v837, %v901
        %v934 = vadd.f32 %v838, %v902
        %v935 = vadd.f32 %v839, %v903
        %v936 = vadd.f32 %v840, %v904
        %v937 = vadd.f32 %v841, %v905
        %v938 = vadd.f32 %v842, %v906
        %v939 = vadd.f32 %v843, %v907
        %972 = vrot.lane.b32.xlu0 %v908, 16
        %v973 = vpop.permute.xlu0 %972
        %974 = vrot.lane.b32.xlu0 %v909, 16
        %v975 = vpop.permute.xlu0 %974
        %976 = vrot.lane.b32.xlu0 %v910, 16
        %v977 = vpop.permute.xlu0 %976
        %978 = vrot.lane.b32.xlu0 %v911, 16
        %v979 = vpop.permute.xlu0 %978
        %980 = vrot.lane.b32.xlu0 %v912, 16
        %v981 = vpop.permute.xlu0 %980
        %982 = vrot.lane.b32.xlu0 %v913, 16
        %v983 = vpop.permute.xlu0 %982
        %984 = vrot.lane.b32.xlu0 %v914, 16
        %v985 = vpop.permute.xlu0 %984
        %986 = vrot.lane.b32.xlu0 %v915, 16
        %v987 = vpop.permute.xlu0 %986
        %988 = vrot.lane.b32.xlu0 %v916, 16
        %v989 = vpop.permute.xlu0 %988
        %990 = vrot.lane.b32.xlu0 %v917, 16
        %v991 = vpop.permute.xlu0 %990
        %992 = vrot.lane.b32.xlu0 %v918, 16
        %v993 = vpop.permute.xlu0 %992
        %994 = vrot.lane.b32.xlu0 %v919, 16
        %v995 = vpop.permute.xlu0 %994
        %996 = vrot.lane.b32.xlu0 %v920, 16
        %v997 = vpop.permute.xlu0 %996
        %998 = vrot.lane.b32.xlu0 %v921, 16
        %v999 = vpop.permute.xlu0 %998
        %1000 = vrot.lane.b32.xlu0 %v922, 16
        %v1001 = vpop.permute.xlu0 %1000
        %1002 = vrot.lane.b32.xlu0 %v923, 16
        %v1003 = vpop.permute.xlu0 %1002
        %1004 = vrot.lane.b32.xlu0 %v924, 16
        %v1005 = vpop.permute.xlu0 %1004
        %1006 = vrot.lane.b32.xlu0 %v925, 16
        %v1007 = vpop.permute.xlu0 %1006
        %1008 = vrot.lane.b32.xlu0 %v926, 16
        %v1009 = vpop.permute.xlu0 %1008
        %1010 = vrot.lane.b32.xlu0 %v927, 16
        %v1011 = vpop.permute.xlu0 %1010
        %1012 = vrot.lane.b32.xlu0 %v928, 16
        %v1013 = vpop.permute.xlu0 %1012
        %1014 = vrot.lane.b32.xlu0 %v929, 16
        %v1015 = vpop.permute.xlu0 %1014
        %1016 = vrot.lane.b32.xlu0 %v930, 16
        %v1017 = vpop.permute.xlu0 %1016
        %1018 = vrot.lane.b32.xlu0 %v931, 16
        %v1019 = vpop.permute.xlu0 %1018
        %1020 = vrot.lane.b32.xlu0 %v932, 16
        %v1021 = vpop.permute.xlu0 %1020
        %1022 = vrot.lane.b32.xlu0 %v933, 16
        %v1023 = vpop.permute.xlu0 %1022
        %1024 = vrot.lane.b32.xlu0 %v934, 16
        %v1025 = vpop.permute.xlu0 %1024
        %1026 = vrot.lane.b32.xlu0 %v935, 16
        %v1027 = vpop.permute.xlu0 %1026
        %1028 = vrot.lane.b32.xlu0 %v936, 16
        %v1029 = vpop.permute.xlu0 %1028
        %1030 = vrot.lane.b32.xlu0 %v937, 16
        %v1031 = vpop.permute.xlu0 %1030
        %1032 = vrot.lane.b32.xlu0 %v938, 16
        %v1033 = vpop.permute.xlu0 %1032
        %1034 = vrot.lane.b32.xlu0 %v939, 16
        %v1035 = vpop.permute.xlu0 %1034
        %vm1068 = vcmask 130048
        %v1069 = vsel %vm1068, %v844, %v973
        %v1070 = vsel %vm1068, %v845, %v975
        %v1071 = vsel %vm1068, %v846, %v977
        %v1072 = vsel %vm1068, %v847, %v979
        %v1073 = vsel %vm1068, %v848, %v981
        %v1074 = vsel %vm1068, %v849, %v983
        %v1075 = vsel %vm1068, %v850, %v985
        %v1076 = vsel %vm1068, %v851, %v987
        %v1077 = vsel %vm1068, %v852, %v989
        %v1078 = vsel %vm1068, %v853, %v991
        %v1079 = vsel %vm1068, %v854, %v993
        %v1080 = vsel %vm1068, %v855, %v995
        %v1081 = vsel %vm1068, %v856, %v997
        %v1082 = vsel %vm1068, %v857, %v999
        %v1083 = vsel %vm1068, %v858, %v1001
        %v1084 = vsel %vm1068, %v859, %v1003
        %v1085 = vsel %vm1068, %v860, %v1005
        %v1086 = vsel %vm1068, %v861, %v1007
        %v1087 = vsel %vm1068, %v862, %v1009
        %v1088 = vsel %vm1068, %v863, %v1011
        %v1089 = vsel %vm1068, %v864, %v1013
        %v1090 = vsel %vm1068, %v865, %v1015
        %v1091 = vsel %vm1068, %v866, %v1017
        %v1092 = vsel %vm1068, %v867, %v1019
        %v1093 = vsel %vm1068, %v868, %v1021
        %v1094 = vsel %vm1068, %v869, %v1023
        %v1095 = vsel %vm1068, %v870, %v1025
        %v1096 = vsel %vm1068, %v871, %v1027
        %v1097 = vsel %vm1068, %v872, %v1029
        %v1098 = vsel %vm1068, %v873, %v1031
        %v1099 = vsel %vm1068, %v874, %v1033
        %v1100 = vsel %vm1068, %v875, %v1035
        %v1101 = vmul.f32 %v1069, 0.25
        %v1102 = vmul.f32 %v1070, 0.25
        %v1103 = vmul.f32 %v1071, 0.25
        %v1104 = vmul.f32 %v1072, 0.25
        %v1105 = vmul.f32 %v1073, 0.25
        %v1106 = vmul.f32 %v1074, 0.25
        %v1107 = vmul.f32 %v1075, 0.25
        %v1108 = vmul.f32 %v1076, 0.25
        %v1109 = vmul.f32 %v1077, 0.25
        %v1110 = vmul.f32 %v1078, 0.25
        %v1111 = vmul.f32 %v1079, 0.25
        %v1112 = vmul.f32 %v1080, 0.25
        %v1113 = vmul.f32 %v1081, 0.25
        %v1114 = vmul.f32 %v1082, 0.25
        %v1115 = vmul.f32 %v1083, 0.25
        %v1116 = vmul.f32 %v1084, 0.25
        %v1117 = vmul.f32 %v1085, 0.25
        %v1118 = vmul.f32 %v1086, 0.25
        %v1119 = vmul.f32 %v1087, 0.25
        %v1120 = vmul.f32 %v1088, 0.25
        %v1121 = vmul.f32 %v1089, 0.25
        %v1122 = vmul.f32 %v1090, 0.25
        %v1123 = vmul.f32 %v1091, 0.25
        %v1124 = vmul.f32 %v1092, 0.25
        %v1125 = vmul.f32 %v1093, 0.25
        %v1126 = vmul.f32 %v1094, 0.25
        %v1127 = vmul.f32 %v1095, 0.25
        %v1128 = vmul.f32 %v1096, 0.25
        %v1129 = vmul.f32 %v1097, 0.25
        %v1130 = vmul.f32 %v1098, 0.25
        %v1131 = vmul.f32 %v1069, 0.75
        %v1132 = vmul.f32 %v1070, 0.75
        %v1133 = vmul.f32 %v1071, 0.75
        %v1134 = vmul.f32 %v1072, 0.75
        %v1135 = vmul.f32 %v1073, 0.75
        %v1136 = vmul.f32 %v1074, 0.75
        %v1137 = vmul.f32 %v1075, 0.75
        %v1138 = vmul.f32 %v1076, 0.75
        %v1139 = vmul.f32 %v1077, 0.75
        %v1140 = vmul.f32 %v1078, 0.75
        %v1141 = vmul.f32 %v1079, 0.75
        %v1142 = vmul.f32 %v1080, 0.75
        %v1143 = vmul.f32 %v1081, 0.75
        %v1144 = vmul.f32 %v1082, 0.75
        %v1145 = vmul.f32 %v1083, 0.75
        %v1146 = vmul.f32 %v1084, 0.75
        %v1147 = vmul.f32 %v1085, 0.75
        %v1148 = vmul.f32 %v1086, 0.75
        %v1149 = vmul.f32 %v1087, 0.75
        %v1150 = vmul.f32 %v1088, 0.75
        %v1151 = vmul.f32 %v1089, 0.75
        %v1152 = vmul.f32 %v1090, 0.75
        %v1153 = vmul.f32 %v1091, 0.75
        %v1154 = vmul.f32 %v1092, 0.75
        %v1155 = vmul.f32 %v1093, 0.75
        %v1156 = vmul.f32 %v1094, 0.75
        %v1157 = vmul.f32 %v1095, 0.75
        %v1158 = vmul.f32 %v1096, 0.75
        %v1159 = vmul.f32 %v1097, 0.75
        %v1160 = vmul.f32 %v1098, 0.75
        %v1161 = vmul.f32 %v1099, 0.75
        %v1162 = vmul.f32 %v1100, 0.75
        %v1163 = vadd.f32 %v1101, %v1131
        %v1164 = vadd.f32 %v1102, %v1132
        %v1165 = vadd.f32 %v1101, %v1133
        %v1166 = vadd.f32 %v1102, %v1134
        %v1167 = vadd.f32 %v1103, %v1135
        %v1168 = vadd.f32 %v1104, %v1136
        %v1169 = vadd.f32 %v1105, %v1137
        %v1170 = vadd.f32 %v1106, %v1138
        %v1171 = vadd.f32 %v1107, %v1139
        %v1172 = vadd.f32 %v1108, %v1140
        %v1173 = vadd.f32 %v1109, %v1141
        %v1174 = vadd.f32 %v1110, %v1142
        %v1175 = vadd.f32 %v1111, %v1143
        %v1176 = vadd.f32 %v1112, %v1144
        %v1177 = vadd.f32 %v1113, %v1145
        %v1178 = vadd.f32 %v1114, %v1146
        %v1179 = vadd.f32 %v1115, %v1147
        %v1180 = vadd.f32 %v1116, %v1148
        %v1181 = vadd.f32 %v1117, %v1149
        %v1182 = vadd.f32 %v1118, %v1150
        %v1183 = vadd.f32 %v1119, %v1151
        %v1184 = vadd.f32 %v1120, %v1152
        %v1185 = vadd.f32 %v1121, %v1153
        %v1186 = vadd.f32 %v1122, %v1154
        %v1187 = vadd.f32 %v1123, %v1155
        %v1188 = vadd.f32 %v1124, %v1156
        %v1189 = vadd.f32 %v1125, %v1157
        %v1190 = vadd.f32 %v1126, %v1158
        %v1191 = vadd.f32 %v1127, %v1159
        %v1192 = vadd.f32 %v1128, %v1160
        %v1193 = vadd.f32 %v1129, %v1161
        %v1194 = vadd.f32 %v1130, %v1162
        %v1195 = vmul.f32 %v1099, 0.25
        %v1196 = vmul.f32 %v1100, 0.25
        %v1197 = vadd.f32 %v1131, %v1103
        %v1198 = vadd.f32 %v1132, %v1104
        %v1199 = vadd.f32 %v1133, %v1105
        %v1200 = vadd.f32 %v1134, %v1106
        %v1201 = vadd.f32 %v1135, %v1107
        %v1202 = vadd.f32 %v1136, %v1108
        %v1203 = vadd.f32 %v1137, %v1109
        %v1204 = vadd.f32 %v1138, %v1110
        %v1205 = vadd.f32 %v1139, %v1111
        %v1206 = vadd.f32 %v1140, %v1112
        %v1207 = vadd.f32 %v1141, %v1113
        %v1208 = vadd.f32 %v1142, %v1114
        %v1209 = vadd.f32 %v1143, %v1115
        %v1210 = vadd.f32 %v1144, %v1116
        %v1211 = vadd.f32 %v1145, %v1117
        %v1212 = vadd.f32 %v1146, %v1118
        %v1213 = vadd.f32 %v1147, %v1119
        %v1214 = vadd.f32 %v1148, %v1120
        %v1215 = vadd.f32 %v1149, %v1121
        %v1216 = vadd.f32 %v1150, %v1122
        %v1217 = vadd.f32 %v1151, %v1123
        %v1218 = vadd.f32 %v1152, %v1124
        %v1219 = vadd.f32 %v1153, %v1125
        %v1220 = vadd.f32 %v1154, %v1126
        %v1221 = vadd.f32 %v1155, %v1127
        %v1222 = vadd.f32 %v1156, %v1128
        %v1223 = vadd.f32 %v1157, %v1129
        %v1224 = vadd.f32 %v1158, %v1130
        %v1225 = vadd.f32 %v1159, %v1195
        %v1226 = vadd.f32 %v1160, %v1196
        %v1227 = vadd.f32 %v1161, %v1195
        %v1228 = vadd.f32 %v1162, %v1196
        %v1229 = vld [vmem:[%s2] sm:$0x1]
        %v1230 = vld [vmem:[%s3] sm:$0x1]
        %v1231 = vsel %vm1068, %v1163, 0.0
        %1232 = vadd.xlane.f32.xlu0 %v1231
        %v1233 = vpop.xlane.xlu0 %1232
        %v1234 = vsel %vm1068, %v1164, 0.0
        %1235 = vadd.xlane.f32.xlu0 %v1234
        %v1236 = vpop.xlane.xlu0 %1235
        %v1237 = vsel %vm1068, %v1197, 0.0
        %1238 = vadd.xlane.f32.xlu0 %v1237
        %v1239 = vpop.xlane.xlu0 %1238
        %v1240 = vsel %vm1068, %v1198, 0.0
        %1241 = vadd.xlane.f32.xlu0 %v1240
        %v1242 = vpop.xlane.xlu0 %1241
        %v1243 = vsel %vm1068, %v1165, 0.0
        %1244 = vadd.xlane.f32.xlu0 %v1243
        %v1245 = vpop.xlane.xlu0 %1244
        %v1246 = vsel %vm1068, %v1166, 0.0
        %1247 = vadd.xlane.f32.xlu0 %v1246
        %v1248 = vpop.xlane.xlu0 %1247
        %v1249 = vsel %vm1068, %v1199, 0.0
        %1250 = vadd.xlane.f32.xlu0 %v1249
        %v1251 = vpop.xlane.xlu0 %1250
        %v1252 = vsel %vm1068, %v1200, 0.0
        %1253 = vadd.xlane.f32.xlu0 %v1252
        %v1254 = vpop.xlane.xlu0 %1253
        %v1255 = vsel %vm1068, %v1167, 0.0
        %1256 = vadd.xlane.f32.xlu0 %v1255
        %v1257 = vpop.xlane.xlu0 %1256
        %v1258 = vsel %vm1068, %v1168, 0.0
        %1259 = vadd.xlane.f32.xlu0 %v1258
        %v1260 = vpop.xlane.xlu0 %1259
        %v1261 = vsel %vm1068, %v1201, 0.0
        %1262 = vadd.xlane.f32.xlu0 %v1261
        %v1263 = vpop.xlane.xlu0 %1262
        %v1264 = vsel %vm1068, %v1202, 0.0
        %1265 = vadd.xlane.f32.xlu0 %v1264
        %v1266 = vpop.xlane.xlu0 %1265
        %v1267 = vsel %vm1068, %v1169, 0.0
        %1268 = vadd.xlane.f32.xlu0 %v1267
        %v1269 = vpop.xlane.xlu0 %1268
        %v1270 = vsel %vm1068, %v1170, 0.0
        %1271 = vadd.xlane.f32.xlu0 %v1270
        %v1272 = vpop.xlane.xlu0 %1271
        %v1273 = vsel %vm1068, %v1203, 0.0
        %1274 = vadd.xlane.f32.xlu0 %v1273
        %v1275 = vpop.xlane.xlu0 %1274
        %v1276 = vsel %vm1068, %v1204, 0.0
        %1277 = vadd.xlane.f32.xlu0 %v1276
        %v1278 = vpop.xlane.xlu0 %1277
        %v1279 = vsel %vm1068, %v1171, 0.0
        %1280 = vadd.xlane.f32.xlu0 %v1279
        %v1281 = vpop.xlane.xlu0 %1280
        %v1282 = vsel %vm1068, %v1172, 0.0
        %1283 = vadd.xlane.f32.xlu0 %v1282
        %v1284 = vpop.xlane.xlu0 %1283
        %v1285 = vsel %vm1068, %v1205, 0.0
        %1286 = vadd.xlane.f32.xlu0 %v1285
        %v1287 = vpop.xlane.xlu0 %1286
        %v1288 = vsel %vm1068, %v1206, 0.0
        %1289 = vadd.xlane.f32.xlu0 %v1288
        %v1290 = vpop.xlane.xlu0 %1289
        %v1291 = vsel %vm1068, %v1173, 0.0
        %1292 = vadd.xlane.f32.xlu0 %v1291
        %v1293 = vpop.xlane.xlu0 %1292
        %v1294 = vsel %vm1068, %v1174, 0.0
        %1295 = vadd.xlane.f32.xlu0 %v1294
        %v1296 = vpop.xlane.xlu0 %1295
        %v1297 = vsel %vm1068, %v1207, 0.0
        %1298 = vadd.xlane.f32.xlu0 %v1297
        %v1299 = vpop.xlane.xlu0 %1298
        %v1300 = vsel %vm1068, %v1208, 0.0
        %1301 = vadd.xlane.f32.xlu0 %v1300
        %v1302 = vpop.xlane.xlu0 %1301
        %v1303 = vsel %vm1068, %v1175, 0.0
        %1304 = vadd.xlane.f32.xlu0 %v1303
        %v1305 = vpop.xlane.xlu0 %1304
        %v1306 = vsel %vm1068, %v1176, 0.0
        %1307 = vadd.xlane.f32.xlu0 %v1306
        %v1308 = vpop.xlane.xlu0 %1307
        %v1309 = vsel %vm1068, %v1209, 0.0
        %1310 = vadd.xlane.f32.xlu0 %v1309
        %v1311 = vpop.xlane.xlu0 %1310
        %v1312 = vsel %vm1068, %v1210, 0.0
        %1313 = vadd.xlane.f32.xlu0 %v1312
        %v1314 = vpop.xlane.xlu0 %1313
        %v1315 = vsel %vm1068, %v1177, 0.0
        %1316 = vadd.xlane.f32.xlu0 %v1315
        %v1317 = vpop.xlane.xlu0 %1316
        %v1318 = vsel %vm1068, %v1178, 0.0
        %1319 = vadd.xlane.f32.xlu0 %v1318
        %v1320 = vpop.xlane.xlu0 %1319
        %v1321 = vsel %vm1068, %v1211, 0.0
        %1322 = vadd.xlane.f32.xlu0 %v1321
        %v1323 = vpop.xlane.xlu0 %1322
        %v1324 = vsel %vm1068, %v1212, 0.0
        %1325 = vadd.xlane.f32.xlu0 %v1324
        %v1326 = vpop.xlane.xlu0 %1325
        %v1327 = vsel %vm1068, %v1179, 0.0
        %1328 = vadd.xlane.f32.xlu0 %v1327
        %v1329 = vpop.xlane.xlu0 %1328
        %v1330 = vsel %vm1068, %v1180, 0.0
        %1331 = vadd.xlane.f32.xlu0 %v1330
        %v1332 = vpop.xlane.xlu0 %1331
        %v1333 = vsel %vm1068, %v1213, 0.0
        %1334 = vadd.xlane.f32.xlu0 %v1333
        %v1335 = vpop.xlane.xlu0 %1334
        %v1336 = vsel %vm1068, %v1214, 0.0
        %1337 = vadd.xlane.f32.xlu0 %v1336
        %v1338 = vpop.xlane.xlu0 %1337
        %v1339 = vsel %vm1068, %v1181, 0.0
        %1340 = vadd.xlane.f32.xlu0 %v1339
        %v1341 = vpop.xlane.xlu0 %1340
        %v1342 = vsel %vm1068, %v1182, 0.0
        %1343 = vadd.xlane.f32.xlu0 %v1342
        %v1344 = vpop.xlane.xlu0 %1343
        %v1345 = vsel %vm1068, %v1215, 0.0
        %1346 = vadd.xlane.f32.xlu0 %v1345
        %v1347 = vpop.xlane.xlu0 %1346
        %v1348 = vsel %vm1068, %v1216, 0.0
        %1349 = vadd.xlane.f32.xlu0 %v1348
        %v1350 = vpop.xlane.xlu0 %1349
        %v1351 = vsel %vm1068, %v1183, 0.0
        %1352 = vadd.xlane.f32.xlu0 %v1351
        %v1353 = vpop.xlane.xlu0 %1352
        %v1354 = vsel %vm1068, %v1184, 0.0
        %1355 = vadd.xlane.f32.xlu0 %v1354
        %v1356 = vpop.xlane.xlu0 %1355
        %v1357 = vsel %vm1068, %v1217, 0.0
        %1358 = vadd.xlane.f32.xlu0 %v1357
        %v1359 = vpop.xlane.xlu0 %1358
        %v1360 = vsel %vm1068, %v1218, 0.0
        %1361 = vadd.xlane.f32.xlu0 %v1360
        %v1362 = vpop.xlane.xlu0 %1361
        %v1363 = vsel %vm1068, %v1185, 0.0
        %1364 = vadd.xlane.f32.xlu0 %v1363
        %v1365 = vpop.xlane.xlu0 %1364
        %v1366 = vsel %vm1068, %v1186, 0.0
        %1367 = vadd.xlane.f32.xlu0 %v1366
        %v1368 = vpop.xlane.xlu0 %1367
        %v1369 = vsel %vm1068, %v1219, 0.0
        %1370 = vadd.xlane.f32.xlu0 %v1369
        %v1371 = vpop.xlane.xlu0 %1370
        %v1372 = vsel %vm1068, %v1220, 0.0
        %1373 = vadd.xlane.f32.xlu0 %v1372
        %v1374 = vpop.xlane.xlu0 %1373
        %v1375 = vsel %vm1068, %v1187, 0.0
        %1376 = vadd.xlane.f32.xlu0 %v1375
        %v1377 = vpop.xlane.xlu0 %1376
        %v1378 = vsel %vm1068, %v1188, 0.0
        %1379 = vadd.xlane.f32.xlu0 %v1378
        %v1380 = vpop.xlane.xlu0 %1379
        %v1381 = vsel %vm1068, %v1221, 0.0
        %1382 = vadd.xlane.f32.xlu0 %v1381
        %v1383 = vpop.xlane.xlu0 %1382
        %v1384 = vsel %vm1068, %v1222, 0.0
        %1385 = vadd.xlane.f32.xlu0 %v1384
        %v1386 = vpop.xlane.xlu0 %1385
        %v1387 = vsel %vm1068, %v1189, 0.0
        %1388 = vadd.xlane.f32.xlu0 %v1387
        %v1389 = vpop.xlane.xlu0 %1388
        %v1390 = vsel %vm1068, %v1190, 0.0
        %1391 = vadd.xlane.f32.xlu0 %v1390
        %v1392 = vpop.xlane.xlu0 %1391
        %v1393 = vsel %vm1068, %v1223, 0.0
        %1394 = vadd.xlane.f32.xlu0 %v1393
        %v1395 = vpop.xlane.xlu0 %1394
        %v1396 = vsel %vm1068, %v1224, 0.0
        %1397 = vadd.xlane.f32.xlu0 %v1396
        %v1398 = vpop.xlane.xlu0 %1397
        %v1399 = vsel %vm1068, %v1191, 0.0
        %1400 = vadd.xlane.f32.xlu0 %v1399
        %v1401 = vpop.xlane.xlu0 %1400
        %v1402 = vsel %vm1068, %v1192, 0.0
        %1403 = vadd.xlane.f32.xlu0 %v1402
        %v1404 = vpop.xlane.xlu0 %1403
        %v1405 = vsel %vm1068, %v1225, 0.0
        %1406 = vadd.xlane.f32.xlu0 %v1405
        %v1407 = vpop.xlane.xlu0 %1406
        %v1408 = vsel %vm1068, %v1226, 0.0
        %1409 = vadd.xlane.f32.xlu0 %v1408
        %v1410 = vpop.xlane.xlu0 %1409
        %v1411 = vsel %vm1068, %v1193, 0.0
        %1412 = vadd.xlane.f32.xlu0 %v1411
        %v1413 = vpop.xlane.xlu0 %1412
        %v1414 = vsel %vm1068, %v1194, 0.0
        %1415 = vadd.xlane.f32.xlu0 %v1414
        %v1416 = vpop.xlane.xlu0 %1415
        %v1417 = vsel %vm1068, %v1227, 0.0
        %1418 = vadd.xlane.f32.xlu0 %v1417
        %v1419 = vpop.xlane.xlu0 %1418
        %v1420 = vsel %vm1068, %v1228, 0.0
        %1421 = vadd.xlane.f32.xlu0 %v1420
        %v1422 = vpop.xlane.xlu0 %1421
        %v1423 = vmul.f32 %v1163, %v1163
        %v1424 = vmul.f32 %v1164, %v1164
        %v1425 = vmul.f32 %v1197, %v1197
        %v1426 = vmul.f32 %v1198, %v1198
        %v1427 = vmul.f32 %v1165, %v1165
        %v1428 = vmul.f32 %v1166, %v1166
        %v1429 = vmul.f32 %v1199, %v1199
        %v1430 = vmul.f32 %v1200, %v1200
        %v1431 = vmul.f32 %v1167, %v1167
        %v1432 = vmul.f32 %v1168, %v1168
        %v1433 = vmul.f32 %v1201, %v1201
        %v1434 = vmul.f32 %v1202, %v1202
        %v1435 = vmul.f32 %v1169, %v1169
        %v1436 = vmul.f32 %v1170, %v1170
        %v1437 = vmul.f32 %v1203, %v1203
        %v1438 = vmul.f32 %v1204, %v1204
        %v1439 = vmul.f32 %v1171, %v1171
        %v1440 = vmul.f32 %v1172, %v1172
        %v1441 = vmul.f32 %v1205, %v1205
        %v1442 = vmul.f32 %v1206, %v1206
        %v1443 = vmul.f32 %v1173, %v1173
        %v1444 = vmul.f32 %v1174, %v1174
        %v1445 = vmul.f32 %v1207, %v1207
        %v1446 = vmul.f32 %v1208, %v1208
        %v1447 = vmul.f32 %v1175, %v1175
        %v1448 = vmul.f32 %v1176, %v1176
        %v1449 = vmul.f32 %v1209, %v1209
        %v1450 = vmul.f32 %v1210, %v1210
        %v1451 = vmul.f32 %v1177, %v1177
        %v1452 = vmul.f32 %v1178, %v1178
        %v1453 = vmul.f32 %v1211, %v1211
        %v1454 = vmul.f32 %v1212, %v1212
        %v1455 = vmul.f32 %v1179, %v1179
        %v1456 = vmul.f32 %v1180, %v1180
        %v1457 = vmul.f32 %v1213, %v1213
        %v1458 = vmul.f32 %v1214, %v1214
        %v1459 = vmul.f32 %v1181, %v1181
        %v1460 = vmul.f32 %v1182, %v1182
        %v1461 = vmul.f32 %v1215, %v1215
        %v1462 = vmul.f32 %v1216, %v1216
        %v1463 = vmul.f32 %v1183, %v1183
        %v1464 = vmul.f32 %v1184, %v1184
        %v1465 = vmul.f32 %v1217, %v1217
        %v1466 = vmul.f32 %v1218, %v1218
        %v1467 = vmul.f32 %v1185, %v1185
        %v1468 = vmul.f32 %v1186, %v1186
        %v1469 = vmul.f32 %v1219, %v1219
        %v1470 = vmul.f32 %v1220, %v1220
        %v1471 = vmul.f32 %v1187, %v1187
        %v1472 = vmul.f32 %v1188, %v1188
        %v1473 = vmul.f32 %v1221, %v1221
        %v1474 = vmul.f32 %v1222, %v1222
        %v1475 = vmul.f32 %v1189, %v1189
        %v1476 = vmul.f32 %v1190, %v1190
        %v1477 = vmul.f32 %v1223, %v1223
        %v1478 = vmul.f32 %v1224, %v1224
        %v1479 = vmul.f32 %v1191, %v1191
        %v1480 = vmul.f32 %v1192, %v1192
        %v1481 = vmul.f32 %v1225, %v1225
        %v1482 = vmul.f32 %v1226, %v1226
        %v1483 = vmul.f32 %v1193, %v1193
        %v1484 = vmul.f32 %v1194, %v1194
        %v1485 = vmul.f32 %v1227, %v1227
        %v1486 = vmul.f32 %v1228, %v1228
        %v1487 = vsel %vm1068, %v1423, 0.0
        %1488 = vadd.xlane.f32.xlu0 %v1487
        %v1489 = vpop.xlane.xlu0 %1488
        %v1490 = vsel %vm1068, %v1424, 0.0
        %1491 = vadd.xlane.f32.xlu0 %v1490
        %v1492 = vpop.xlane.xlu0 %1491
        %v1493 = vsel %vm1068, %v1425, 0.0
        %1494 = vadd.xlane.f32.xlu0 %v1493
        %v1495 = vpop.xlane.xlu0 %1494
        %v1496 = vsel %vm1068, %v1426, 0.0
        %1497 = vadd.xlane.f32.xlu0 %v1496
        %v1498 = vpop.xlane.xlu0 %1497
        %v1499 = vsel %vm1068, %v1427, 0.0
        %1500 = vadd.xlane.f32.xlu0 %v1499
        %v1501 = vpop.xlane.xlu0 %1500
        %v1502 = vsel %vm1068, %v1428, 0.0
        %1503 = vadd.xlane.f32.xlu0 %v1502
        %v1504 = vpop.xlane.xlu0 %1503
        %v1505 = vsel %vm1068, %v1429, 0.0
        %1506 = vadd.xlane.f32.xlu0 %v1505
        %v1507 = vpop.xlane.xlu0 %1506
        %v1508 = vsel %vm1068, %v1430, 0.0
        %1509 = vadd.xlane.f32.xlu0 %v1508
        %v1510 = vpop.xlane.xlu0 %1509
        %v1511 = vsel %vm1068, %v1431, 0.0
        %1512 = vadd.xlane.f32.xlu0 %v1511
        %v1513 = vpop.xlane.xlu0 %1512
        %v1514 = vsel %vm1068, %v1432, 0.0
        %1515 = vadd.xlane.f32.xlu0 %v1514
        %v1516 = vpop.xlane.xlu0 %1515
        %v1517 = vsel %vm1068, %v1433, 0.0
        %1518 = vadd.xlane.f32.xlu0 %v1517
        %v1519 = vpop.xlane.xlu0 %1518
        %v1520 = vsel %vm1068, %v1434, 0.0
        %1521 = vadd.xlane.f32.xlu0 %v1520
        %v1522 = vpop.xlane.xlu0 %1521
        %v1523 = vsel %vm1068, %v1435, 0.0
        %1524 = vadd.xlane.f32.xlu0 %v1523
        %v1525 = vpop.xlane.xlu0 %1524
        %v1526 = vsel %vm1068, %v1436, 0.0
        %1527 = vadd.xlane.f32.xlu0 %v1526
        %v1528 = vpop.xlane.xlu0 %1527
        %v1529 = vsel %vm1068, %v1437, 0.0
        %1530 = vadd.xlane.f32.xlu0 %v1529
        %v1531 = vpop.xlane.xlu0 %1530
        %v1532 = vsel %vm1068, %v1438, 0.0
        %1533 = vadd.xlane.f32.xlu0 %v1532
        %v1534 = vpop.xlane.xlu0 %1533
        %v1535 = vsel %vm1068, %v1439, 0.0
        %1536 = vadd.xlane.f32.xlu0 %v1535
        %v1537 = vpop.xlane.xlu0 %1536
        %v1538 = vsel %vm1068, %v1440, 0.0
        %1539 = vadd.xlane.f32.xlu0 %v1538
        %v1540 = vpop.xlane.xlu0 %1539
        %v1541 = vsel %vm1068, %v1441, 0.0
        %1542 = vadd.xlane.f32.xlu0 %v1541
        %v1543 = vpop.xlane.xlu0 %1542
        %v1544 = vsel %vm1068, %v1442, 0.0
        %1545 = vadd.xlane.f32.xlu0 %v1544
        %v1546 = vpop.xlane.xlu0 %1545
        %v1547 = vsel %vm1068, %v1443, 0.0
        %1548 = vadd.xlane.f32.xlu0 %v1547
        %v1549 = vpop.xlane.xlu0 %1548
        %v1550 = vsel %vm1068, %v1444, 0.0
        %1551 = vadd.xlane.f32.xlu0 %v1550
        %v1552 = vpop.xlane.xlu0 %1551
        %v1553 = vsel %vm1068, %v1445, 0.0
        %1554 = vadd.xlane.f32.xlu0 %v1553
        %v1555 = vpop.xlane.xlu0 %1554
        %v1556 = vsel %vm1068, %v1446, 0.0
        %1557 = vadd.xlane.f32.xlu0 %v1556
        %v1558 = vpop.xlane.xlu0 %1557
        %v1559 = vsel %vm1068, %v1447, 0.0
        %1560 = vadd.xlane.f32.xlu0 %v1559
        %v1561 = vpop.xlane.xlu0 %1560
        %v1562 = vsel %vm1068, %v1448, 0.0
        %1563 = vadd.xlane.f32.xlu0 %v1562
        %v1564 = vpop.xlane.xlu0 %1563
        %v1565 = vsel %vm1068, %v1449, 0.0
        %1566 = vadd.xlane.f32.xlu0 %v1565
        %v1567 = vpop.xlane.xlu0 %1566
        %v1568 = vsel %vm1068, %v1450, 0.0
        %1569 = vadd.xlane.f32.xlu0 %v1568
        %v1570 = vpop.xlane.xlu0 %1569
        %v1571 = vsel %vm1068, %v1451, 0.0
        %1572 = vadd.xlane.f32.xlu0 %v1571
        %v1573 = vpop.xlane.xlu0 %1572
        %v1574 = vsel %vm1068, %v1452, 0.0
        %1575 = vadd.xlane.f32.xlu0 %v1574
        %v1576 = vpop.xlane.xlu0 %1575
        %v1577 = vsel %vm1068, %v1453, 0.0
        %1578 = vadd.xlane.f32.xlu0 %v1577
        %v1579 = vpop.xlane.xlu0 %1578
        %v1580 = vsel %vm1068, %v1454, 0.0
        %1581 = vadd.xlane.f32.xlu0 %v1580
        %v1582 = vpop.xlane.xlu0 %1581
        %v1583 = vsel %vm1068, %v1455, 0.0
        %1584 = vadd.xlane.f32.xlu0 %v1583
        %v1585 = vpop.xlane.xlu0 %1584
        %v1586 = vsel %vm1068, %v1456, 0.0
        %1587 = vadd.xlane.f32.xlu0 %v1586
        %v1588 = vpop.xlane.xlu0 %1587
        %v1589 = vsel %vm1068, %v1457, 0.0
        %1590 = vadd.xlane.f32.xlu0 %v1589
        %v1591 = vpop.xlane.xlu0 %1590
        %v1592 = vsel %vm1068, %v1458, 0.0
        %1593 = vadd.xlane.f32.xlu0 %v1592
        %v1594 = vpop.xlane.xlu0 %1593
        %v1595 = vsel %vm1068, %v1459, 0.0
        %1596 = vadd.xlane.f32.xlu0 %v1595
        %v1597 = vpop.xlane.xlu0 %1596
        %v1598 = vsel %vm1068, %v1460, 0.0
        %1599 = vadd.xlane.f32.xlu0 %v1598
        %v1600 = vpop.xlane.xlu0 %1599
        %v1601 = vsel %vm1068, %v1461, 0.0
        %1602 = vadd.xlane.f32.xlu0 %v1601
        %v1603 = vpop.xlane.xlu0 %1602
        %v1604 = vsel %vm1068, %v1462, 0.0
        %1605 = vadd.xlane.f32.xlu0 %v1604
        %v1606 = vpop.xlane.xlu0 %1605
        %v1607 = vsel %vm1068, %v1463, 0.0
        %1608 = vadd.xlane.f32.xlu0 %v1607
        %v1609 = vpop.xlane.xlu0 %1608
        %v1610 = vsel %vm1068, %v1464, 0.0
        %1611 = vadd.xlane.f32.xlu0 %v1610
        %v1612 = vpop.xlane.xlu0 %1611
        %v1613 = vsel %vm1068, %v1465, 0.0
        %1614 = vadd.xlane.f32.xlu0 %v1613
        %v1615 = vpop.xlane.xlu0 %1614
        %v1616 = vsel %vm1068, %v1466, 0.0
        %1617 = vadd.xlane.f32.xlu0 %v1616
        %v1618 = vpop.xlane.xlu0 %1617
        %v1619 = vsel %vm1068, %v1467, 0.0
        %1620 = vadd.xlane.f32.xlu0 %v1619
        %v1621 = vpop.xlane.xlu0 %1620
        %v1622 = vsel %vm1068, %v1468, 0.0
        %1623 = vadd.xlane.f32.xlu0 %v1622
        %v1624 = vpop.xlane.xlu0 %1623
        %v1625 = vsel %vm1068, %v1469, 0.0
        %1626 = vadd.xlane.f32.xlu0 %v1625
        %v1627 = vpop.xlane.xlu0 %1626
        %v1628 = vsel %vm1068, %v1470, 0.0
        %1629 = vadd.xlane.f32.xlu0 %v1628
        %v1630 = vpop.xlane.xlu0 %1629
        %v1631 = vsel %vm1068, %v1471, 0.0
        %1632 = vadd.xlane.f32.xlu0 %v1631
        %v1633 = vpop.xlane.xlu0 %1632
        %v1634 = vsel %vm1068, %v1472, 0.0
        %1635 = vadd.xlane.f32.xlu0 %v1634
        %v1636 = vpop.xlane.xlu0 %1635
        %v1637 = vsel %vm1068, %v1473, 0.0
        %1638 = vadd.xlane.f32.xlu0 %v1637
        %v1639 = vpop.xlane.xlu0 %1638
        %v1640 = vsel %vm1068, %v1474, 0.0
        %1641 = vadd.xlane.f32.xlu0 %v1640
        %v1642 = vpop.xlane.xlu0 %1641
        %v1643 = vsel %vm1068, %v1475, 0.0
        %1644 = vadd.xlane.f32.xlu0 %v1643
        %v1645 = vpop.xlane.xlu0 %1644
        %v1646 = vsel %vm1068, %v1476, 0.0
        %1647 = vadd.xlane.f32.xlu0 %v1646
        %v1648 = vpop.xlane.xlu0 %1647
        %v1649 = vsel %vm1068, %v1477, 0.0
        %1650 = vadd.xlane.f32.xlu0 %v1649
        %v1651 = vpop.xlane.xlu0 %1650
        %v1652 = vsel %vm1068, %v1478, 0.0
        %1653 = vadd.xlane.f32.xlu0 %v1652
        %v1654 = vpop.xlane.xlu0 %1653
        %v1655 = vsel %vm1068, %v1479, 0.0
        %1656 = vadd.xlane.f32.xlu0 %v1655
        %v1657 = vpop.xlane.xlu0 %1656
        %v1658 = vsel %vm1068, %v1480, 0.0
        %1659 = vadd.xlane.f32.xlu0 %v1658
        %v1660 = vpop.xlane.xlu0 %1659
        %v1661 = vsel %vm1068, %v1481, 0.0
        %1662 = vadd.xlane.f32.xlu0 %v1661
        %v1663 = vpop.xlane.xlu0 %1662
        %v1664 = vsel %vm1068, %v1482, 0.0
        %1665 = vadd.xlane.f32.xlu0 %v1664
        %v1666 = vpop.xlane.xlu0 %1665
        %v1667 = vsel %vm1068, %v1483, 0.0
        %1668 = vadd.xlane.f32.xlu0 %v1667
        %v1669 = vpop.xlane.xlu0 %1668
        %v1670 = vsel %vm1068, %v1484, 0.0
        %1671 = vadd.xlane.f32.xlu0 %v1670
        %v1672 = vpop.xlane.xlu0 %1671
        %v1673 = vsel %vm1068, %v1485, 0.0
        %1674 = vadd.xlane.f32.xlu0 %v1673
        %v1675 = vpop.xlane.xlu0 %1674
        %v1676 = vsel %vm1068, %v1486, 0.0
        %1677 = vadd.xlane.f32.xlu0 %v1676
        %v1678 = vpop.xlane.xlu0 %1677
        %v1679 = vmul.f32 %v1233, 0.0625
        %v1680 = vmul.f32 %v1236, 0.0625
        %v1681 = vmul.f32 %v1239, 0.0625
        %v1682 = vmul.f32 %v1242, 0.0625
        %v1683 = vmul.f32 %v1245, 0.0625
        %v1684 = vmul.f32 %v1248, 0.0625
        %v1685 = vmul.f32 %v1251, 0.0625
        %v1686 = vmul.f32 %v1254, 0.0625
        %v1687 = vmul.f32 %v1257, 0.0625
        %v1688 = vmul.f32 %v1260, 0.0625
        %v1689 = vmul.f32 %v1263, 0.0625
        %v1690 = vmul.f32 %v1266, 0.0625
        %v1691 = vmul.f32 %v1269, 0.0625
        %v1692 = vmul.f32 %v1272, 0.0625
        %v1693 = vmul.f32 %v1275, 0.0625
        %v1694 = vmul.f32 %v1278, 0.0625
        %v1695 = vmul.f32 %v1281, 0.0625
        %v1696 = vmul.f32 %v1284, 0.0625
        %v1697 = vmul.f32 %v1287, 0.0625
        %v1698 = vmul.f32 %v1290, 0.0625
        %v1699 = vmul.f32 %v1293, 0.0625
        %v1700 = vmul.f32 %v1296, 0.0625
        %v1701 = vmul.f32 %v1299, 0.0625
        %v1702 = vmul.f32 %v1302, 0.0625
        %v1703 = vmul.f32 %v1305, 0.0625
        %v1704 = vmul.f32 %v1308, 0.0625
        %v1705 = vmul.f32 %v1311, 0.0625
        %v1706 = vmul.f32 %v1314, 0.0625
        %v1707 = vmul.f32 %v1317, 0.0625
        %v1708 = vmul.f32 %v1320, 0.0625
        %v1709 = vmul.f32 %v1323, 0.0625
        %v1710 = vmul.f32 %v1326, 0.0625
        %v1711 = vmul.f32 %v1329, 0.0625
        %v1712 = vmul.f32 %v1332, 0.0625
        %v1713 = vmul.f32 %v1335, 0.0625
        %v1714 = vmul.f32 %v1338, 0.0625
        %v1715 = vmul.f32 %v1341, 0.0625
        %v1716 = vmul.f32 %v1344, 0.0625
        %v1717 = vmul.f32 %v1347, 0.0625
        %v1718 = vmul.f32 %v1350, 0.0625
        %v1719 = vmul.f32 %v1353, 0.0625
        %v1720 = vmul.f32 %v1356, 0.0625
        %v1721 = vmul.f32 %v1359, 0.0625
        %v1722 = vmul.f32 %v1362, 0.0625
        %v1723 = vmul.f32 %v1365, 0.0625
        %v1724 = vmul.f32 %v1368, 0.0625
        %v1725 = vmul.f32 %v1371, 0.0625
        %v1726 = vmul.f32 %v1374, 0.0625
        %v1727 = vmul.f32 %v1377, 0.0625
        %v1728 = vmul.f32 %v1380, 0.0625
        %v1729 = vmul.f32 %v1383, 0.0625
        %v1730 = vmul.f32 %v1386, 0.0625
        %v1731 = vmul.f32 %v1389, 0.0625
        %v1732 = vmul.f32 %v1392, 0.0625
        %v1733 = vmul.f32 %v1395, 0.0625
        %v1734 = vmul.f32 %v1398, 0.0625
        %v1735 = vmul.f32 %v1401, 0.0625
        %v1736 = vmul.f32 %v1404, 0.0625
        %v1737 = vmul.f32 %v1407, 0.0625
        %v1738 = vmul.f32 %v1410, 0.0625
        %v1739 = vmul.f32 %v1413, 0.0625
        %v1740 = vmul.f32 %v1416, 0.0625
        %v1741 = vmul.f32 %v1419, 0.0625
        %v1742 = vmul.f32 %v1422, 0.0625
        %v1743 = vmul.f32 %v1489, 0.0625
        %v1744 = vmul.f32 %v1492, 0.0625
        %v1745 = vmul.f32 %v1495, 0.0625
        %v1746 = vmul.f32 %v1498, 0.0625
        %v1747 = vmul.f32 %v1501, 0.0625
        %v1748 = vmul.f32 %v1504, 0.0625
        %v1749 = vmul.f32 %v1507, 0.0625
        %v1750 = vmul.f32 %v1510, 0.0625
        %v1751 = vmul.f32 %v1513, 0.0625
        %v1752 = vmul.f32 %v1516, 0.0625
        %v1753 = vmul.f32 %v1519, 0.0625
        %v1754 = vmul.f32 %v1522, 0.0625
        %v1755 = vmul.f32 %v1525, 0.0625
        %v1756 = vmul.f32 %v1528, 0.0625
        %v1757 = vmul.f32 %v1531, 0.0625
        %v1758 = vmul.f32 %v1534, 0.0625
        %v1759 = vmul.f32 %v1537, 0.0625
        %v1760 = vmul.f32 %v1540, 0.0625
        %v1761 = vmul.f32 %v1543, 0.0625
        %v1762 = vmul.f32 %v1546, 0.0625
        %v1763 = vmul.f32 %v1549, 0.0625
        %v1764 = vmul.f32 %v1552, 0.0625
        %v1765 = vmul.f32 %v1555, 0.0625
        %v1766 = vmul.f32 %v1558, 0.0625
        %v1767 = vmul.f32 %v1561, 0.0625
        %v1768 = vmul.f32 %v1564, 0.0625
        %v1769 = vmul.f32 %v1567, 0.0625
        %v1770 = vmul.f32 %v1570, 0.0625
        %v1771 = vmul.f32 %v1573, 0.0625
        %v1772 = vmul.f32 %v1576, 0.0625
        %v1773 = vmul.f32 %v1579, 0.0625
        %v1774 = vmul.f32 %v1582, 0.0625
        %v1775 = vmul.f32 %v1585, 0.0625
        %v1776 = vmul.f32 %v1588, 0.0625
        %v1777 = vmul.f32 %v1591, 0.0625
        %v1778 = vmul.f32 %v1594, 0.0625
        %v1779 = vmul.f32 %v1597, 0.0625
        %v1780 = vmul.f32 %v1600, 0.0625
        %v1781 = vmul.f32 %v1603, 0.0625
        %v1782 = vmul.f32 %v1606, 0.0625
        %v1783 = vmul.f32 %v1609, 0.0625
        %v1784 = vmul.f32 %v1612, 0.0625
        %v1785 = vmul.f32 %v1615, 0.0625
        %v1786 = vmul.f32 %v1618, 0.0625
        %v1787 = vmul.f32 %v1621, 0.0625
        %v1788 = vmul.f32 %v1624, 0.0625
        %v1789 = vmul.f32 %v1627, 0.0625
        %v1790 = vmul.f32 %v1630, 0.0625
        %v1791 = vmul.f32 %v1633, 0.0625
        %v1792 = vmul.f32 %v1636, 0.0625
        %v1793 = vmul.f32 %v1639, 0.0625
        %v1794 = vmul.f32 %v1642, 0.0625
        %v1795 = vmul.f32 %v1645, 0.0625
        %v1796 = vmul.f32 %v1648, 0.0625
        %v1797 = vmul.f32 %v1651, 0.0625
        %v1798 = vmul.f32 %v1654, 0.0625
        %v1799 = vmul.f32 %v1657, 0.0625
        %v1800 = vmul.f32 %v1660, 0.0625
        %v1801 = vmul.f32 %v1663, 0.0625
        %v1802 = vmul.f32 %v1666, 0.0625
        %v1803 = vmul.f32 %v1669, 0.0625
        %v1804 = vmul.f32 %v1672, 0.0625
        %v1805 = vmul.f32 %v1675, 0.0625
        %v1806 = vmul.f32 %v1678, 0.0625
        %v1807 = vmul.f32 %v1679, %v1679
        %v1808 = vmul.f32 %v1680, %v1680
        %v1809 = vmul.f32 %v1681, %v1681
        %v1810 = vmul.f32 %v1682, %v1682
        %v1811 = vmul.f32 %v1683, %v1683
        %v1812 = vmul.f32 %v1684, %v1684
        %v1813 = vmul.f32 %v1685, %v1685
        %v1814 = vmul.f32 %v1686, %v1686
        %v1815 = vmul.f32 %v1687, %v1687
        %v1816 = vmul.f32 %v1688, %v1688
        %v1817 = vmul.f32 %v1689, %v1689
        %v1818 = vmul.f32 %v1690, %v1690
        %v1819 = vmul.f32 %v1691, %v1691
        %v1820 = vmul.f32 %v1692, %v1692
        %v1821 = vmul.f32 %v1693, %v1693
        %v1822 = vmul.f32 %v1694, %v1694
        %v1823 = vmul.f32 %v1695, %v1695
        %v1824 = vmul.f32 %v1696, %v1696
        %v1825 = vmul.f32 %v1697, %v1697
        %v1826 = vmul.f32 %v1698, %v1698
        %v1827 = vmul.f32 %v1699, %v1699
        %v1828 = vmul.f32 %v1700, %v1700
        %v1829 = vmul.f32 %v1701, %v1701
        %v1830 = vmul.f32 %v1702, %v1702
        %v1831 = vmul.f32 %v1703, %v1703
        %v1832 = vmul.f32 %v1704, %v1704
        %v1833 = vmul.f32 %v1705, %v1705
        %v1834 = vmul.f32 %v1706, %v1706
        %v1835 = vmul.f32 %v1707, %v1707
        %v1836 = vmul.f32 %v1708, %v1708
        %v1837 = vmul.f32 %v1709, %v1709
        %v1838 = vmul.f32 %v1710, %v1710
        %v1839 = vmul.f32 %v1711, %v1711
        %v1840 = vmul.f32 %v1712, %v1712
        %v1841 = vmul.f32 %v1713, %v1713
        %v1842 = vmul.f32 %v1714, %v1714
        %v1843 = vmul.f32 %v1715, %v1715
        %v1844 = vmul.f32 %v1716, %v1716
        %v1845 = vmul.f32 %v1717, %v1717
        %v1846 = vmul.f32 %v1718, %v1718
        %v1847 = vmul.f32 %v1719, %v1719
        %v1848 = vmul.f32 %v1720, %v1720
        %v1849 = vmul.f32 %v1721, %v1721
        %v1850 = vmul.f32 %v1722, %v1722
        %v1851 = vmul.f32 %v1723, %v1723
        %v1852 = vmul.f32 %v1724, %v1724
        %v1853 = vmul.f32 %v1725, %v1725
        %v1854 = vmul.f32 %v1726, %v1726
        %v1855 = vmul.f32 %v1727, %v1727
        %v1856 = vmul.f32 %v1728, %v1728
        %v1857 = vmul.f32 %v1729, %v1729
        %v1858 = vmul.f32 %v1730, %v1730
        %v1859 = vmul.f32 %v1731, %v1731
        %v1860 = vmul.f32 %v1732, %v1732
        %v1861 = vmul.f32 %v1733, %v1733
        %v1862 = vmul.f32 %v1734, %v1734
        %v1863 = vmul.f32 %v1735, %v1735
        %v1864 = vmul.f32 %v1736, %v1736
        %v1865 = vmul.f32 %v1737, %v1737
        %v1866 = vmul.f32 %v1738, %v1738
        %v1867 = vmul.f32 %v1739, %v1739
        %v1868 = vmul.f32 %v1740, %v1740
        %v1869 = vmul.f32 %v1741, %v1741
        %v1870 = vmul.f32 %v1742, %v1742
        %v1871 = vsub.f32 %v1743, %v1807
        %v1872 = vsub.f32 %v1744, %v1808
        %v1873 = vsub.f32 %v1745, %v1809
        %v1874 = vsub.f32 %v1746, %v1810
        %v1875 = vsub.f32 %v1747, %v1811
        %v1876 = vsub.f32 %v1748, %v1812
        %v1877 = vsub.f32 %v1749, %v1813
        %v1878 = vsub.f32 %v1750, %v1814
        %v1879 = vsub.f32 %v1751, %v1815
        %v1880 = vsub.f32 %v1752, %v1816
        %v1881 = vsub.f32 %v1753, %v1817
        %v1882 = vsub.f32 %v1754, %v1818
        %v1883 = vsub.f32 %v1755, %v1819
        %v1884 = vsub.f32 %v1756, %v1820
        %v1885 = vsub.f32 %v1757, %v1821
        %v1886 = vsub.f32 %v1758, %v1822
        %v1887 = vsub.f32 %v1759, %v1823
        %v1888 = vsub.f32 %v1760, %v1824
        %v1889 = vsub.f32 %v1761, %v1825
        %v1890 = vsub.f32 %v1762, %v1826
        %v1891 = vsub.f32 %v1763, %v1827
        %v1892 = vsub.f32 %v1764, %v1828
        %v1893 = vsub.f32 %v1765, %v1829
        %v1894 = vsub.f32 %v1766, %v1830
        %v1895 = vsub.f32 %v1767, %v1831
        %v1896 = vsub.f32 %v1768, %v1832
        %v1897 = vsub.f32 %v1769, %v1833
        %v1898 = vsub.f32 %v1770, %v1834
        %v1899 = vsub.f32 %v1771, %v1835
        %v1900 = vsub.f32 %v1772, %v1836
        %v1901 = vsub.f32 %v1773, %v1837
        %v1902 = vsub.f32 %v1774, %v1838
        %v1903 = vsub.f32 %v1775, %v1839
        %v1904 = vsub.f32 %v1776, %v1840
        %v1905 = vsub.f32 %v1777, %v1841
        %v1906 = vsub.f32 %v1778, %v1842
        %v1907 = vsub.f32 %v1779, %v1843
        %v1908 = vsub.f32 %v1780, %v1844
        %v1909 = vsub.f32 %v1781, %v1845
        %v1910 = vsub.f32 %v1782, %v1846
        %v1911 = vsub.f32 %v1783, %v1847
        %v1912 = vsub.f32 %v1784, %v1848
        %v1913 = vsub.f32 %v1785, %v1849
        %v1914 = vsub.f32 %v1786, %v1850
        %v1915 = vsub.f32 %v1787, %v1851
        %v1916 = vsub.f32 %v1788, %v1852
        %v1917 = vsub.f32 %v1789, %v1853
        %v1918 = vsub.f32 %v1790, %v1854
        %v1919 = vsub.f32 %v1791, %v1855
        %v1920 = vsub.f32 %v1792, %v1856
        %v1921 = vsub.f32 %v1793, %v1857
        %v1922 = vsub.f32 %v1794, %v1858
        %v1923 = vsub.f32 %v1795, %v1859
        %v1924 = vsub.f32 %v1796, %v1860
        %v1925 = vsub.f32 %v1797, %v1861
        %v1926 = vsub.f32 %v1798, %v1862
        %v1927 = vsub.f32 %v1799, %v1863
        %v1928 = vsub.f32 %v1800, %v1864
        %v1929 = vsub.f32 %v1801, %v1865
        %v1930 = vsub.f32 %v1802, %v1866
        %v1931 = vsub.f32 %v1803, %v1867
        %v1932 = vsub.f32 %v1804, %v1868
        %v1933 = vsub.f32 %v1805, %v1869
        %v1934 = vsub.f32 %v1806, %v1870
        %v1935 = vmax.f32 %v1871, 0.0
        %v1936 = vmax.f32 %v1872, 0.0
        %v1937 = vmax.f32 %v1873, 0.0
        %v1938 = vmax.f32 %v1874, 0.0
        %v1939 = vmax.f32 %v1875, 0.0
        %v1940 = vmax.f32 %v1876, 0.0
        %v1941 = vmax.f32 %v1877, 0.0
        %v1942 = vmax.f32 %v1878, 0.0
        %v1943 = vmax.f32 %v1879, 0.0
        %v1944 = vmax.f32 %v1880, 0.0
        %v1945 = vmax.f32 %v1881, 0.0
        %v1946 = vmax.f32 %v1882, 0.0
        %v1947 = vmax.f32 %v1883, 0.0
        %v1948 = vmax.f32 %v1884, 0.0
        %v1949 = vmax.f32 %v1885, 0.0
        %v1950 = vmax.f32 %v1886, 0.0
        %v1951 = vmax.f32 %v1887, 0.0
        %v1952 = vmax.f32 %v1888, 0.0
        %v1953 = vmax.f32 %v1889, 0.0
        %v1954 = vmax.f32 %v1890, 0.0
        %v1955 = vmax.f32 %v1891, 0.0
        %v1956 = vmax.f32 %v1892, 0.0
        %v1957 = vmax.f32 %v1893, 0.0
        %v1958 = vmax.f32 %v1894, 0.0
        %v1959 = vmax.f32 %v1895, 0.0
        %v1960 = vmax.f32 %v1896, 0.0
        %v1961 = vmax.f32 %v1897, 0.0
        %v1962 = vmax.f32 %v1898, 0.0
        %v1963 = vmax.f32 %v1899, 0.0
        %v1964 = vmax.f32 %v1900, 0.0
        %v1965 = vmax.f32 %v1901, 0.0
        %v1966 = vmax.f32 %v1902, 0.0
        %v1967 = vmax.f32 %v1903, 0.0
        %v1968 = vmax.f32 %v1904, 0.0
        %v1969 = vmax.f32 %v1905, 0.0
        %v1970 = vmax.f32 %v1906, 0.0
        %v1971 = vmax.f32 %v1907, 0.0
        %v1972 = vmax.f32 %v1908, 0.0
        %v1973 = vmax.f32 %v1909, 0.0
        %v1974 = vmax.f32 %v1910, 0.0
        %v1975 = vmax.f32 %v1911, 0.0
        %v1976 = vmax.f32 %v1912, 0.0
        %v1977 = vmax.f32 %v1913, 0.0
        %v1978 = vmax.f32 %v1914, 0.0
        %v1979 = vmax.f32 %v1915, 0.0
        %v1980 = vmax.f32 %v1916, 0.0
        %v1981 = vmax.f32 %v1917, 0.0
        %v1982 = vmax.f32 %v1918, 0.0
        %v1983 = vmax.f32 %v1919, 0.0
        %v1984 = vmax.f32 %v1920, 0.0
        %v1985 = vmax.f32 %v1921, 0.0
        %v1986 = vmax.f32 %v1922, 0.0
        %v1987 = vmax.f32 %v1923, 0.0
        %v1988 = vmax.f32 %v1924, 0.0
        %v1989 = vmax.f32 %v1925, 0.0
        %v1990 = vmax.f32 %v1926, 0.0
        %v1991 = vmax.f32 %v1927, 0.0
        %v1992 = vmax.f32 %v1928, 0.0
        %v1993 = vmax.f32 %v1929, 0.0
        %v1994 = vmax.f32 %v1930, 0.0
        %v1995 = vmax.f32 %v1931, 0.0
        %v1996 = vmax.f32 %v1932, 0.0
        %v1997 = vmax.f32 %v1933, 0.0
        %v1998 = vmax.f32 %v1934, 0.0
        %v1999 = vsub.f32 %v1163, %v1679
        %v2000 = vsub.f32 %v1164, %v1680
        %v2001 = vsub.f32 %v1197, %v1681
        %v2002 = vsub.f32 %v1198, %v1682
        %v2003 = vsub.f32 %v1165, %v1683
        %v2004 = vsub.f32 %v1166, %v1684
        %v2005 = vsub.f32 %v1199, %v1685
        %v2006 = vsub.f32 %v1200, %v1686
        %v2007 = vsub.f32 %v1167, %v1687
        %v2008 = vsub.f32 %v1168, %v1688
        %v2009 = vsub.f32 %v1201, %v1689
        %v2010 = vsub.f32 %v1202, %v1690
        %v2011 = vsub.f32 %v1169, %v1691
        %v2012 = vsub.f32 %v1170, %v1692
        %v2013 = vsub.f32 %v1203, %v1693
        %v2014 = vsub.f32 %v1204, %v1694
        %v2015 = vsub.f32 %v1171, %v1695
        %v2016 = vsub.f32 %v1172, %v1696
        %v2017 = vsub.f32 %v1205, %v1697
        %v2018 = vsub.f32 %v1206, %v1698
        %v2019 = vsub.f32 %v1173, %v1699
        %v2020 = vsub.f32 %v1174, %v1700
        %v2021 = vsub.f32 %v1207, %v1701
        %v2022 = vsub.f32 %v1208, %v1702
        %v2023 = vsub.f32 %v1175, %v1703
        %v2024 = vsub.f32 %v1176, %v1704
        %v2025 = vsub.f32 %v1209, %v1705
        %v2026 = vsub.f32 %v1210, %v1706
        %v2027 = vsub.f32 %v1177, %v1707
        %v2028 = vsub.f32 %v1178, %v1708
        %v2029 = vsub.f32 %v1211, %v1709
        %v2030 = vsub.f32 %v1212, %v1710
        %v2031 = vsub.f32 %v1179, %v1711
        %v2032 = vsub.f32 %v1180, %v1712
        %v2033 = vsub.f32 %v1213, %v1713
        %v2034 = vsub.f32 %v1214, %v1714
        %v2035 = vsub.f32 %v1181, %v1715
        %v2036 = vsub.f32 %v1182, %v1716
        %v2037 = vsub.f32 %v1215, %v1717
        %v2038 = vsub.f32 %v1216, %v1718
        %v2039 = vsub.f32 %v1183, %v1719
        %v2040 = vsub.f32 %v1184, %v1720
        %v2041 = vsub.f32 %v1217, %v1721
        %v2042 = vsub.f32 %v1218, %v1722
        %v2043 = vsub.f32 %v1185, %v1723
        %v2044 = vsub.f32 %v1186, %v1724
        %v2045 = vsub.f32 %v1219, %v1725
        %v2046 = vsub.f32 %v1220, %v1726
        %v2047 = vsub.f32 %v1187, %v1727
        %v2048 = vsub.f32 %v1188, %v1728
        %v2049 = vsub.f32 %v1221, %v1729
        %v2050 = vsub.f32 %v1222, %v1730
        %v2051 = vsub.f32 %v1189, %v1731
        %v2052 = vsub.f32 %v1190, %v1732
        %v2053 = vsub.f32 %v1223, %v1733
        %v2054 = vsub.f32 %v1224, %v1734
        %v2055 = vsub.f32 %v1191, %v1735
        %v2056 = vsub.f32 %v1192, %v1736
        %v2057 = vsub.f32 %v1225, %v1737
        %v2058 = vsub.f32 %v1226, %v1738
        %v2059 = vsub.f32 %v1193, %v1739
        %v2060 = vsub.f32 %v1194, %v1740
        %v2061 = vsub.f32 %v1227, %v1741
        %v2062 = vsub.f32 %v1228, %v1742
        %v2063 = vadd.f32 %v1935, 1e-05
        %v2064 = vadd.f32 %v1936, 1e-05
        %v2065 = vadd.f32 %v1937, 1e-05
        %v2066 = vadd.f32 %v1938, 1e-05
        %v2067 = vadd.f32 %v1939, 1e-05
        %v2068 = vadd.f32 %v1940, 1e-05
        %v2069 = vadd.f32 %v1941, 1e-05
        %v2070 = vadd.f32 %v1942, 1e-05
        %v2071 = vadd.f32 %v1943, 1e-05
        %v2072 = vadd.f32 %v1944, 1e-05
        %v2073 = vadd.f32 %v1945, 1e-05
        %v2074 = vadd.f32 %v1946, 1e-05
        %v2075 = vadd.f32 %v1947, 1e-05
        %v2076 = vadd.f32 %v1948, 1e-05
        %v2077 = vadd.f32 %v1949, 1e-05
        %v2078 = vadd.f32 %v1950, 1e-05
        %v2079 = vadd.f32 %v1951, 1e-05
        %v2080 = vadd.f32 %v1952, 1e-05
        %v2081 = vadd.f32 %v1953, 1e-05
        %v2082 = vadd.f32 %v1954, 1e-05
        %v2083 = vadd.f32 %v1955, 1e-05
        %v2084 = vadd.f32 %v1956, 1e-05
        %v2085 = vadd.f32 %v1957, 1e-05
        %v2086 = vadd.f32 %v1958, 1e-05
        %v2087 = vadd.f32 %v1959, 1e-05
        %v2088 = vadd.f32 %v1960, 1e-05
        %v2089 = vadd.f32 %v1961, 1e-05
        %v2090 = vadd.f32 %v1962, 1e-05
        %v2091 = vadd.f32 %v1963, 1e-05
        %v2092 = vadd.f32 %v1964, 1e-05
        %v2093 = vadd.f32 %v1965, 1e-05
        %v2094 = vadd.f32 %v1966, 1e-05
        %v2095 = vadd.f32 %v1967, 1e-05
        %v2096 = vadd.f32 %v1968, 1e-05
        %v2097 = vadd.f32 %v1969, 1e-05
        %v2098 = vadd.f32 %v1970, 1e-05
        %v2099 = vadd.f32 %v1971, 1e-05
        %v2100 = vadd.f32 %v1972, 1e-05
        %v2101 = vadd.f32 %v1973, 1e-05
        %v2102 = vadd.f32 %v1974, 1e-05
        %v2103 = vadd.f32 %v1975, 1e-05
        %v2104 = vadd.f32 %v1976, 1e-05
        %v2105 = vadd.f32 %v1977, 1e-05
        %v2106 = vadd.f32 %v1978, 1e-05
        %v2107 = vadd.f32 %v1979, 1e-05
        %v2108 = vadd.f32 %v1980, 1e-05
        %v2109 = vadd.f32 %v1981, 1e-05
        %v2110 = vadd.f32 %v1982, 1e-05
        %v2111 = vadd.f32 %v1983, 1e-05
        %v2112 = vadd.f32 %v1984, 1e-05
        %v2113 = vadd.f32 %v1985, 1e-05
        %v2114 = vadd.f32 %v1986, 1e-05
        %v2115 = vadd.f32 %v1987, 1e-05
        %v2116 = vadd.f32 %v1988, 1e-05
        %v2117 = vadd.f32 %v1989, 1e-05
        %v2118 = vadd.f32 %v1990, 1e-05
        %v2119 = vadd.f32 %v1991, 1e-05
        %v2120 = vadd.f32 %v1992, 1e-05
        %v2121 = vadd.f32 %v1993, 1e-05
        %v2122 = vadd.f32 %v1994, 1e-05
        %v2123 = vadd.f32 %v1995, 1e-05
        %v2124 = vadd.f32 %v1996, 1e-05
        %v2125 = vadd.f32 %v1997, 1e-05
        %v2126 = vadd.f32 %v1998, 1e-05
        %v2127 = vrsqrt.pop %v2063
        %v2128 = vrsqrt.pop %v2064
        %v2129 = vrsqrt.pop %v2065
        %v2130 = vrsqrt.pop %v2066
        %v2131 = vrsqrt.pop %v2067
        %v2132 = vrsqrt.pop %v2068
        %v2133 = vrsqrt.pop %v2069
        %v2134 = vrsqrt.pop %v2070
        %v2135 = vrsqrt.pop %v2071
        %v2136 = vrsqrt.pop %v2072
        %v2137 = vrsqrt.pop %v2073
        %v2138 = vrsqrt.pop %v2074
        %v2139 = vrsqrt.pop %v2075
        %v2140 = vrsqrt.pop %v2076
        %v2141 = vrsqrt.pop %v2077
        %v2142 = vrsqrt.pop %v2078
        %v2143 = vrsqrt.pop %v2079
        %v2144 = vrsqrt.pop %v2080
        %v2145 = vrsqrt.pop %v2081
        %v2146 = vrsqrt.pop %v2082
        %v2147 = vrsqrt.pop %v2083
        %v2148 = vrsqrt.pop %v2084
        %v2149 = vrsqrt.pop %v2085
        %v2150 = vrsqrt.pop %v2086
        %v2151 = vrsqrt.pop %v2087
        %v2152 = vrsqrt.pop %v2088
        %v2153 = vrsqrt.pop %v2089
        %v2154 = vrsqrt.pop %v2090
        %v2155 = vrsqrt.pop %v2091
        %v2156 = vrsqrt.pop %v2092
        %v2157 = vrsqrt.pop %v2093
        %v2158 = vrsqrt.pop %v2094
        %v2159 = vrsqrt.pop %v2095
        %v2160 = vrsqrt.pop %v2096
        %v2161 = vrsqrt.pop %v2097
        %v2162 = vrsqrt.pop %v2098
        %v2163 = vrsqrt.pop %v2099
        %v2164 = vrsqrt.pop %v2100
        %v2165 = vrsqrt.pop %v2101
        %v2166 = vrsqrt.pop %v2102
        %v2167 = vrsqrt.pop %v2103
        %v2168 = vrsqrt.pop %v2104
        %v2169 = vrsqrt.pop %v2105
        %v2170 = vrsqrt.pop %v2106
        %v2171 = vrsqrt.pop %v2107
        %v2172 = vrsqrt.pop %v2108
        %v2173 = vrsqrt.pop %v2109
        %v2174 = vrsqrt.pop %v2110
        %v2175 = vrsqrt.pop %v2111
        %v2176 = vrsqrt.pop %v2112
        %v2177 = vrsqrt.pop %v2113
        %v2178 = vrsqrt.pop %v2114
        %v2179 = vrsqrt.pop %v2115
        %v2180 = vrsqrt.pop %v2116
        %v2181 = vrsqrt.pop %v2117
        %v2182 = vrsqrt.pop %v2118
        %v2183 = vrsqrt.pop %v2119
        %v2184 = vrsqrt.pop %v2120
        %v2185 = vrsqrt.pop %v2121
        %v2186 = vrsqrt.pop %v2122
        %v2187 = vrsqrt.pop %v2123
        %v2188 = vrsqrt.pop %v2124
        %v2189 = vrsqrt.pop %v2125
        %v2190 = vrsqrt.pop %v2126
        %v2191 = vmul.f32 %v1999, %v2127
        %v2192 = vmul.f32 %v2000, %v2128
        %v2193 = vmul.f32 %v2001, %v2129
        %v2194 = vmul.f32 %v2002, %v2130
        %v2195 = vmul.f32 %v2003, %v2131
        %v2196 = vmul.f32 %v2004, %v2132
        %v2197 = vmul.f32 %v2005, %v2133
        %v2198 = vmul.f32 %v2006, %v2134
        %v2199 = vmul.f32 %v2007, %v2135
        %v2200 = vmul.f32 %v2008, %v2136
        %v2201 = vmul.f32 %v2009, %v2137
        %v2202 = vmul.f32 %v2010, %v2138
        %v2203 = vmul.f32 %v2011, %v2139
        %v2204 = vmul.f32 %v2012, %v2140
        %v2205 = vmul.f32 %v2013, %v2141
        %v2206 = vmul.f32 %v2014, %v2142
        %v2207 = vmul.f32 %v2015, %v2143
        %v2208 = vmul.f32 %v2016, %v2144
        %v2209 = vmul.f32 %v2017, %v2145
        %v2210 = vmul.f32 %v2018, %v2146
        %v2211 = vmul.f32 %v2019, %v2147
        %v2212 = vmul.f32 %v2020, %v2148
        %v2213 = vmul.f32 %v2021, %v2149
        %v2214 = vmul.f32 %v2022, %v2150
        %v2215 = vmul.f32 %v2023, %v2151
        %v2216 = vmul.f32 %v2024, %v2152
        %v2217 = vmul.f32 %v2025, %v2153
        %v2218 = vmul.f32 %v2026, %v2154
        %v2219 = vmul.f32 %v2027, %v2155
        %v2220 = vmul.f32 %v2028, %v2156
        %v2221 = vmul.f32 %v2029, %v2157
        %v2222 = vmul.f32 %v2030, %v2158
        %v2223 = vmul.f32 %v2031, %v2159
        %v2224 = vmul.f32 %v2032, %v2160
        %v2225 = vmul.f32 %v2033, %v2161
        %v2226 = vmul.f32 %v2034, %v2162
        %v2227 = vmul.f32 %v2035, %v2163
        %v2228 = vmul.f32 %v2036, %v2164
        %v2229 = vmul.f32 %v2037, %v2165
        %v2230 = vmul.f32 %v2038, %v2166
        %v2231 = vmul.f32 %v2039, %v2167
        %v2232 = vmul.f32 %v2040, %v2168
        %v2233 = vmul.f32 %v2041, %v2169
        %v2234 = vmul.f32 %v2042, %v2170
        %v2235 = vmul.f32 %v2043, %v2171
        %v2236 = vmul.f32 %v2044, %v2172
        %v2237 = vmul.f32 %v2045, %v2173
        %v2238 = vmul.f32 %v2046, %v2174
        %v2239 = vmul.f32 %v2047, %v2175
        %v2240 = vmul.f32 %v2048, %v2176
        %v2241 = vmul.f32 %v2049, %v2177
        %v2242 = vmul.f32 %v2050, %v2178
        %v2243 = vmul.f32 %v2051, %v2179
        %v2244 = vmul.f32 %v2052, %v2180
        %v2245 = vmul.f32 %v2053, %v2181
        %v2246 = vmul.f32 %v2054, %v2182
        %v2247 = vmul.f32 %v2055, %v2183
        %v2248 = vmul.f32 %v2056, %v2184
        %v2249 = vmul.f32 %v2057, %v2185
        %v2250 = vmul.f32 %v2058, %v2186
        %v2251 = vmul.f32 %v2059, %v2187
        %v2252 = vmul.f32 %v2060, %v2188
        %v2253 = vmul.f32 %v2061, %v2189
        %v2254 = vmul.f32 %v2062, %v2190
        %v2256 = vlaneseq
        %v2257 = vshrl.u32 %v2256, 7
        %v2258 = vsub.s32 0, %v2257
        %v2259 = vrot.slane %v1229, %v2258
        %v2261 = vmul.f32 %v2191, %v2259
        %v2262 = vmul.f32 %v2192, %v2259
        %v2263 = vmul.f32 %v2193, %v2259
        %v2264 = vmul.f32 %v2194, %v2259
        %v2265 = vmul.f32 %v2195, %v2259
        %v2266 = vmul.f32 %v2196, %v2259
        %v2267 = vmul.f32 %v2197, %v2259
        %v2268 = vmul.f32 %v2198, %v2259
        %v2269 = vmul.f32 %v2199, %v2259
        %v2270 = vmul.f32 %v2200, %v2259
        %v2271 = vmul.f32 %v2201, %v2259
        %v2272 = vmul.f32 %v2202, %v2259
        %v2273 = vmul.f32 %v2203, %v2259
        %v2274 = vmul.f32 %v2204, %v2259
        %v2275 = vmul.f32 %v2205, %v2259
        %v2276 = vmul.f32 %v2206, %v2259
        %v2277 = vmul.f32 %v2207, %v2259
        %v2278 = vmul.f32 %v2208, %v2259
        %v2279 = vmul.f32 %v2209, %v2259
        %v2280 = vmul.f32 %v2210, %v2259
        %v2281 = vmul.f32 %v2211, %v2259
        %v2282 = vmul.f32 %v2212, %v2259
        %v2283 = vmul.f32 %v2213, %v2259
        %v2284 = vmul.f32 %v2214, %v2259
        %v2285 = vmul.f32 %v2215, %v2259
        %v2286 = vmul.f32 %v2216, %v2259
        %v2287 = vmul.f32 %v2217, %v2259
        %v2288 = vmul.f32 %v2218, %v2259
        %v2289 = vmul.f32 %v2219, %v2259
        %v2290 = vmul.f32 %v2220, %v2259
        %v2291 = vmul.f32 %v2221, %v2259
        %v2292 = vmul.f32 %v2222, %v2259
        %v2293 = vmul.f32 %v2223, %v2259
        %v2294 = vmul.f32 %v2224, %v2259
        %v2295 = vmul.f32 %v2225, %v2259
        %v2296 = vmul.f32 %v2226, %v2259
        %v2297 = vmul.f32 %v2227, %v2259
        %v2298 = vmul.f32 %v2228, %v2259
        %v2299 = vmul.f32 %v2229, %v2259
        %v2300 = vmul.f32 %v2230, %v2259
        %v2301 = vmul.f32 %v2231, %v2259
        %v2302 = vmul.f32 %v2232, %v2259
        %v2303 = vmul.f32 %v2233, %v2259
        %v2304 = vmul.f32 %v2234, %v2259
        %v2305 = vmul.f32 %v2235, %v2259
        %v2306 = vmul.f32 %v2236, %v2259
        %v2307 = vmul.f32 %v2237, %v2259
        %v2308 = vmul.f32 %v2238, %v2259
        %v2309 = vmul.f32 %v2239, %v2259
        %v2310 = vmul.f32 %v2240, %v2259
        %v2311 = vmul.f32 %v2241, %v2259
        %v2312 = vmul.f32 %v2242, %v2259
        %v2313 = vmul.f32 %v2243, %v2259
        %v2314 = vmul.f32 %v2244, %v2259
        %v2315 = vmul.f32 %v2245, %v2259
        %v2316 = vmul.f32 %v2246, %v2259
        %v2317 = vmul.f32 %v2247, %v2259
        %v2318 = vmul.f32 %v2248, %v2259
        %v2319 = vmul.f32 %v2249, %v2259
        %v2320 = vmul.f32 %v2250, %v2259
        %v2321 = vmul.f32 %v2251, %v2259
        %v2322 = vmul.f32 %v2252, %v2259
        %v2323 = vmul.f32 %v2253, %v2259
        %v2324 = vmul.f32 %v2254, %v2259
        %v2326 = vlaneseq
        %v2327 = vshrl.u32 %v2326, 7
        %v2328 = vsub.s32 0, %v2327
        %v2329 = vrot.slane %v1230, %v2328
        %v2331 = vadd.f32 %v2261, %v2329
        %v2332 = vadd.f32 %v2262, %v2329
        %v2333 = vadd.f32 %v2263, %v2329
        %v2334 = vadd.f32 %v2264, %v2329
        %v2335 = vadd.f32 %v2265, %v2329
        %v2336 = vadd.f32 %v2266, %v2329
        %v2337 = vadd.f32 %v2267, %v2329
        %v2338 = vadd.f32 %v2268, %v2329
        %v2339 = vadd.f32 %v2269, %v2329
        %v2340 = vadd.f32 %v2270, %v2329
        %v2341 = vadd.f32 %v2271, %v2329
        %v2342 = vadd.f32 %v2272, %v2329
        %v2343 = vadd.f32 %v2273, %v2329
        %v2344 = vadd.f32 %v2274, %v2329
        %v2345 = vadd.f32 %v2275, %v2329
        %v2346 = vadd.f32 %v2276, %v2329
        %v2347 = vadd.f32 %v2277, %v2329
        %v2348 = vadd.f32 %v2278, %v2329
        %v2349 = vadd.f32 %v2279, %v2329
        %v2350 = vadd.f32 %v2280, %v2329
        %v2351 = vadd.f32 %v2281, %v2329
        %v2352 = vadd.f32 %v2282, %v2329
        %v2353 = vadd.f32 %v2283, %v2329
        %v2354 = vadd.f32 %v2284, %v2329
        %v2355 = vadd.f32 %v2285, %v2329
        %v2356 = vadd.f32 %v2286, %v2329
        %v2357 = vadd.f32 %v2287, %v2329
        %v2358 = vadd.f32 %v2288, %v2329
        %v2359 = vadd.f32 %v2289, %v2329
        %v2360 = vadd.f32 %v2290, %v2329
        %v2361 = vadd.f32 %v2291, %v2329
        %v2362 = vadd.f32 %v2292, %v2329
        %v2363 = vadd.f32 %v2293, %v2329
        %v2364 = vadd.f32 %v2294, %v2329
        %v2365 = vadd.f32 %v2295, %v2329
        %v2366 = vadd.f32 %v2296, %v2329
        %v2367 = vadd.f32 %v2297, %v2329
        %v2368 = vadd.f32 %v2298, %v2329
        %v2369 = vadd.f32 %v2299, %v2329
        %v2370 = vadd.f32 %v2300, %v2329
        %v2371 = vadd.f32 %v2301, %v2329
        %v2372 = vadd.f32 %v2302, %v2329
        %v2373 = vadd.f32 %v2303, %v2329
        %v2374 = vadd.f32 %v2304, %v2329
        %v2375 = vadd.f32 %v2305, %v2329
        %v2376 = vadd.f32 %v2306, %v2329
        %v2377 = vadd.f32 %v2307, %v2329
        %v2378 = vadd.f32 %v2308, %v2329
        %v2379 = vadd.f32 %v2309, %v2329
        %v2380 = vadd.f32 %v2310, %v2329
        %v2381 = vadd.f32 %v2311, %v2329
        %v2382 = vadd.f32 %v2312, %v2329
        %v2383 = vadd.f32 %v2313, %v2329
        %v2384 = vadd.f32 %v2314, %v2329
        %v2385 = vadd.f32 %v2315, %v2329
        %v2386 = vadd.f32 %v2316, %v2329
        %v2387 = vadd.f32 %v2317, %v2329
        %v2388 = vadd.f32 %v2318, %v2329
        %v2389 = vadd.f32 %v2319, %v2329
        %v2390 = vadd.f32 %v2320, %v2329
        %v2391 = vadd.f32 %v2321, %v2329
        %v2392 = vadd.f32 %v2322, %v2329
        %v2393 = vadd.f32 %v2323, %v2329
        %v2394 = vadd.f32 %v2324, %v2329
        %2459 = vrot.lane.b32.xlu0 %v1163, 112
        %v2460 = vpop.permute.xlu0 %2459
        %2461 = vrot.lane.b32.xlu0 %v1164, 112
        %v2462 = vpop.permute.xlu0 %2461
        %2463 = vrot.lane.b32.xlu0 %v1197, 112
        %v2464 = vpop.permute.xlu0 %2463
        %2465 = vrot.lane.b32.xlu0 %v1198, 112
        %v2466 = vpop.permute.xlu0 %2465
        %2467 = vrot.lane.b32.xlu0 %v1165, 112
        %v2468 = vpop.permute.xlu0 %2467
        %2469 = vrot.lane.b32.xlu0 %v1166, 112
        %v2470 = vpop.permute.xlu0 %2469
        %2471 = vrot.lane.b32.xlu0 %v1199, 112
        %v2472 = vpop.permute.xlu0 %2471
        %2473 = vrot.lane.b32.xlu0 %v1200, 112
        %v2474 = vpop.permute.xlu0 %2473
        %2475 = vrot.lane.b32.xlu0 %v1167, 112
        %v2476 = vpop.permute.xlu0 %2475
        %2477 = vrot.lane.b32.xlu0 %v1168, 112
        %v2478 = vpop.permute.xlu0 %2477
        %2479 = vrot.lane.b32.xlu0 %v1201, 112
        %v2480 = vpop.permute.xlu0 %2479
        %2481 = vrot.lane.b32.xlu0 %v1202, 112
        %v2482 = vpop.permute.xlu0 %2481
        %2483 = vrot.lane.b32.xlu0 %v1169, 112
        %v2484 = vpop.permute.xlu0 %2483
        %2485 = vrot.lane.b32.xlu0 %v1170, 112
        %v2486 = vpop.permute.xlu0 %2485
        %2487 = vrot.lane.b32.xlu0 %v1203, 112
        %v2488 = vpop.permute.xlu0 %2487
        %2489 = vrot.lane.b32.xlu0 %v1204, 112
        %v2490 = vpop.permute.xlu0 %2489
        %2491 = vrot.lane.b32.xlu0 %v1171, 112
        %v2492 = vpop.permute.xlu0 %2491
        %2493 = vrot.lane.b32.xlu0 %v1172, 112
        %v2494 = vpop.permute.xlu0 %2493
        %2495 = vrot.lane.b32.xlu0 %v1205, 112
        %v2496 = vpop.permute.xlu0 %2495
        %2497 = vrot.lane.b32.xlu0 %v1206, 112
        %v2498 = vpop.permute.xlu0 %2497
        %2499 = vrot.lane.b32.xlu0 %v1173, 112
        %v2500 = vpop.permute.xlu0 %2499
        %2501 = vrot.lane.b32.xlu0 %v1174, 112
        %v2502 = vpop.permute.xlu0 %2501
        %2503 = vrot.lane.b32.xlu0 %v1207, 112
        %v2504 = vpop.permute.xlu0 %2503
        %2505 = vrot.lane.b32.xlu0 %v1208, 112
        %v2506 = vpop.permute.xlu0 %2505
        %2507 = vrot.lane.b32.xlu0 %v1175, 112
        %v2508 = vpop.permute.xlu0 %2507
        %2509 = vrot.lane.b32.xlu0 %v1176, 112
        %v2510 = vpop.permute.xlu0 %2509
        %2511 = vrot.lane.b32.xlu0 %v1209, 112
        %v2512 = vpop.permute.xlu0 %2511
        %2513 = vrot.lane.b32.xlu0 %v1210, 112
        %v2514 = vpop.permute.xlu0 %2513
        %2515 = vrot.lane.b32.xlu0 %v1177, 112
        %v2516 = vpop.permute.xlu0 %2515
        %2517 = vrot.lane.b32.xlu0 %v1178, 112
        %v2518 = vpop.permute.xlu0 %2517
        %2519 = vrot.lane.b32.xlu0 %v1211, 112
        %v2520 = vpop.permute.xlu0 %2519
        %2521 = vrot.lane.b32.xlu0 %v1212, 112
        %v2522 = vpop.permute.xlu0 %2521
        %2523 = vrot.lane.b32.xlu0 %v1179, 112
        %v2524 = vpop.permute.xlu0 %2523
        %2525 = vrot.lane.b32.xlu0 %v1180, 112
        %v2526 = vpop.permute.xlu0 %2525
        %2527 = vrot.lane.b32.xlu0 %v1213, 112
        %v2528 = vpop.permute.xlu0 %2527
        %2529 = vrot.lane.b32.xlu0 %v1214, 112
        %v2530 = vpop.permute.xlu0 %2529
        %2531 = vrot.lane.b32.xlu0 %v1181, 112
        %v2532 = vpop.permute.xlu0 %2531
        %2533 = vrot.lane.b32.xlu0 %v1182, 112
        %v2534 = vpop.permute.xlu0 %2533
        %2535 = vrot.lane.b32.xlu0 %v1215, 112
        %v2536 = vpop.permute.xlu0 %2535
        %2537 = vrot.lane.b32.xlu0 %v1216, 112
        %v2538 = vpop.permute.xlu0 %2537
        %2539 = vrot.lane.b32.xlu0 %v1183, 112
        %v2540 = vpop.permute.xlu0 %2539
        %2541 = vrot.lane.b32.xlu0 %v1184, 112
        %v2542 = vpop.permute.xlu0 %2541
        %2543 = vrot.lane.b32.xlu0 %v1217, 112
        %v2544 = vpop.permute.xlu0 %2543
        %2545 = vrot.lane.b32.xlu0 %v1218, 112
        %v2546 = vpop.permute.xlu0 %2545
        %2547 = vrot.lane.b32.xlu0 %v1185, 112
        %v2548 = vpop.permute.xlu0 %2547
        %2549 = vrot.lane.b32.xlu0 %v1186, 112
        %v2550 = vpop.permute.xlu0 %2549
        %2551 = vrot.lane.b32.xlu0 %v1219, 112
        %v2552 = vpop.permute.xlu0 %2551
        %2553 = vrot.lane.b32.xlu0 %v1220, 112
        %v2554 = vpop.permute.xlu0 %2553
        %2555 = vrot.lane.b32.xlu0 %v1187, 112
        %v2556 = vpop.permute.xlu0 %2555
        %2557 = vrot.lane.b32.xlu0 %v1188, 112
        %v2558 = vpop.permute.xlu0 %2557
        %2559 = vrot.lane.b32.xlu0 %v1221, 112
        %v2560 = vpop.permute.xlu0 %2559
        %2561 = vrot.lane.b32.xlu0 %v1222, 112
        %v2562 = vpop.permute.xlu0 %2561
        %2563 = vrot.lane.b32.xlu0 %v1189, 112
        %v2564 = vpop.permute.xlu0 %2563
        %2565 = vrot.lane.b32.xlu0 %v1190, 112
        %v2566 = vpop.permute.xlu0 %2565
        %2567 = vrot.lane.b32.xlu0 %v1223, 112
        %v2568 = vpop.permute.xlu0 %2567
        %2569 = vrot.lane.b32.xlu0 %v1224, 112
        %v2570 = vpop.permute.xlu0 %2569
        %2571 = vrot.lane.b32.xlu0 %v1191, 112
        %v2572 = vpop.permute.xlu0 %2571
        %2573 = vrot.lane.b32.xlu0 %v1192, 112
        %v2574 = vpop.permute.xlu0 %2573
        %2575 = vrot.lane.b32.xlu0 %v1225, 112
        %v2576 = vpop.permute.xlu0 %2575
        %2577 = vrot.lane.b32.xlu0 %v1226, 112
        %v2578 = vpop.permute.xlu0 %2577
        %2579 = vrot.lane.b32.xlu0 %v1193, 112
        %v2580 = vpop.permute.xlu0 %2579
        %2581 = vrot.lane.b32.xlu0 %v1194, 112
        %v2582 = vpop.permute.xlu0 %2581
        %2583 = vrot.lane.b32.xlu0 %v1227, 112
        %v2584 = vpop.permute.xlu0 %2583
        %2585 = vrot.lane.b32.xlu0 %v1228, 112
        %v2586 = vpop.permute.xlu0 %2585
        %v2651 = vsel %vm1068, %v2460, 0.0
        %2652 = vadd.xlane.f32.xlu0 %v2651
        %v2653 = vpop.xlane.xlu0 %2652
        %v2654 = vsel %vm1068, %v2462, 0.0
        %2655 = vadd.xlane.f32.xlu0 %v2654
        %v2656 = vpop.xlane.xlu0 %2655
        %v2657 = vsel %vm1068, %v2464, 0.0
        %2658 = vadd.xlane.f32.xlu0 %v2657
        %v2659 = vpop.xlane.xlu0 %2658
        %v2660 = vsel %vm1068, %v2466, 0.0
        %2661 = vadd.xlane.f32.xlu0 %v2660
        %v2662 = vpop.xlane.xlu0 %2661
        %v2663 = vsel %vm1068, %v2468, 0.0
        %2664 = vadd.xlane.f32.xlu0 %v2663
        %v2665 = vpop.xlane.xlu0 %2664
        %v2666 = vsel %vm1068, %v2470, 0.0
        %2667 = vadd.xlane.f32.xlu0 %v2666
        %v2668 = vpop.xlane.xlu0 %2667
        %v2669 = vsel %vm1068, %v2472, 0.0
        %2670 = vadd.xlane.f32.xlu0 %v2669
        %v2671 = vpop.xlane.xlu0 %2670
        %v2672 = vsel %vm1068, %v2474, 0.0
        %2673 = vadd.xlane.f32.xlu0 %v2672
        %v2674 = vpop.xlane.xlu0 %2673
        %v2675 = vsel %vm1068, %v2476, 0.0
        %2676 = vadd.xlane.f32.xlu0 %v2675
        %v2677 = vpop.xlane.xlu0 %2676
        %v2678 = vsel %vm1068, %v2478, 0.0
        %2679 = vadd.xlane.f32.xlu0 %v2678
        %v2680 = vpop.xlane.xlu0 %2679
        %v2681 = vsel %vm1068, %v2480, 0.0
        %2682 = vadd.xlane.f32.xlu0 %v2681
        %v2683 = vpop.xlane.xlu0 %2682
        %v2684 = vsel %vm1068, %v2482, 0.0
        %2685 = vadd.xlane.f32.xlu0 %v2684
        %v2686 = vpop.xlane.xlu0 %2685
        %v2687 = vsel %vm1068, %v2484, 0.0
        %2688 = vadd.xlane.f32.xlu0 %v2687
        %v2689 = vpop.xlane.xlu0 %2688
        %v2690 = vsel %vm1068, %v2486, 0.0
        %2691 = vadd.xlane.f32.xlu0 %v2690
        %v2692 = vpop.xlane.xlu0 %2691
        %v2693 = vsel %vm1068, %v2488, 0.0
        %2694 = vadd.xlane.f32.xlu0 %v2693
        %v2695 = vpop.xlane.xlu0 %2694
        %v2696 = vsel %vm1068, %v2490, 0.0
        %2697 = vadd.xlane.f32.xlu0 %v2696
        %v2698 = vpop.xlane.xlu0 %2697
        %v2699 = vsel %vm1068, %v2492, 0.0
        %2700 = vadd.xlane.f32.xlu0 %v2699
        %v2701 = vpop.xlane.xlu0 %2700
        %v2702 = vsel %vm1068, %v2494, 0.0
        %2703 = vadd.xlane.f32.xlu0 %v2702
        %v2704 = vpop.xlane.xlu0 %2703
        %v2705 = vsel %vm1068, %v2496, 0.0
        %2706 = vadd.xlane.f32.xlu0 %v2705
        %v2707 = vpop.xlane.xlu0 %2706
        %v2708 = vsel %vm1068, %v2498, 0.0
        %2709 = vadd.xlane.f32.xlu0 %v2708
        %v2710 = vpop.xlane.xlu0 %2709
        %v2711 = vsel %vm1068, %v2500, 0.0
        %2712 = vadd.xlane.f32.xlu0 %v2711
        %v2713 = vpop.xlane.xlu0 %2712
        %v2714 = vsel %vm1068, %v2502, 0.0
        %2715 = vadd.xlane.f32.xlu0 %v2714
        %v2716 = vpop.xlane.xlu0 %2715
        %v2717 = vsel %vm1068, %v2504, 0.0
        %2718 = vadd.xlane.f32.xlu0 %v2717
        %v2719 = vpop.xlane.xlu0 %2718
        %v2720 = vsel %vm1068, %v2506, 0.0
        %2721 = vadd.xlane.f32.xlu0 %v2720
        %v2722 = vpop.xlane.xlu0 %2721
        %v2723 = vsel %vm1068, %v2508, 0.0
        %2724 = vadd.xlane.f32.xlu0 %v2723
        %v2725 = vpop.xlane.xlu0 %2724
        %v2726 = vsel %vm1068, %v2510, 0.0
        %2727 = vadd.xlane.f32.xlu0 %v2726
        %v2728 = vpop.xlane.xlu0 %2727
        %v2729 = vsel %vm1068, %v2512, 0.0
        %2730 = vadd.xlane.f32.xlu0 %v2729
        %v2731 = vpop.xlane.xlu0 %2730
        %v2732 = vsel %vm1068, %v2514, 0.0
        %2733 = vadd.xlane.f32.xlu0 %v2732
        %v2734 = vpop.xlane.xlu0 %2733
        %v2735 = vsel %vm1068, %v2516, 0.0
        %2736 = vadd.xlane.f32.xlu0 %v2735
        %v2737 = vpop.xlane.xlu0 %2736
        %v2738 = vsel %vm1068, %v2518, 0.0
        %2739 = vadd.xlane.f32.xlu0 %v2738
        %v2740 = vpop.xlane.xlu0 %2739
        %v2741 = vsel %vm1068, %v2520, 0.0
        %2742 = vadd.xlane.f32.xlu0 %v2741
        %v2743 = vpop.xlane.xlu0 %2742
        %v2744 = vsel %vm1068, %v2522, 0.0
        %2745 = vadd.xlane.f32.xlu0 %v2744
        %v2746 = vpop.xlane.xlu0 %2745
        %v2747 = vsel %vm1068, %v2524, 0.0
        %2748 = vadd.xlane.f32.xlu0 %v2747
        %v2749 = vpop.xlane.xlu0 %2748
        %v2750 = vsel %vm1068, %v2526, 0.0
        %2751 = vadd.xlane.f32.xlu0 %v2750
        %v2752 = vpop.xlane.xlu0 %2751
        %v2753 = vsel %vm1068, %v2528, 0.0
        %2754 = vadd.xlane.f32.xlu0 %v2753
        %v2755 = vpop.xlane.xlu0 %2754
        %v2756 = vsel %vm1068, %v2530, 0.0
        %2757 = vadd.xlane.f32.xlu0 %v2756
        %v2758 = vpop.xlane.xlu0 %2757
        %v2759 = vsel %vm1068, %v2532, 0.0
        %2760 = vadd.xlane.f32.xlu0 %v2759
        %v2761 = vpop.xlane.xlu0 %2760
        %v2762 = vsel %vm1068, %v2534, 0.0
        %2763 = vadd.xlane.f32.xlu0 %v2762
        %v2764 = vpop.xlane.xlu0 %2763
        %v2765 = vsel %vm1068, %v2536, 0.0
        %2766 = vadd.xlane.f32.xlu0 %v2765
        %v2767 = vpop.xlane.xlu0 %2766
        %v2768 = vsel %vm1068, %v2538, 0.0
        %2769 = vadd.xlane.f32.xlu0 %v2768
        %v2770 = vpop.xlane.xlu0 %2769
        %v2771 = vsel %vm1068, %v2540, 0.0
        %2772 = vadd.xlane.f32.xlu0 %v2771
        %v2773 = vpop.xlane.xlu0 %2772
        %v2774 = vsel %vm1068, %v2542, 0.0
        %2775 = vadd.xlane.f32.xlu0 %v2774
        %v2776 = vpop.xlane.xlu0 %2775
        %v2777 = vsel %vm1068, %v2544, 0.0
        %2778 = vadd.xlane.f32.xlu0 %v2777
        %v2779 = vpop.xlane.xlu0 %2778
        %v2780 = vsel %vm1068, %v2546, 0.0
        %2781 = vadd.xlane.f32.xlu0 %v2780
        %v2782 = vpop.xlane.xlu0 %2781
        %v2783 = vsel %vm1068, %v2548, 0.0
        %2784 = vadd.xlane.f32.xlu0 %v2783
        %v2785 = vpop.xlane.xlu0 %2784
        %v2786 = vsel %vm1068, %v2550, 0.0
        %2787 = vadd.xlane.f32.xlu0 %v2786
        %v2788 = vpop.xlane.xlu0 %2787
        %v2789 = vsel %vm1068, %v2552, 0.0
        %2790 = vadd.xlane.f32.xlu0 %v2789
        %v2791 = vpop.xlane.xlu0 %2790
        %v2792 = vsel %vm1068, %v2554, 0.0
        %2793 = vadd.xlane.f32.xlu0 %v2792
        %v2794 = vpop.xlane.xlu0 %2793
        %v2795 = vsel %vm1068, %v2556, 0.0
        %2796 = vadd.xlane.f32.xlu0 %v2795
        %v2797 = vpop.xlane.xlu0 %2796
        %v2798 = vsel %vm1068, %v2558, 0.0
        %2799 = vadd.xlane.f32.xlu0 %v2798
        %v2800 = vpop.xlane.xlu0 %2799
        %v2801 = vsel %vm1068, %v2560, 0.0
        %2802 = vadd.xlane.f32.xlu0 %v2801
        %v2803 = vpop.xlane.xlu0 %2802
        %v2804 = vsel %vm1068, %v2562, 0.0
        %2805 = vadd.xlane.f32.xlu0 %v2804
        %v2806 = vpop.xlane.xlu0 %2805
        %v2807 = vsel %vm1068, %v2564, 0.0
        %2808 = vadd.xlane.f32.xlu0 %v2807
        %v2809 = vpop.xlane.xlu0 %2808
        %v2810 = vsel %vm1068, %v2566, 0.0
        %2811 = vadd.xlane.f32.xlu0 %v2810
        %v2812 = vpop.xlane.xlu0 %2811
        %v2813 = vsel %vm1068, %v2568, 0.0
        %2814 = vadd.xlane.f32.xlu0 %v2813
        %v2815 = vpop.xlane.xlu0 %2814
        %v2816 = vsel %vm1068, %v2570, 0.0
        %2817 = vadd.xlane.f32.xlu0 %v2816
        %v2818 = vpop.xlane.xlu0 %2817
        %v2819 = vsel %vm1068, %v2572, 0.0
        %2820 = vadd.xlane.f32.xlu0 %v2819
        %v2821 = vpop.xlane.xlu0 %2820
        %v2822 = vsel %vm1068, %v2574, 0.0
        %2823 = vadd.xlane.f32.xlu0 %v2822
        %v2824 = vpop.xlane.xlu0 %2823
        %v2825 = vsel %vm1068, %v2576, 0.0
        %2826 = vadd.xlane.f32.xlu0 %v2825
        %v2827 = vpop.xlane.xlu0 %2826
        %v2828 = vsel %vm1068, %v2578, 0.0
        %2829 = vadd.xlane.f32.xlu0 %v2828
        %v2830 = vpop.xlane.xlu0 %2829
        %v2831 = vsel %vm1068, %v2580, 0.0
        %2832 = vadd.xlane.f32.xlu0 %v2831
        %v2833 = vpop.xlane.xlu0 %2832
        %v2834 = vsel %vm1068, %v2582, 0.0
        %2835 = vadd.xlane.f32.xlu0 %v2834
        %v2836 = vpop.xlane.xlu0 %2835
        %v2837 = vsel %vm1068, %v2584, 0.0
        %2838 = vadd.xlane.f32.xlu0 %v2837
        %v2839 = vpop.xlane.xlu0 %2838
        %v2840 = vsel %vm1068, %v2586, 0.0
        %2841 = vadd.xlane.f32.xlu0 %v2840
        %v2842 = vpop.xlane.xlu0 %2841
        %2907 = vrot.lane.b32.xlu0 %v1423, 112
        %v2908 = vpop.permute.xlu0 %2907
        %2909 = vrot.lane.b32.xlu0 %v1424, 112
        %v2910 = vpop.permute.xlu0 %2909
        %2911 = vrot.lane.b32.xlu0 %v1425, 112
        %v2912 = vpop.permute.xlu0 %2911
        %2913 = vrot.lane.b32.xlu0 %v1426, 112
        %v2914 = vpop.permute.xlu0 %2913
        %2915 = vrot.lane.b32.xlu0 %v1427, 112
        %v2916 = vpop.permute.xlu0 %2915
        %2917 = vrot.lane.b32.xlu0 %v1428, 112
        %v2918 = vpop.permute.xlu0 %2917
        %2919 = vrot.lane.b32.xlu0 %v1429, 112
        %v2920 = vpop.permute.xlu0 %2919
        %2921 = vrot.lane.b32.xlu0 %v1430, 112
        %v2922 = vpop.permute.xlu0 %2921
        %2923 = vrot.lane.b32.xlu0 %v1431, 112
        %v2924 = vpop.permute.xlu0 %2923
        %2925 = vrot.lane.b32.xlu0 %v1432, 112
        %v2926 = vpop.permute.xlu0 %2925
        %2927 = vrot.lane.b32.xlu0 %v1433, 112
        %v2928 = vpop.permute.xlu0 %2927
        %2929 = vrot.lane.b32.xlu0 %v1434, 112
        %v2930 = vpop.permute.xlu0 %2929
        %2931 = vrot.lane.b32.xlu0 %v1435, 112
        %v2932 = vpop.permute.xlu0 %2931
        %2933 = vrot.lane.b32.xlu0 %v1436, 112
        %v2934 = vpop.permute.xlu0 %2933
        %2935 = vrot.lane.b32.xlu0 %v1437, 112
        %v2936 = vpop.permute.xlu0 %2935
        %2937 = vrot.lane.b32.xlu0 %v1438, 112
        %v2938 = vpop.permute.xlu0 %2937
        %2939 = vrot.lane.b32.xlu0 %v1439, 112
        %v2940 = vpop.permute.xlu0 %2939
        %2941 = vrot.lane.b32.xlu0 %v1440, 112
        %v2942 = vpop.permute.xlu0 %2941
        %2943 = vrot.lane.b32.xlu0 %v1441, 112
        %v2944 = vpop.permute.xlu0 %2943
        %2945 = vrot.lane.b32.xlu0 %v1442, 112
        %v2946 = vpop.permute.xlu0 %2945
        %2947 = vrot.lane.b32.xlu0 %v1443, 112
        %v2948 = vpop.permute.xlu0 %2947
        %2949 = vrot.lane.b32.xlu0 %v1444, 112
        %v2950 = vpop.permute.xlu0 %2949
        %2951 = vrot.lane.b32.xlu0 %v1445, 112
        %v2952 = vpop.permute.xlu0 %2951
        %2953 = vrot.lane.b32.xlu0 %v1446, 112
        %v2954 = vpop.permute.xlu0 %2953
        %2955 = vrot.lane.b32.xlu0 %v1447, 112
        %v2956 = vpop.permute.xlu0 %2955
        %2957 = vrot.lane.b32.xlu0 %v1448, 112
        %v2958 = vpop.permute.xlu0 %2957
        %2959 = vrot.lane.b32.xlu0 %v1449, 112
        %v2960 = vpop.permute.xlu0 %2959
        %2961 = vrot.lane.b32.xlu0 %v1450, 112
        %v2962 = vpop.permute.xlu0 %2961
        %2963 = vrot.lane.b32.xlu0 %v1451, 112
        %v2964 = vpop.permute.xlu0 %2963
        %2965 = vrot.lane.b32.xlu0 %v1452, 112
        %v2966 = vpop.permute.xlu0 %2965
        %2967 = vrot.lane.b32.xlu0 %v1453, 112
        %v2968 = vpop.permute.xlu0 %2967
        %2969 = vrot.lane.b32.xlu0 %v1454, 112
        %v2970 = vpop.permute.xlu0 %2969
        %2971 = vrot.lane.b32.xlu0 %v1455, 112
        %v2972 = vpop.permute.xlu0 %2971
        %2973 = vrot.lane.b32.xlu0 %v1456, 112
        %v2974 = vpop.permute.xlu0 %2973
        %2975 = vrot.lane.b32.xlu0 %v1457, 112
        %v2976 = vpop.permute.xlu0 %2975
        %2977 = vrot.lane.b32.xlu0 %v1458, 112
        %v2978 = vpop.permute.xlu0 %2977
        %2979 = vrot.lane.b32.xlu0 %v1459, 112
        %v2980 = vpop.permute.xlu0 %2979
        %2981 = vrot.lane.b32.xlu0 %v1460, 112
        %v2982 = vpop.permute.xlu0 %2981
        %2983 = vrot.lane.b32.xlu0 %v1461, 112
        %v2984 = vpop.permute.xlu0 %2983
        %2985 = vrot.lane.b32.xlu0 %v1462, 112
        %v2986 = vpop.permute.xlu0 %2985
        %2987 = vrot.lane.b32.xlu0 %v1463, 112
        %v2988 = vpop.permute.xlu0 %2987
        %2989 = vrot.lane.b32.xlu0 %v1464, 112
        %v2990 = vpop.permute.xlu0 %2989
        %2991 = vrot.lane.b32.xlu0 %v1465, 112
        %v2992 = vpop.permute.xlu0 %2991
        %2993 = vrot.lane.b32.xlu0 %v1466, 112
        %v2994 = vpop.permute.xlu0 %2993
        %2995 = vrot.lane.b32.xlu0 %v1467, 112
        %v2996 = vpop.permute.xlu0 %2995
        %2997 = vrot.lane.b32.xlu0 %v1468, 112
        %v2998 = vpop.permute.xlu0 %2997
        %2999 = vrot.lane.b32.xlu0 %v1469, 112
        %v3000 = vpop.permute.xlu0 %2999
        %3001 = vrot.lane.b32.xlu0 %v1470, 112
        %v3002 = vpop.permute.xlu0 %3001
        %3003 = vrot.lane.b32.xlu0 %v1471, 112
        %v3004 = vpop.permute.xlu0 %3003
        %3005 = vrot.lane.b32.xlu0 %v1472, 112
        %v3006 = vpop.permute.xlu0 %3005
        %3007 = vrot.lane.b32.xlu0 %v1473, 112
        %v3008 = vpop.permute.xlu0 %3007
        %3009 = vrot.lane.b32.xlu0 %v1474, 112
        %v3010 = vpop.permute.xlu0 %3009
        %3011 = vrot.lane.b32.xlu0 %v1475, 112
        %v3012 = vpop.permute.xlu0 %3011
        %3013 = vrot.lane.b32.xlu0 %v1476, 112
        %v3014 = vpop.permute.xlu0 %3013
        %3015 = vrot.lane.b32.xlu0 %v1477, 112
        %v3016 = vpop.permute.xlu0 %3015
        %3017 = vrot.lane.b32.xlu0 %v1478, 112
        %v3018 = vpop.permute.xlu0 %3017
        %3019 = vrot.lane.b32.xlu0 %v1479, 112
        %v3020 = vpop.permute.xlu0 %3019
        %3021 = vrot.lane.b32.xlu0 %v1480, 112
        %v3022 = vpop.permute.xlu0 %3021
        %3023 = vrot.lane.b32.xlu0 %v1481, 112
        %v3024 = vpop.permute.xlu0 %3023
        %3025 = vrot.lane.b32.xlu0 %v1482, 112
        %v3026 = vpop.permute.xlu0 %3025
        %3027 = vrot.lane.b32.xlu0 %v1483, 112
        %v3028 = vpop.permute.xlu0 %3027
        %3029 = vrot.lane.b32.xlu0 %v1484, 112
        %v3030 = vpop.permute.xlu0 %3029
        %3031 = vrot.lane.b32.xlu0 %v1485, 112
        %v3032 = vpop.permute.xlu0 %3031
        %3033 = vrot.lane.b32.xlu0 %v1486, 112
        %v3034 = vpop.permute.xlu0 %3033
        %v3099 = vsel %vm1068, %v2908, 0.0
        %3100 = vadd.xlane.f32.xlu0 %v3099
        %v3101 = vpop.xlane.xlu0 %3100
        %v3102 = vsel %vm1068, %v2910, 0.0
        %3103 = vadd.xlane.f32.xlu0 %v3102
        %v3104 = vpop.xlane.xlu0 %3103
        %v3105 = vsel %vm1068, %v2912, 0.0
        %3106 = vadd.xlane.f32.xlu0 %v3105
        %v3107 = vpop.xlane.xlu0 %3106
        %v3108 = vsel %vm1068, %v2914, 0.0
        %3109 = vadd.xlane.f32.xlu0 %v3108
        %v3110 = vpop.xlane.xlu0 %3109
        %v3111 = vsel %vm1068, %v2916, 0.0
        %3112 = vadd.xlane.f32.xlu0 %v3111
        %v3113 = vpop.xlane.xlu0 %3112
        %v3114 = vsel %vm1068, %v2918, 0.0
        %3115 = vadd.xlane.f32.xlu0 %v3114
        %v3116 = vpop.xlane.xlu0 %3115
        %v3117 = vsel %vm1068, %v2920, 0.0
        %3118 = vadd.xlane.f32.xlu0 %v3117
        %v3119 = vpop.xlane.xlu0 %3118
        %v3120 = vsel %vm1068, %v2922, 0.0
        %3121 = vadd.xlane.f32.xlu0 %v3120
        %v3122 = vpop.xlane.xlu0 %3121
        %v3123 = vsel %vm1068, %v2924, 0.0
        %3124 = vadd.xlane.f32.xlu0 %v3123
        %v3125 = vpop.xlane.xlu0 %3124
        %v3126 = vsel %vm1068, %v2926, 0.0
        %3127 = vadd.xlane.f32.xlu0 %v3126
        %v3128 = vpop.xlane.xlu0 %3127
        %v3129 = vsel %vm1068, %v2928, 0.0
        %3130 = vadd.xlane.f32.xlu0 %v3129
        %v3131 = vpop.xlane.xlu0 %3130
        %v3132 = vsel %vm1068, %v2930, 0.0
        %3133 = vadd.xlane.f32.xlu0 %v3132
        %v3134 = vpop.xlane.xlu0 %3133
        %v3135 = vsel %vm1068, %v2932, 0.0
        %3136 = vadd.xlane.f32.xlu0 %v3135
        %v3137 = vpop.xlane.xlu0 %3136
        %v3138 = vsel %vm1068, %v2934, 0.0
        %3139 = vadd.xlane.f32.xlu0 %v3138
        %v3140 = vpop.xlane.xlu0 %3139
        %v3141 = vsel %vm1068, %v2936, 0.0
        %3142 = vadd.xlane.f32.xlu0 %v3141
        %v3143 = vpop.xlane.xlu0 %3142
        %v3144 = vsel %vm1068, %v2938, 0.0
        %3145 = vadd.xlane.f32.xlu0 %v3144
        %v3146 = vpop.xlane.xlu0 %3145
        %v3147 = vsel %vm1068, %v2940, 0.0
        %3148 = vadd.xlane.f32.xlu0 %v3147
        %v3149 = vpop.xlane.xlu0 %3148
        %v3150 = vsel %vm1068, %v2942, 0.0
        %3151 = vadd.xlane.f32.xlu0 %v3150
        %v3152 = vpop.xlane.xlu0 %3151
        %v3153 = vsel %vm1068, %v2944, 0.0
        %3154 = vadd.xlane.f32.xlu0 %v3153
        %v3155 = vpop.xlane.xlu0 %3154
        %v3156 = vsel %vm1068, %v2946, 0.0
        %3157 = vadd.xlane.f32.xlu0 %v3156
        %v3158 = vpop.xlane.xlu0 %3157
        %v3159 = vsel %vm1068, %v2948, 0.0
        %3160 = vadd.xlane.f32.xlu0 %v3159
        %v3161 = vpop.xlane.xlu0 %3160
        %v3162 = vsel %vm1068, %v2950, 0.0
        %3163 = vadd.xlane.f32.xlu0 %v3162
        %v3164 = vpop.xlane.xlu0 %3163
        %v3165 = vsel %vm1068, %v2952, 0.0
        %3166 = vadd.xlane.f32.xlu0 %v3165
        %v3167 = vpop.xlane.xlu0 %3166
        %v3168 = vsel %vm1068, %v2954, 0.0
        %3169 = vadd.xlane.f32.xlu0 %v3168
        %v3170 = vpop.xlane.xlu0 %3169
        %v3171 = vsel %vm1068, %v2956, 0.0
        %3172 = vadd.xlane.f32.xlu0 %v3171
        %v3173 = vpop.xlane.xlu0 %3172
        %v3174 = vsel %vm1068, %v2958, 0.0
        %3175 = vadd.xlane.f32.xlu0 %v3174
        %v3176 = vpop.xlane.xlu0 %3175
        %v3177 = vsel %vm1068, %v2960, 0.0
        %3178 = vadd.xlane.f32.xlu0 %v3177
        %v3179 = vpop.xlane.xlu0 %3178
        %v3180 = vsel %vm1068, %v2962, 0.0
        %3181 = vadd.xlane.f32.xlu0 %v3180
        %v3182 = vpop.xlane.xlu0 %3181
        %v3183 = vsel %vm1068, %v2964, 0.0
        %3184 = vadd.xlane.f32.xlu0 %v3183
        %v3185 = vpop.xlane.xlu0 %3184
        %v3186 = vsel %vm1068, %v2966, 0.0
        %3187 = vadd.xlane.f32.xlu0 %v3186
        %v3188 = vpop.xlane.xlu0 %3187
        %v3189 = vsel %vm1068, %v2968, 0.0
        %3190 = vadd.xlane.f32.xlu0 %v3189
        %v3191 = vpop.xlane.xlu0 %3190
        %v3192 = vsel %vm1068, %v2970, 0.0
        %3193 = vadd.xlane.f32.xlu0 %v3192
        %v3194 = vpop.xlane.xlu0 %3193
        %v3195 = vsel %vm1068, %v2972, 0.0
        %3196 = vadd.xlane.f32.xlu0 %v3195
        %v3197 = vpop.xlane.xlu0 %3196
        %v3198 = vsel %vm1068, %v2974, 0.0
        %3199 = vadd.xlane.f32.xlu0 %v3198
        %v3200 = vpop.xlane.xlu0 %3199
        %v3201 = vsel %vm1068, %v2976, 0.0
        %3202 = vadd.xlane.f32.xlu0 %v3201
        %v3203 = vpop.xlane.xlu0 %3202
        %v3204 = vsel %vm1068, %v2978, 0.0
        %3205 = vadd.xlane.f32.xlu0 %v3204
        %v3206 = vpop.xlane.xlu0 %3205
        %v3207 = vsel %vm1068, %v2980, 0.0
        %3208 = vadd.xlane.f32.xlu0 %v3207
        %v3209 = vpop.xlane.xlu0 %3208
        %v3210 = vsel %vm1068, %v2982, 0.0
        %3211 = vadd.xlane.f32.xlu0 %v3210
        %v3212 = vpop.xlane.xlu0 %3211
        %v3213 = vsel %vm1068, %v2984, 0.0
        %3214 = vadd.xlane.f32.xlu0 %v3213
        %v3215 = vpop.xlane.xlu0 %3214
        %v3216 = vsel %vm1068, %v2986, 0.0
        %3217 = vadd.xlane.f32.xlu0 %v3216
        %v3218 = vpop.xlane.xlu0 %3217
        %v3219 = vsel %vm1068, %v2988, 0.0
        %3220 = vadd.xlane.f32.xlu0 %v3219
        %v3221 = vpop.xlane.xlu0 %3220
        %v3222 = vsel %vm1068, %v2990, 0.0
        %3223 = vadd.xlane.f32.xlu0 %v3222
        %v3224 = vpop.xlane.xlu0 %3223
        %v3225 = vsel %vm1068, %v2992, 0.0
        %3226 = vadd.xlane.f32.xlu0 %v3225
        %v3227 = vpop.xlane.xlu0 %3226
        %v3228 = vsel %vm1068, %v2994, 0.0
        %3229 = vadd.xlane.f32.xlu0 %v3228
        %v3230 = vpop.xlane.xlu0 %3229
        %v3231 = vsel %vm1068, %v2996, 0.0
        %3232 = vadd.xlane.f32.xlu0 %v3231
        %v3233 = vpop.xlane.xlu0 %3232
        %v3234 = vsel %vm1068, %v2998, 0.0
        %3235 = vadd.xlane.f32.xlu0 %v3234
        %v3236 = vpop.xlane.xlu0 %3235
        %v3237 = vsel %vm1068, %v3000, 0.0
        %3238 = vadd.xlane.f32.xlu0 %v3237
        %v3239 = vpop.xlane.xlu0 %3238
        %v3240 = vsel %vm1068, %v3002, 0.0
        %3241 = vadd.xlane.f32.xlu0 %v3240
        %v3242 = vpop.xlane.xlu0 %3241
        %v3243 = vsel %vm1068, %v3004, 0.0
        %3244 = vadd.xlane.f32.xlu0 %v3243
        %v3245 = vpop.xlane.xlu0 %3244
        %v3246 = vsel %vm1068, %v3006, 0.0
        %3247 = vadd.xlane.f32.xlu0 %v3246
        %v3248 = vpop.xlane.xlu0 %3247
        %v3249 = vsel %vm1068, %v3008, 0.0
        %3250 = vadd.xlane.f32.xlu0 %v3249
        %v3251 = vpop.xlane.xlu0 %3250
        %v3252 = vsel %vm1068, %v3010, 0.0
        %3253 = vadd.xlane.f32.xlu0 %v3252
        %v3254 = vpop.xlane.xlu0 %3253
        %v3255 = vsel %vm1068, %v3012, 0.0
        %3256 = vadd.xlane.f32.xlu0 %v3255
        %v3257 = vpop.xlane.xlu0 %3256
        %v3258 = vsel %vm1068, %v3014, 0.0
        %3259 = vadd.xlane.f32.xlu0 %v3258
        %v3260 = vpop.xlane.xlu0 %3259
        %v3261 = vsel %vm1068, %v3016, 0.0
        %3262 = vadd.xlane.f32.xlu0 %v3261
        %v3263 = vpop.xlane.xlu0 %3262
        %v3264 = vsel %vm1068, %v3018, 0.0
        %3265 = vadd.xlane.f32.xlu0 %v3264
        %v3266 = vpop.xlane.xlu0 %3265
        %v3267 = vsel %vm1068, %v3020, 0.0
        %3268 = vadd.xlane.f32.xlu0 %v3267
        %v3269 = vpop.xlane.xlu0 %3268
        %v3270 = vsel %vm1068, %v3022, 0.0
        %3271 = vadd.xlane.f32.xlu0 %v3270
        %v3272 = vpop.xlane.xlu0 %3271
        %v3273 = vsel %vm1068, %v3024, 0.0
        %3274 = vadd.xlane.f32.xlu0 %v3273
        %v3275 = vpop.xlane.xlu0 %3274
        %v3276 = vsel %vm1068, %v3026, 0.0
        %3277 = vadd.xlane.f32.xlu0 %v3276
        %v3278 = vpop.xlane.xlu0 %3277
        %v3279 = vsel %vm1068, %v3028, 0.0
        %3280 = vadd.xlane.f32.xlu0 %v3279
        %v3281 = vpop.xlane.xlu0 %3280
        %v3282 = vsel %vm1068, %v3030, 0.0
        %3283 = vadd.xlane.f32.xlu0 %v3282
        %v3284 = vpop.xlane.xlu0 %3283
        %v3285 = vsel %vm1068, %v3032, 0.0
        %3286 = vadd.xlane.f32.xlu0 %v3285
        %v3287 = vpop.xlane.xlu0 %3286
        %v3288 = vsel %vm1068, %v3034, 0.0
        %3289 = vadd.xlane.f32.xlu0 %v3288
        %v3290 = vpop.xlane.xlu0 %3289
        %v3291 = vmul.f32 %v2653, 0.0625
        %v3292 = vmul.f32 %v2656, 0.0625
        %v3293 = vmul.f32 %v2659, 0.0625
        %v3294 = vmul.f32 %v2662, 0.0625
        %v3295 = vmul.f32 %v2665, 0.0625
        %v3296 = vmul.f32 %v2668, 0.0625
        %v3297 = vmul.f32 %v2671, 0.0625
        %v3298 = vmul.f32 %v2674, 0.0625
        %v3299 = vmul.f32 %v2677, 0.0625
        %v3300 = vmul.f32 %v2680, 0.0625
        %v3301 = vmul.f32 %v2683, 0.0625
        %v3302 = vmul.f32 %v2686, 0.0625
        %v3303 = vmul.f32 %v2689, 0.0625
        %v3304 = vmul.f32 %v2692, 0.0625
        %v3305 = vmul.f32 %v2695, 0.0625
        %v3306 = vmul.f32 %v2698, 0.0625
        %v3307 = vmul.f32 %v2701, 0.0625
        %v3308 = vmul.f32 %v2704, 0.0625
        %v3309 = vmul.f32 %v2707, 0.0625
        %v3310 = vmul.f32 %v2710, 0.0625
        %v3311 = vmul.f32 %v2713, 0.0625
        %v3312 = vmul.f32 %v2716, 0.0625
        %v3313 = vmul.f32 %v2719, 0.0625
        %v3314 = vmul.f32 %v2722, 0.0625
        %v3315 = vmul.f32 %v2725, 0.0625
        %v3316 = vmul.f32 %v2728, 0.0625
        %v3317 = vmul.f32 %v2731, 0.0625
        %v3318 = vmul.f32 %v2734, 0.0625
        %v3319 = vmul.f32 %v2737, 0.0625
        %v3320 = vmul.f32 %v2740, 0.0625
        %v3321 = vmul.f32 %v2743, 0.0625
        %v3322 = vmul.f32 %v2746, 0.0625
        %v3323 = vmul.f32 %v2749, 0.0625
        %v3324 = vmul.f32 %v2752, 0.0625
        %v3325 = vmul.f32 %v2755, 0.0625
        %v3326 = vmul.f32 %v2758, 0.0625
        %v3327 = vmul.f32 %v2761, 0.0625
        %v3328 = vmul.f32 %v2764, 0.0625
        %v3329 = vmul.f32 %v2767, 0.0625
        %v3330 = vmul.f32 %v2770, 0.0625
        %v3331 = vmul.f32 %v2773, 0.0625
        %v3332 = vmul.f32 %v2776, 0.0625
        %v3333 = vmul.f32 %v2779, 0.0625
        %v3334 = vmul.f32 %v2782, 0.0625
        %v3335 = vmul.f32 %v2785, 0.0625
        %v3336 = vmul.f32 %v2788, 0.0625
        %v3337 = vmul.f32 %v2791, 0.0625
        %v3338 = vmul.f32 %v2794, 0.0625
        %v3339 = vmul.f32 %v2797, 0.0625
        %v3340 = vmul.f32 %v2800, 0.0625
        %v3341 = vmul.f32 %v2803, 0.0625
        %v3342 = vmul.f32 %v2806, 0.0625
        %v3343 = vmul.f32 %v2809, 0.0625
        %v3344 = vmul.f32 %v2812, 0.0625
        %v3345 = vmul.f32 %v2815, 0.0625
        %v3346 = vmul.f32 %v2818, 0.0625
        %v3347 = vmul.f32 %v2821, 0.0625
        %v3348 = vmul.f32 %v2824, 0.0625
        %v3349 = vmul.f32 %v2827, 0.0625
        %v3350 = vmul.f32 %v2830, 0.0625
        %v3351 = vmul.f32 %v2833, 0.0625
        %v3352 = vmul.f32 %v2836, 0.0625
        %v3353 = vmul.f32 %v2839, 0.0625
        %v3354 = vmul.f32 %v2842, 0.0625
        %v3355 = vmul.f32 %v3101, 0.0625
        %v3356 = vmul.f32 %v3104, 0.0625
        %v3357 = vmul.f32 %v3107, 0.0625
        %v3358 = vmul.f32 %v3110, 0.0625
        %v3359 = vmul.f32 %v3113, 0.0625
        %v3360 = vmul.f32 %v3116, 0.0625
        %v3361 = vmul.f32 %v3119, 0.0625
        %v3362 = vmul.f32 %v3122, 0.0625
        %v3363 = vmul.f32 %v3125, 0.0625
        %v3364 = vmul.f32 %v3128, 0.0625
        %v3365 = vmul.f32 %v3131, 0.0625
        %v3366 = vmul.f32 %v3134, 0.0625
        %v3367 = vmul.f32 %v3137, 0.0625
        %v3368 = vmul.f32 %v3140, 0.0625
        %v3369 = vmul.f32 %v3143, 0.0625
        %v3370 = vmul.f32 %v3146, 0.0625
        %v3371 = vmul.f32 %v3149, 0.0625
        %v3372 = vmul.f32 %v3152, 0.0625
        %v3373 = vmul.f32 %v3155, 0.0625
        %v3374 = vmul.f32 %v3158, 0.0625
        %v3375 = vmul.f32 %v3161, 0.0625
        %v3376 = vmul.f32 %v3164, 0.0625
        %v3377 = vmul.f32 %v3167, 0.0625
        %v3378 = vmul.f32 %v3170, 0.0625
        %v3379 = vmul.f32 %v3173, 0.0625
        %v3380 = vmul.f32 %v3176, 0.0625
        %v3381 = vmul.f32 %v3179, 0.0625
        %v3382 = vmul.f32 %v3182, 0.0625
        %v3383 = vmul.f32 %v3185, 0.0625
        %v3384 = vmul.f32 %v3188, 0.0625
        %v3385 = vmul.f32 %v3191, 0.0625
        %v3386 = vmul.f32 %v3194, 0.0625
        %v3387 = vmul.f32 %v3197, 0.0625
        %v3388 = vmul.f32 %v3200, 0.0625
        %v3389 = vmul.f32 %v3203, 0.0625
        %v3390 = vmul.f32 %v3206, 0.0625
        %v3391 = vmul.f32 %v3209, 0.0625
        %v3392 = vmul.f32 %v3212, 0.0625
        %v3393 = vmul.f32 %v3215, 0.0625
        %v3394 = vmul.f32 %v3218, 0.0625
        %v3395 = vmul.f32 %v3221, 0.0625
        %v3396 = vmul.f32 %v3224, 0.0625
        %v3397 = vmul.f32 %v3227, 0.0625
        %v3398 = vmul.f32 %v3230, 0.0625
        %v3399 = vmul.f32 %v3233, 0.0625
        %v3400 = vmul.f32 %v3236, 0.0625
        %v3401 = vmul.f32 %v3239, 0.0625
        %v3402 = vmul.f32 %v3242, 0.0625
        %v3403 = vmul.f32 %v3245, 0.0625
        %v3404 = vmul.f32 %v3248, 0.0625
        %v3405 = vmul.f32 %v3251, 0.0625
        %v3406 = vmul.f32 %v3254, 0.0625
        %v3407 = vmul.f32 %v3257, 0.0625
        %v3408 = vmul.f32 %v3260, 0.0625
        %v3409 = vmul.f32 %v3263, 0.0625
        %v3410 = vmul.f32 %v3266, 0.0625
        %v3411 = vmul.f32 %v3269, 0.0625
        %v3412 = vmul.f32 %v3272, 0.0625
        %v3413 = vmul.f32 %v3275, 0.0625
        %v3414 = vmul.f32 %v3278, 0.0625
        %v3415 = vmul.f32 %v3281, 0.0625
        %v3416 = vmul.f32 %v3284, 0.0625
        %v3417 = vmul.f32 %v3287, 0.0625
        %v3418 = vmul.f32 %v3290, 0.0625
        %v3419 = vmul.f32 %v3291, %v3291
        %v3420 = vmul.f32 %v3292, %v3292
        %v3421 = vmul.f32 %v3293, %v3293
        %v3422 = vmul.f32 %v3294, %v3294
        %v3423 = vmul.f32 %v3295, %v3295
        %v3424 = vmul.f32 %v3296, %v3296
        %v3425 = vmul.f32 %v3297, %v3297
        %v3426 = vmul.f32 %v3298, %v3298
        %v3427 = vmul.f32 %v3299, %v3299
        %v3428 = vmul.f32 %v3300, %v3300
        %v3429 = vmul.f32 %v3301, %v3301
        %v3430 = vmul.f32 %v3302, %v3302
        %v3431 = vmul.f32 %v3303, %v3303
        %v3432 = vmul.f32 %v3304, %v3304
        %v3433 = vmul.f32 %v3305, %v3305
        %v3434 = vmul.f32 %v3306, %v3306
        %v3435 = vmul.f32 %v3307, %v3307
        %v3436 = vmul.f32 %v3308, %v3308
        %v3437 = vmul.f32 %v3309, %v3309
        %v3438 = vmul.f32 %v3310, %v3310
        %v3439 = vmul.f32 %v3311, %v3311
        %v3440 = vmul.f32 %v3312, %v3312
        %v3441 = vmul.f32 %v3313, %v3313
        %v3442 = vmul.f32 %v3314, %v3314
        %v3443 = vmul.f32 %v3315, %v3315
        %v3444 = vmul.f32 %v3316, %v3316
        %v3445 = vmul.f32 %v3317, %v3317
        %v3446 = vmul.f32 %v3318, %v3318
        %v3447 = vmul.f32 %v3319, %v3319
        %v3448 = vmul.f32 %v3320, %v3320
        %v3449 = vmul.f32 %v3321, %v3321
        %v3450 = vmul.f32 %v3322, %v3322
        %v3451 = vmul.f32 %v3323, %v3323
        %v3452 = vmul.f32 %v3324, %v3324
        %v3453 = vmul.f32 %v3325, %v3325
        %v3454 = vmul.f32 %v3326, %v3326
        %v3455 = vmul.f32 %v3327, %v3327
        %v3456 = vmul.f32 %v3328, %v3328
        %v3457 = vmul.f32 %v3329, %v3329
        %v3458 = vmul.f32 %v3330, %v3330
        %v3459 = vmul.f32 %v3331, %v3331
        %v3460 = vmul.f32 %v3332, %v3332
        %v3461 = vmul.f32 %v3333, %v3333
        %v3462 = vmul.f32 %v3334, %v3334
        %v3463 = vmul.f32 %v3335, %v3335
        %v3464 = vmul.f32 %v3336, %v3336
        %v3465 = vmul.f32 %v3337, %v3337
        %v3466 = vmul.f32 %v3338, %v3338
        %v3467 = vmul.f32 %v3339, %v3339
        %v3468 = vmul.f32 %v3340, %v3340
        %v3469 = vmul.f32 %v3341, %v3341
        %v3470 = vmul.f32 %v3342, %v3342
        %v3471 = vmul.f32 %v3343, %v3343
        %v3472 = vmul.f32 %v3344, %v3344
        %v3473 = vmul.f32 %v3345, %v3345
        %v3474 = vmul.f32 %v3346, %v3346
        %v3475 = vmul.f32 %v3347, %v3347
        %v3476 = vmul.f32 %v3348, %v3348
        %v3477 = vmul.f32 %v3349, %v3349
        %v3478 = vmul.f32 %v3350, %v3350
        %v3479 = vmul.f32 %v3351, %v3351
        %v3480 = vmul.f32 %v3352, %v3352
        %v3481 = vmul.f32 %v3353, %v3353
        %v3482 = vmul.f32 %v3354, %v3354
        %v3483 = vsub.f32 %v3355, %v3419
        %v3484 = vsub.f32 %v3356, %v3420
        %v3485 = vsub.f32 %v3357, %v3421
        %v3486 = vsub.f32 %v3358, %v3422
        %v3487 = vsub.f32 %v3359, %v3423
        %v3488 = vsub.f32 %v3360, %v3424
        %v3489 = vsub.f32 %v3361, %v3425
        %v3490 = vsub.f32 %v3362, %v3426
        %v3491 = vsub.f32 %v3363, %v3427
        %v3492 = vsub.f32 %v3364, %v3428
        %v3493 = vsub.f32 %v3365, %v3429
        %v3494 = vsub.f32 %v3366, %v3430
        %v3495 = vsub.f32 %v3367, %v3431
        %v3496 = vsub.f32 %v3368, %v3432
        %v3497 = vsub.f32 %v3369, %v3433
        %v3498 = vsub.f32 %v3370, %v3434
        %v3499 = vsub.f32 %v3371, %v3435
        %v3500 = vsub.f32 %v3372, %v3436
        %v3501 = vsub.f32 %v3373, %v3437
        %v3502 = vsub.f32 %v3374, %v3438
        %v3503 = vsub.f32 %v3375, %v3439
        %v3504 = vsub.f32 %v3376, %v3440
        %v3505 = vsub.f32 %v3377, %v3441
        %v3506 = vsub.f32 %v3378, %v3442
        %v3507 = vsub.f32 %v3379, %v3443
        %v3508 = vsub.f32 %v3380, %v3444
        %v3509 = vsub.f32 %v3381, %v3445
        %v3510 = vsub.f32 %v3382, %v3446
        %v3511 = vsub.f32 %v3383, %v3447
        %v3512 = vsub.f32 %v3384, %v3448
        %v3513 = vsub.f32 %v3385, %v3449
        %v3514 = vsub.f32 %v3386, %v3450
        %v3515 = vsub.f32 %v3387, %v3451
        %v3516 = vsub.f32 %v3388, %v3452
        %v3517 = vsub.f32 %v3389, %v3453
        %v3518 = vsub.f32 %v3390, %v3454
        %v3519 = vsub.f32 %v3391, %v3455
        %v3520 = vsub.f32 %v3392, %v3456
        %v3521 = vsub.f32 %v3393, %v3457
        %v3522 = vsub.f32 %v3394, %v3458
        %v3523 = vsub.f32 %v3395, %v3459
        %v3524 = vsub.f32 %v3396, %v3460
        %v3525 = vsub.f32 %v3397, %v3461
        %v3526 = vsub.f32 %v3398, %v3462
        %v3527 = vsub.f32 %v3399, %v3463
        %v3528 = vsub.f32 %v3400, %v3464
        %v3529 = vsub.f32 %v3401, %v3465
        %v3530 = vsub.f32 %v3402, %v3466
        %v3531 = vsub.f32 %v3403, %v3467
        %v3532 = vsub.f32 %v3404, %v3468
        %v3533 = vsub.f32 %v3405, %v3469
        %v3534 = vsub.f32 %v3406, %v3470
        %v3535 = vsub.f32 %v3407, %v3471
        %v3536 = vsub.f32 %v3408, %v3472
        %v3537 = vsub.f32 %v3409, %v3473
        %v3538 = vsub.f32 %v3410, %v3474
        %v3539 = vsub.f32 %v3411, %v3475
        %v3540 = vsub.f32 %v3412, %v3476
        %v3541 = vsub.f32 %v3413, %v3477
        %v3542 = vsub.f32 %v3414, %v3478
        %v3543 = vsub.f32 %v3415, %v3479
        %v3544 = vsub.f32 %v3416, %v3480
        %v3545 = vsub.f32 %v3417, %v3481
        %v3546 = vsub.f32 %v3418, %v3482
        %v3547 = vmax.f32 %v3483, 0.0
        %v3548 = vmax.f32 %v3484, 0.0
        %v3549 = vmax.f32 %v3485, 0.0
        %v3550 = vmax.f32 %v3486, 0.0
        %v3551 = vmax.f32 %v3487, 0.0
        %v3552 = vmax.f32 %v3488, 0.0
        %v3553 = vmax.f32 %v3489, 0.0
        %v3554 = vmax.f32 %v3490, 0.0
        %v3555 = vmax.f32 %v3491, 0.0
        %v3556 = vmax.f32 %v3492, 0.0
        %v3557 = vmax.f32 %v3493, 0.0
        %v3558 = vmax.f32 %v3494, 0.0
        %v3559 = vmax.f32 %v3495, 0.0
        %v3560 = vmax.f32 %v3496, 0.0
        %v3561 = vmax.f32 %v3497, 0.0
        %v3562 = vmax.f32 %v3498, 0.0
        %v3563 = vmax.f32 %v3499, 0.0
        %v3564 = vmax.f32 %v3500, 0.0
        %v3565 = vmax.f32 %v3501, 0.0
        %v3566 = vmax.f32 %v3502, 0.0
        %v3567 = vmax.f32 %v3503, 0.0
        %v3568 = vmax.f32 %v3504, 0.0
        %v3569 = vmax.f32 %v3505, 0.0
        %v3570 = vmax.f32 %v3506, 0.0
        %v3571 = vmax.f32 %v3507, 0.0
        %v3572 = vmax.f32 %v3508, 0.0
        %v3573 = vmax.f32 %v3509, 0.0
        %v3574 = vmax.f32 %v3510, 0.0
        %v3575 = vmax.f32 %v3511, 0.0
        %v3576 = vmax.f32 %v3512, 0.0
        %v3577 = vmax.f32 %v3513, 0.0
        %v3578 = vmax.f32 %v3514, 0.0
        %v3579 = vmax.f32 %v3515, 0.0
        %v3580 = vmax.f32 %v3516, 0.0
        %v3581 = vmax.f32 %v3517, 0.0
        %v3582 = vmax.f32 %v3518, 0.0
        %v3583 = vmax.f32 %v3519, 0.0
        %v3584 = vmax.f32 %v3520, 0.0
        %v3585 = vmax.f32 %v3521, 0.0
        %v3586 = vmax.f32 %v3522, 0.0
        %v3587 = vmax.f32 %v3523, 0.0
        %v3588 = vmax.f32 %v3524, 0.0
        %v3589 = vmax.f32 %v3525, 0.0
        %v3590 = vmax.f32 %v3526, 0.0
        %v3591 = vmax.f32 %v3527, 0.0
        %v3592 = vmax.f32 %v3528, 0.0
        %v3593 = vmax.f32 %v3529, 0.0
        %v3594 = vmax.f32 %v3530, 0.0
        %v3595 = vmax.f32 %v3531, 0.0
        %v3596 = vmax.f32 %v3532, 0.0
        %v3597 = vmax.f32 %v3533, 0.0
        %v3598 = vmax.f32 %v3534, 0.0
        %v3599 = vmax.f32 %v3535, 0.0
        %v3600 = vmax.f32 %v3536, 0.0
        %v3601 = vmax.f32 %v3537, 0.0
        %v3602 = vmax.f32 %v3538, 0.0
        %v3603 = vmax.f32 %v3539, 0.0
        %v3604 = vmax.f32 %v3540, 0.0
        %v3605 = vmax.f32 %v3541, 0.0
        %v3606 = vmax.f32 %v3542, 0.0
        %v3607 = vmax.f32 %v3543, 0.0
        %v3608 = vmax.f32 %v3544, 0.0
        %v3609 = vmax.f32 %v3545, 0.0
        %v3610 = vmax.f32 %v3546, 0.0
        %v3611 = vsub.f32 %v1163, %v3291
        %v3612 = vsub.f32 %v1164, %v3292
        %v3613 = vsub.f32 %v1197, %v3293
        %v3614 = vsub.f32 %v1198, %v3294
        %v3615 = vsub.f32 %v1165, %v3295
        %v3616 = vsub.f32 %v1166, %v3296
        %v3617 = vsub.f32 %v1199, %v3297
        %v3618 = vsub.f32 %v1200, %v3298
        %v3619 = vsub.f32 %v1167, %v3299
        %v3620 = vsub.f32 %v1168, %v3300
        %v3621 = vsub.f32 %v1201, %v3301
        %v3622 = vsub.f32 %v1202, %v3302
        %v3623 = vsub.f32 %v1169, %v3303
        %v3624 = vsub.f32 %v1170, %v3304
        %v3625 = vsub.f32 %v1203, %v3305
        %v3626 = vsub.f32 %v1204, %v3306
        %v3627 = vsub.f32 %v1171, %v3307
        %v3628 = vsub.f32 %v1172, %v3308
        %v3629 = vsub.f32 %v1205, %v3309
        %v3630 = vsub.f32 %v1206, %v3310
        %v3631 = vsub.f32 %v1173, %v3311
        %v3632 = vsub.f32 %v1174, %v3312
        %v3633 = vsub.f32 %v1207, %v3313
        %v3634 = vsub.f32 %v1208, %v3314
        %v3635 = vsub.f32 %v1175, %v3315
        %v3636 = vsub.f32 %v1176, %v3316
        %v3637 = vsub.f32 %v1209, %v3317
        %v3638 = vsub.f32 %v1210, %v3318
        %v3639 = vsub.f32 %v1177, %v3319
        %v3640 = vsub.f32 %v1178, %v3320
        %v3641 = vsub.f32 %v1211, %v3321
        %v3642 = vsub.f32 %v1212, %v3322
        %v3643 = vsub.f32 %v1179, %v3323
        %v3644 = vsub.f32 %v1180, %v3324
        %v3645 = vsub.f32 %v1213, %v3325
        %v3646 = vsub.f32 %v1214, %v3326
        %v3647 = vsub.f32 %v1181, %v3327
        %v3648 = vsub.f32 %v1182, %v3328
        %v3649 = vsub.f32 %v1215, %v3329
        %v3650 = vsub.f32 %v1216, %v3330
        %v3651 = vsub.f32 %v1183, %v3331
        %v3652 = vsub.f32 %v1184, %v3332
        %v3653 = vsub.f32 %v1217, %v3333
        %v3654 = vsub.f32 %v1218, %v3334
        %v3655 = vsub.f32 %v1185, %v3335
        %v3656 = vsub.f32 %v1186, %v3336
        %v3657 = vsub.f32 %v1219, %v3337
        %v3658 = vsub.f32 %v1220, %v3338
        %v3659 = vsub.f32 %v1187, %v3339
        %v3660 = vsub.f32 %v1188, %v3340
        %v3661 = vsub.f32 %v1221, %v3341
        %v3662 = vsub.f32 %v1222, %v3342
        %v3663 = vsub.f32 %v1189, %v3343
        %v3664 = vsub.f32 %v1190, %v3344
        %v3665 = vsub.f32 %v1223, %v3345
        %v3666 = vsub.f32 %v1224, %v3346
        %v3667 = vsub.f32 %v1191, %v3347
        %v3668 = vsub.f32 %v1192, %v3348
        %v3669 = vsub.f32 %v1225, %v3349
        %v3670 = vsub.f32 %v1226, %v3350
        %v3671 = vsub.f32 %v1193, %v3351
        %v3672 = vsub.f32 %v1194, %v3352
        %v3673 = vsub.f32 %v1227, %v3353
        %v3674 = vsub.f32 %v1228, %v3354
        %v3675 = vadd.f32 %v3547, 1e-05
        %v3676 = vadd.f32 %v3548, 1e-05
        %v3677 = vadd.f32 %v3549, 1e-05
        %v3678 = vadd.f32 %v3550, 1e-05
        %v3679 = vadd.f32 %v3551, 1e-05
        %v3680 = vadd.f32 %v3552, 1e-05
        %v3681 = vadd.f32 %v3553, 1e-05
        %v3682 = vadd.f32 %v3554, 1e-05
        %v3683 = vadd.f32 %v3555, 1e-05
        %v3684 = vadd.f32 %v3556, 1e-05
        %v3685 = vadd.f32 %v3557, 1e-05
        %v3686 = vadd.f32 %v3558, 1e-05
        %v3687 = vadd.f32 %v3559, 1e-05
        %v3688 = vadd.f32 %v3560, 1e-05
        %v3689 = vadd.f32 %v3561, 1e-05
        %v3690 = vadd.f32 %v3562, 1e-05
        %v3691 = vadd.f32 %v3563, 1e-05
        %v3692 = vadd.f32 %v3564, 1e-05
        %v3693 = vadd.f32 %v3565, 1e-05
        %v3694 = vadd.f32 %v3566, 1e-05
        %v3695 = vadd.f32 %v3567, 1e-05
        %v3696 = vadd.f32 %v3568, 1e-05
        %v3697 = vadd.f32 %v3569, 1e-05
        %v3698 = vadd.f32 %v3570, 1e-05
        %v3699 = vadd.f32 %v3571, 1e-05
        %v3700 = vadd.f32 %v3572, 1e-05
        %v3701 = vadd.f32 %v3573, 1e-05
        %v3702 = vadd.f32 %v3574, 1e-05
        %v3703 = vadd.f32 %v3575, 1e-05
        %v3704 = vadd.f32 %v3576, 1e-05
        %v3705 = vadd.f32 %v3577, 1e-05
        %v3706 = vadd.f32 %v3578, 1e-05
        %v3707 = vadd.f32 %v3579, 1e-05
        %v3708 = vadd.f32 %v3580, 1e-05
        %v3709 = vadd.f32 %v3581, 1e-05
        %v3710 = vadd.f32 %v3582, 1e-05
        %v3711 = vadd.f32 %v3583, 1e-05
        %v3712 = vadd.f32 %v3584, 1e-05
        %v3713 = vadd.f32 %v3585, 1e-05
        %v3714 = vadd.f32 %v3586, 1e-05
        %v3715 = vadd.f32 %v3587, 1e-05
        %v3716 = vadd.f32 %v3588, 1e-05
        %v3717 = vadd.f32 %v3589, 1e-05
        %v3718 = vadd.f32 %v3590, 1e-05
        %v3719 = vadd.f32 %v3591, 1e-05
        %v3720 = vadd.f32 %v3592, 1e-05
        %v3721 = vadd.f32 %v3593, 1e-05
        %v3722 = vadd.f32 %v3594, 1e-05
        %v3723 = vadd.f32 %v3595, 1e-05
        %v3724 = vadd.f32 %v3596, 1e-05
        %v3725 = vadd.f32 %v3597, 1e-05
        %v3726 = vadd.f32 %v3598, 1e-05
        %v3727 = vadd.f32 %v3599, 1e-05
        %v3728 = vadd.f32 %v3600, 1e-05
        %v3729 = vadd.f32 %v3601, 1e-05
        %v3730 = vadd.f32 %v3602, 1e-05
        %v3731 = vadd.f32 %v3603, 1e-05
        %v3732 = vadd.f32 %v3604, 1e-05
        %v3733 = vadd.f32 %v3605, 1e-05
        %v3734 = vadd.f32 %v3606, 1e-05
        %v3735 = vadd.f32 %v3607, 1e-05
        %v3736 = vadd.f32 %v3608, 1e-05
        %v3737 = vadd.f32 %v3609, 1e-05
        %v3738 = vadd.f32 %v3610, 1e-05
        %v3739 = vrsqrt.pop %v3675
        %v3740 = vrsqrt.pop %v3676
        %v3741 = vrsqrt.pop %v3677
        %v3742 = vrsqrt.pop %v3678
        %v3743 = vrsqrt.pop %v3679
        %v3744 = vrsqrt.pop %v3680
        %v3745 = vrsqrt.pop %v3681
        %v3746 = vrsqrt.pop %v3682
        %v3747 = vrsqrt.pop %v3683
        %v3748 = vrsqrt.pop %v3684
        %v3749 = vrsqrt.pop %v3685
        %v3750 = vrsqrt.pop %v3686
        %v3751 = vrsqrt.pop %v3687
        %v3752 = vrsqrt.pop %v3688
        %v3753 = vrsqrt.pop %v3689
        %v3754 = vrsqrt.pop %v3690
        %v3755 = vrsqrt.pop %v3691
        %v3756 = vrsqrt.pop %v3692
        %v3757 = vrsqrt.pop %v3693
        %v3758 = vrsqrt.pop %v3694
        %v3759 = vrsqrt.pop %v3695
        %v3760 = vrsqrt.pop %v3696
        %v3761 = vrsqrt.pop %v3697
        %v3762 = vrsqrt.pop %v3698
        %v3763 = vrsqrt.pop %v3699
        %v3764 = vrsqrt.pop %v3700
        %v3765 = vrsqrt.pop %v3701
        %v3766 = vrsqrt.pop %v3702
        %v3767 = vrsqrt.pop %v3703
        %v3768 = vrsqrt.pop %v3704
        %v3769 = vrsqrt.pop %v3705
        %v3770 = vrsqrt.pop %v3706
        %v3771 = vrsqrt.pop %v3707
        %v3772 = vrsqrt.pop %v3708
        %v3773 = vrsqrt.pop %v3709
        %v3774 = vrsqrt.pop %v3710
        %v3775 = vrsqrt.pop %v3711
        %v3776 = vrsqrt.pop %v3712
        %v3777 = vrsqrt.pop %v3713
        %v3778 = vrsqrt.pop %v3714
        %v3779 = vrsqrt.pop %v3715
        %v3780 = vrsqrt.pop %v3716
        %v3781 = vrsqrt.pop %v3717
        %v3782 = vrsqrt.pop %v3718
        %v3783 = vrsqrt.pop %v3719
        %v3784 = vrsqrt.pop %v3720
        %v3785 = vrsqrt.pop %v3721
        %v3786 = vrsqrt.pop %v3722
        %v3787 = vrsqrt.pop %v3723
        %v3788 = vrsqrt.pop %v3724
        %v3789 = vrsqrt.pop %v3725
        %v3790 = vrsqrt.pop %v3726
        %v3791 = vrsqrt.pop %v3727
        %v3792 = vrsqrt.pop %v3728
        %v3793 = vrsqrt.pop %v3729
        %v3794 = vrsqrt.pop %v3730
        %v3795 = vrsqrt.pop %v3731
        %v3796 = vrsqrt.pop %v3732
        %v3797 = vrsqrt.pop %v3733
        %v3798 = vrsqrt.pop %v3734
        %v3799 = vrsqrt.pop %v3735
        %v3800 = vrsqrt.pop %v3736
        %v3801 = vrsqrt.pop %v3737
        %v3802 = vrsqrt.pop %v3738
        %v3803 = vmul.f32 %v3611, %v3739
        %v3804 = vmul.f32 %v3612, %v3740
        %v3805 = vmul.f32 %v3613, %v3741
        %v3806 = vmul.f32 %v3614, %v3742
        %v3807 = vmul.f32 %v3615, %v3743
        %v3808 = vmul.f32 %v3616, %v3744
        %v3809 = vmul.f32 %v3617, %v3745
        %v3810 = vmul.f32 %v3618, %v3746
        %v3811 = vmul.f32 %v3619, %v3747
        %v3812 = vmul.f32 %v3620, %v3748
        %v3813 = vmul.f32 %v3621, %v3749
        %v3814 = vmul.f32 %v3622, %v3750
        %v3815 = vmul.f32 %v3623, %v3751
        %v3816 = vmul.f32 %v3624, %v3752
        %v3817 = vmul.f32 %v3625, %v3753
        %v3818 = vmul.f32 %v3626, %v3754
        %v3819 = vmul.f32 %v3627, %v3755
        %v3820 = vmul.f32 %v3628, %v3756
        %v3821 = vmul.f32 %v3629, %v3757
        %v3822 = vmul.f32 %v3630, %v3758
        %v3823 = vmul.f32 %v3631, %v3759
        %v3824 = vmul.f32 %v3632, %v3760
        %v3825 = vmul.f32 %v3633, %v3761
        %v3826 = vmul.f32 %v3634, %v3762
        %v3827 = vmul.f32 %v3635, %v3763
        %v3828 = vmul.f32 %v3636, %v3764
        %v3829 = vmul.f32 %v3637, %v3765
        %v3830 = vmul.f32 %v3638, %v3766
        %v3831 = vmul.f32 %v3639, %v3767
        %v3832 = vmul.f32 %v3640, %v3768
        %v3833 = vmul.f32 %v3641, %v3769
        %v3834 = vmul.f32 %v3642, %v3770
        %v3835 = vmul.f32 %v3643, %v3771
        %v3836 = vmul.f32 %v3644, %v3772
        %v3837 = vmul.f32 %v3645, %v3773
        %v3838 = vmul.f32 %v3646, %v3774
        %v3839 = vmul.f32 %v3647, %v3775
        %v3840 = vmul.f32 %v3648, %v3776
        %v3841 = vmul.f32 %v3649, %v3777
        %v3842 = vmul.f32 %v3650, %v3778
        %v3843 = vmul.f32 %v3651, %v3779
        %v3844 = vmul.f32 %v3652, %v3780
        %v3845 = vmul.f32 %v3653, %v3781
        %v3846 = vmul.f32 %v3654, %v3782
        %v3847 = vmul.f32 %v3655, %v3783
        %v3848 = vmul.f32 %v3656, %v3784
        %v3849 = vmul.f32 %v3657, %v3785
        %v3850 = vmul.f32 %v3658, %v3786
        %v3851 = vmul.f32 %v3659, %v3787
        %v3852 = vmul.f32 %v3660, %v3788
        %v3853 = vmul.f32 %v3661, %v3789
        %v3854 = vmul.f32 %v3662, %v3790
        %v3855 = vmul.f32 %v3663, %v3791
        %v3856 = vmul.f32 %v3664, %v3792
        %v3857 = vmul.f32 %v3665, %v3793
        %v3858 = vmul.f32 %v3666, %v3794
        %v3859 = vmul.f32 %v3667, %v3795
        %v3860 = vmul.f32 %v3668, %v3796
        %v3861 = vmul.f32 %v3669, %v3797
        %v3862 = vmul.f32 %v3670, %v3798
        %v3863 = vmul.f32 %v3671, %v3799
        %v3864 = vmul.f32 %v3672, %v3800
        %v3865 = vmul.f32 %v3673, %v3801
        %v3866 = vmul.f32 %v3674, %v3802
        %3867 = vrot.lane.b32.xlu0 %v2259, 16
        %v3868 = vpop.permute.xlu0 %3867
        %v3870 = vmul.f32 %v3803, %v3868
        %v3871 = vmul.f32 %v3804, %v3868
        %v3872 = vmul.f32 %v3805, %v3868
        %v3873 = vmul.f32 %v3806, %v3868
        %v3874 = vmul.f32 %v3807, %v3868
        %v3875 = vmul.f32 %v3808, %v3868
        %v3876 = vmul.f32 %v3809, %v3868
        %v3877 = vmul.f32 %v3810, %v3868
        %v3878 = vmul.f32 %v3811, %v3868
        %v3879 = vmul.f32 %v3812, %v3868
        %v3880 = vmul.f32 %v3813, %v3868
        %v3881 = vmul.f32 %v3814, %v3868
        %v3882 = vmul.f32 %v3815, %v3868
        %v3883 = vmul.f32 %v3816, %v3868
        %v3884 = vmul.f32 %v3817, %v3868
        %v3885 = vmul.f32 %v3818, %v3868
        %v3886 = vmul.f32 %v3819, %v3868
        %v3887 = vmul.f32 %v3820, %v3868
        %v3888 = vmul.f32 %v3821, %v3868
        %v3889 = vmul.f32 %v3822, %v3868
        %v3890 = vmul.f32 %v3823, %v3868
        %v3891 = vmul.f32 %v3824, %v3868
        %v3892 = vmul.f32 %v3825, %v3868
        %v3893 = vmul.f32 %v3826, %v3868
        %v3894 = vmul.f32 %v3827, %v3868
        %v3895 = vmul.f32 %v3828, %v3868
        %v3896 = vmul.f32 %v3829, %v3868
        %v3897 = vmul.f32 %v3830, %v3868
        %v3898 = vmul.f32 %v3831, %v3868
        %v3899 = vmul.f32 %v3832, %v3868
        %v3900 = vmul.f32 %v3833, %v3868
        %v3901 = vmul.f32 %v3834, %v3868
        %v3902 = vmul.f32 %v3835, %v3868
        %v3903 = vmul.f32 %v3836, %v3868
        %v3904 = vmul.f32 %v3837, %v3868
        %v3905 = vmul.f32 %v3838, %v3868
        %v3906 = vmul.f32 %v3839, %v3868
        %v3907 = vmul.f32 %v3840, %v3868
        %v3908 = vmul.f32 %v3841, %v3868
        %v3909 = vmul.f32 %v3842, %v3868
        %v3910 = vmul.f32 %v3843, %v3868
        %v3911 = vmul.f32 %v3844, %v3868
        %v3912 = vmul.f32 %v3845, %v3868
        %v3913 = vmul.f32 %v3846, %v3868
        %v3914 = vmul.f32 %v3847, %v3868
        %v3915 = vmul.f32 %v3848, %v3868
        %v3916 = vmul.f32 %v3849, %v3868
        %v3917 = vmul.f32 %v3850, %v3868
        %v3918 = vmul.f32 %v3851, %v3868
        %v3919 = vmul.f32 %v3852, %v3868
        %v3920 = vmul.f32 %v3853, %v3868
        %v3921 = vmul.f32 %v3854, %v3868
        %v3922 = vmul.f32 %v3855, %v3868
        %v3923 = vmul.f32 %v3856, %v3868
        %v3924 = vmul.f32 %v3857, %v3868
        %v3925 = vmul.f32 %v3858, %v3868
        %v3926 = vmul.f32 %v3859, %v3868
        %v3927 = vmul.f32 %v3860, %v3868
        %v3928 = vmul.f32 %v3861, %v3868
        %v3929 = vmul.f32 %v3862, %v3868
        %v3930 = vmul.f32 %v3863, %v3868
        %v3931 = vmul.f32 %v3864, %v3868
        %v3932 = vmul.f32 %v3865, %v3868
        %v3933 = vmul.f32 %v3866, %v3868
        %3934 = vrot.lane.b32.xlu0 %v2329, 16
        %v3935 = vpop.permute.xlu0 %3934
        %v3937 = vadd.f32 %v3870, %v3935
        %v3938 = vadd.f32 %v3871, %v3935
        %v3939 = vadd.f32 %v3872, %v3935
        %v3940 = vadd.f32 %v3873, %v3935
        %v3941 = vadd.f32 %v3874, %v3935
        %v3942 = vadd.f32 %v3875, %v3935
        %v3943 = vadd.f32 %v3876, %v3935
        %v3944 = vadd.f32 %v3877, %v3935
        %v3945 = vadd.f32 %v3878, %v3935
        %v3946 = vadd.f32 %v3879, %v3935
        %v3947 = vadd.f32 %v3880, %v3935
        %v3948 = vadd.f32 %v3881, %v3935
        %v3949 = vadd.f32 %v3882, %v3935
        %v3950 = vadd.f32 %v3883, %v3935
        %v3951 = vadd.f32 %v3884, %v3935
        %v3952 = vadd.f32 %v3885, %v3935
        %v3953 = vadd.f32 %v3886, %v3935
        %v3954 = vadd.f32 %v3887, %v3935
        %v3955 = vadd.f32 %v3888, %v3935
        %v3956 = vadd.f32 %v3889, %v3935
        %v3957 = vadd.f32 %v3890, %v3935
        %v3958 = vadd.f32 %v3891, %v3935
        %v3959 = vadd.f32 %v3892, %v3935
        %v3960 = vadd.f32 %v3893, %v3935
        %v3961 = vadd.f32 %v3894, %v3935
        %v3962 = vadd.f32 %v3895, %v3935
        %v3963 = vadd.f32 %v3896, %v3935
        %v3964 = vadd.f32 %v3897, %v3935
        %v3965 = vadd.f32 %v3898, %v3935
        %v3966 = vadd.f32 %v3899, %v3935
        %v3967 = vadd.f32 %v3900, %v3935
        %v3968 = vadd.f32 %v3901, %v3935
        %v3969 = vadd.f32 %v3902, %v3935
        %v3970 = vadd.f32 %v3903, %v3935
        %v3971 = vadd.f32 %v3904, %v3935
        %v3972 = vadd.f32 %v3905, %v3935
        %v3973 = vadd.f32 %v3906, %v3935
        %v3974 = vadd.f32 %v3907, %v3935
        %v3975 = vadd.f32 %v3908, %v3935
        %v3976 = vadd.f32 %v3909, %v3935
        %v3977 = vadd.f32 %v3910, %v3935
        %v3978 = vadd.f32 %v3911, %v3935
        %v3979 = vadd.f32 %v3912, %v3935
        %v3980 = vadd.f32 %v3913, %v3935
        %v3981 = vadd.f32 %v3914, %v3935
        %v3982 = vadd.f32 %v3915, %v3935
        %v3983 = vadd.f32 %v3916, %v3935
        %v3984 = vadd.f32 %v3917, %v3935
        %v3985 = vadd.f32 %v3918, %v3935
        %v3986 = vadd.f32 %v3919, %v3935
        %v3987 = vadd.f32 %v3920, %v3935
        %v3988 = vadd.f32 %v3921, %v3935
        %v3989 = vadd.f32 %v3922, %v3935
        %v3990 = vadd.f32 %v3923, %v3935
        %v3991 = vadd.f32 %v3924, %v3935
        %v3992 = vadd.f32 %v3925, %v3935
        %v3993 = vadd.f32 %v3926, %v3935
        %v3994 = vadd.f32 %v3927, %v3935
        %v3995 = vadd.f32 %v3928, %v3935
        %v3996 = vadd.f32 %v3929, %v3935
        %v3997 = vadd.f32 %v3930, %v3935
        %v3998 = vadd.f32 %v3931, %v3935
        %v3999 = vadd.f32 %v3932, %v3935
        %v4000 = vadd.f32 %v3933, %v3935
        %v4001 = vsel %vm1068, %v2331, %v3937
        %v4002 = vsel %vm1068, %v2332, %v3938
        %v4003 = vsel %vm1068, %v2333, %v3939
        %v4004 = vsel %vm1068, %v2334, %v3940
        %v4005 = vsel %vm1068, %v2335, %v3941
        %v4006 = vsel %vm1068, %v2336, %v3942
        %v4007 = vsel %vm1068, %v2337, %v3943
        %v4008 = vsel %vm1068, %v2338, %v3944
        %v4009 = vsel %vm1068, %v2339, %v3945
        %v4010 = vsel %vm1068, %v2340, %v3946
        %v4011 = vsel %vm1068, %v2341, %v3947
        %v4012 = vsel %vm1068, %v2342, %v3948
        %v4013 = vsel %vm1068, %v2343, %v3949
        %v4014 = vsel %vm1068, %v2344, %v3950
        %v4015 = vsel %vm1068, %v2345, %v3951
        %v4016 = vsel %vm1068, %v2346, %v3952
        %v4017 = vsel %vm1068, %v2347, %v3953
        %v4018 = vsel %vm1068, %v2348, %v3954
        %v4019 = vsel %vm1068, %v2349, %v3955
        %v4020 = vsel %vm1068, %v2350, %v3956
        %v4021 = vsel %vm1068, %v2351, %v3957
        %v4022 = vsel %vm1068, %v2352, %v3958
        %v4023 = vsel %vm1068, %v2353, %v3959
        %v4024 = vsel %vm1068, %v2354, %v3960
        %v4025 = vsel %vm1068, %v2355, %v3961
        %v4026 = vsel %vm1068, %v2356, %v3962
        %v4027 = vsel %vm1068, %v2357, %v3963
        %v4028 = vsel %vm1068, %v2358, %v3964
        %v4029 = vsel %vm1068, %v2359, %v3965
        %v4030 = vsel %vm1068, %v2360, %v3966
        %v4031 = vsel %vm1068, %v2361, %v3967
        %v4032 = vsel %vm1068, %v2362, %v3968
        %v4033 = vsel %vm1068, %v2363, %v3969
        %v4034 = vsel %vm1068, %v2364, %v3970
        %v4035 = vsel %vm1068, %v2365, %v3971
        %v4036 = vsel %vm1068, %v2366, %v3972
        %v4037 = vsel %vm1068, %v2367, %v3973
        %v4038 = vsel %vm1068, %v2368, %v3974
        %v4039 = vsel %vm1068, %v2369, %v3975
        %v4040 = vsel %vm1068, %v2370, %v3976
        %v4041 = vsel %vm1068, %v2371, %v3977
        %v4042 = vsel %vm1068, %v2372, %v3978
        %v4043 = vsel %vm1068, %v2373, %v3979
        %v4044 = vsel %vm1068, %v2374, %v3980
        %v4045 = vsel %vm1068, %v2375, %v3981
        %v4046 = vsel %vm1068, %v2376, %v3982
        %v4047 = vsel %vm1068, %v2377, %v3983
        %v4048 = vsel %vm1068, %v2378, %v3984
        %v4049 = vsel %vm1068, %v2379, %v3985
        %v4050 = vsel %vm1068, %v2380, %v3986
        %v4051 = vsel %vm1068, %v2381, %v3987
        %v4052 = vsel %vm1068, %v2382, %v3988
        %v4053 = vsel %vm1068, %v2383, %v3989
        %v4054 = vsel %vm1068, %v2384, %v3990
        %v4055 = vsel %vm1068, %v2385, %v3991
        %v4056 = vsel %vm1068, %v2386, %v3992
        %v4057 = vsel %vm1068, %v2387, %v3993
        %v4058 = vsel %vm1068, %v2388, %v3994
        %v4059 = vsel %vm1068, %v2389, %v3995
        %v4060 = vsel %vm1068, %v2390, %v3996
        %v4061 = vsel %vm1068, %v2391, %v3997
        %v4062 = vsel %vm1068, %v2392, %v3998
        %v4063 = vsel %vm1068, %v2393, %v3999
        %v4064 = vsel %vm1068, %v2394, %v4000
        %4065 = vst.msk [vmem:[%s190] sm:$0xff] %vm232, %v4001
        %4066 = vst.msk [vmem:[%s190 + $0x8] sm:$0xff] %vm232, %v4002
        %4067 = vst.msk [vmem:[%s190 + $0x10] sm:$0xff] %vm232, %v4003
        %4068 = vst.msk [vmem:[%s190 + $0x18] sm:$0xff] %vm232, %v4004
        %4069 = vst.msk [vmem:[%s190 + $0x20] sm:$0xff] %vm232, %v4005
        %4070 = vst.msk [vmem:[%s190 + $0x28] sm:$0xff] %vm232, %v4006
        %4071 = vst.msk [vmem:[%s190 + $0x30] sm:$0xff] %vm232, %v4007
        %4072 = vst.msk [vmem:[%s190 + $0x38] sm:$0xff] %vm232, %v4008
        %4073 = vst.msk [vmem:[%s190 + $0x40] sm:$0xff] %vm232, %v4009
        %4074 = vst.msk [vmem:[%s190 + $0x48] sm:$0xff] %vm232, %v4010
        %4075 = vst.msk [vmem:[%s190 + $0x50] sm:$0xff] %vm232, %v4011
        %4076 = vst.msk [vmem:[%s190 + $0x58] sm:$0xff] %vm232, %v4012
        %4077 = vst.msk [vmem:[%s190 + $0x60] sm:$0xff] %vm232, %v4013
        %4078 = vst.msk [vmem:[%s190 + $0x68] sm:$0xff] %vm232, %v4014
        %4079 = vst.msk [vmem:[%s190 + $0x70] sm:$0xff] %vm232, %v4015
        %4080 = vst.msk [vmem:[%s190 + $0x78] sm:$0xff] %vm232, %v4016
        %4081 = vst.msk [vmem:[%s190 + $0x80] sm:$0xff] %vm232, %v4017
        %4082 = vst.msk [vmem:[%s190 + $0x88] sm:$0xff] %vm232, %v4018
        %4083 = vst.msk [vmem:[%s190 + $0x90] sm:$0xff] %vm232, %v4019
        %4084 = vst.msk [vmem:[%s190 + $0x98] sm:$0xff] %vm232, %v4020
        %4085 = vst.msk [vmem:[%s190 + $0xa0] sm:$0xff] %vm232, %v4021
        %4086 = vst.msk [vmem:[%s190 + $0xa8] sm:$0xff] %vm232, %v4022
        %4087 = vst.msk [vmem:[%s190 + $0xb0] sm:$0xff] %vm232, %v4023
        %4088 = vst.msk [vmem:[%s190 + $0xb8] sm:$0xff] %vm232, %v4024
        %4089 = vst.msk [vmem:[%s190 + $0xc0] sm:$0xff] %vm232, %v4025
        %4090 = vst.msk [vmem:[%s190 + $0xc8] sm:$0xff] %vm232, %v4026
        %4091 = vst.msk [vmem:[%s190 + $0xd0] sm:$0xff] %vm232, %v4027
        %4092 = vst.msk [vmem:[%s190 + $0xd8] sm:$0xff] %vm232, %v4028
        %4093 = vst.msk [vmem:[%s190 + $0xe0] sm:$0xff] %vm232, %v4029
        %4094 = vst.msk [vmem:[%s190 + $0xe8] sm:$0xff] %vm232, %v4030
        %4095 = vst.msk [vmem:[%s190 + $0xf0] sm:$0xff] %vm232, %v4031
        %4096 = vst.msk [vmem:[%s190 + $0xf8] sm:$0xff] %vm232, %v4032
        %4097 = vst.msk [vmem:[%s190 + $0x100] sm:$0xff] %vm232, %v4033
        %4098 = vst.msk [vmem:[%s190 + $0x108] sm:$0xff] %vm232, %v4034
        %4099 = vst.msk [vmem:[%s190 + $0x110] sm:$0xff] %vm232, %v4035
        %4100 = vst.msk [vmem:[%s190 + $0x118] sm:$0xff] %vm232, %v4036
        %4101 = vst.msk [vmem:[%s190 + $0x120] sm:$0xff] %vm232, %v4037
        %4102 = vst.msk [vmem:[%s190 + $0x128] sm:$0xff] %vm232, %v4038
        %4103 = vst.msk [vmem:[%s190 + $0x130] sm:$0xff] %vm232, %v4039
        %4104 = vst.msk [vmem:[%s190 + $0x138] sm:$0xff] %vm232, %v4040
        %4105 = vst.msk [vmem:[%s190 + $0x140] sm:$0xff] %vm232, %v4041
        %4106 = vst.msk [vmem:[%s190 + $0x148] sm:$0xff] %vm232, %v4042
        %4107 = vst.msk [vmem:[%s190 + $0x150] sm:$0xff] %vm232, %v4043
        %4108 = vst.msk [vmem:[%s190 + $0x158] sm:$0xff] %vm232, %v4044
        %4109 = vst.msk [vmem:[%s190 + $0x160] sm:$0xff] %vm232, %v4045
        %4110 = vst.msk [vmem:[%s190 + $0x168] sm:$0xff] %vm232, %v4046
        %4111 = vst.msk [vmem:[%s190 + $0x170] sm:$0xff] %vm232, %v4047
        %4112 = vst.msk [vmem:[%s190 + $0x178] sm:$0xff] %vm232, %v4048
        %4113 = vst.msk [vmem:[%s190 + $0x180] sm:$0xff] %vm232, %v4049
        %4114 = vst.msk [vmem:[%s190 + $0x188] sm:$0xff] %vm232, %v4050
        %4115 = vst.msk [vmem:[%s190 + $0x190] sm:$0xff] %vm232, %v4051
        %4116 = vst.msk [vmem:[%s190 + $0x198] sm:$0xff] %vm232, %v4052
        %4117 = vst.msk [vmem:[%s190 + $0x1a0] sm:$0xff] %vm232, %v4053
        %4118 = vst.msk [vmem:[%s190 + $0x1a8] sm:$0xff] %vm232, %v4054
        %4119 = vst.msk [vmem:[%s190 + $0x1b0] sm:$0xff] %vm232, %v4055
        %4120 = vst.msk [vmem:[%s190 + $0x1b8] sm:$0xff] %vm232, %v4056
        %4121 = vst.msk [vmem:[%s190 + $0x1c0] sm:$0xff] %vm232, %v4057
        %4122 = vst.msk [vmem:[%s190 + $0x1c8] sm:$0xff] %vm232, %v4058
        %4123 = vst.msk [vmem:[%s190 + $0x1d0] sm:$0xff] %vm232, %v4059
        %4124 = vst.msk [vmem:[%s190 + $0x1d8] sm:$0xff] %vm232, %v4060
        %4125 = vst.msk [vmem:[%s190 + $0x1e0] sm:$0xff] %vm232, %v4061
        %4126 = vst.msk [vmem:[%s190 + $0x1e8] sm:$0xff] %vm232, %v4062
        %4127 = vst.msk [vmem:[%s190 + $0x1f0] sm:$0xff] %vm232, %v4063
        %4128 = vst.msk [vmem:[%s190 + $0x1f8] sm:$0xff] %vm232, %v4064
        %s4129 = sand.u32 %s115, 1
        %s4130 = scalar_lea.sflag [#allocation3], %s4129
        %s4131 = sand.u32 %s115, 1
        %s4132 = smul.addr %s4131, 512
        %s4133 = scalar_lea.vmem [#allocation2], %s4132
        // Predicated region
        $region37: #{tpu_custom_call.1} parent=35 // pred_check
          %p4134 = pneg %p125
        $region38: #{tpu_custom_call.1} parent=35 // pred_check_branch
          %4136 = sbr.rel (%p4134) target = $region40
        $region39: #{tpu_custom_call.1} parent=35 // pred_region
          %s4138 = ssub.s32 8192, 8192
          %4139 = vsyncadd %s4130, %s4138
          %s4140 = smul.addr %s18, 64
          %s4141 = smul.addr %s4140, 128
          %s4142 = scalar_lea.hbm %s4, %s4141
          %s4143 = sshll.u32 %s4133, 4
          %s4144 = int_to_ptr.vmem [resolvable:$true] %s4143
          %4149 = dma.vmem_to_hbm [thread:$0]  %s4144, 8192, %s4142, %s4130, 128, 128, 8
        $region40: #{tpu_custom_call.1} parent=35 // pred_fallthru
          _
      $region36: #{tpu_custom_call.1} parent=5 // pred_fallthru
        _
      %p4150 = scmp.le.s32.totalorder 2, %s13
      // Predicated region
      $region41: #{tpu_custom_call.1} parent=5 // pred_check
        %p4151 = pneg %p4150
      $region42: #{tpu_custom_call.1} parent=5 // pred_check_branch
        %4153 = sbr.rel (%p4151) target = $region44
      $region43: #{tpu_custom_call.1} parent=5 // pred_region
        %s4154 = ssub.s32 %s13, 2
        // Predicated region
        $region45: #{tpu_custom_call.1} parent=43 // pred_check
          %p4155 = pneg %p131
        $region46: #{tpu_custom_call.1} parent=43 // pred_check_branch
          %4157 = sbr.rel (%p4155) target = $region48
        $region47: #{tpu_custom_call.1} parent=43 // pred_region
          %s4158 = sand.u32 %s116, 1
          %s4159 = scalar_lea.sflag [#allocation3], %s4158
          %s4160 = sand.u32 %s116, 1
          %s4161 = smul.addr %s4160, 512
          %s4162 = scalar_lea.vmem [#allocation2], %s4161
          %4163 = dma.done %s4159, 8192
        $region48: #{tpu_custom_call.1} parent=43 // pred_fallthru
          _
      $region44: #{tpu_custom_call.1} parent=5 // pred_fallthru
        _
    $region6: #{tpu_custom_call.1} parent=1 // loop_footer
      %s17 = sadd.s32 1, %s13
    $region7: #{tpu_custom_call.1} parent=1 // loop_footer_branch
      %12 = sbr.rel target = $region3
    $region8: #{tpu_custom_call.1} parent=1 // loop_exit
      _
    %4164 = vsyncpa [#allocation3], 1
    %s4165 = scalar_lea.sflag [#allocation3], 1
    %4166 = vsyncpa %s4165, 1

</llo_original>
